<compile_context>
chip_gen: v5e
topology: v5e:2x2
jax: 0.10.0
libtpu: 0.0.40
codegen_flags: <defaults>
</compile_context>

<pallas_src>
import math

import numpy as np
import jax
import jax.numpy as jnp
from jax.experimental import pallas as pl
from jax.experimental.pallas import tpu as pltpu

# ---------------- configuration (small, consistent with the module) ----------------
B = 2                 # batch
LQ = 8                # number of queries
D_MODEL = 32          # d_model
N_HEADS = 4
HEAD_DIM = D_MODEL // N_HEADS
N_LEVELS = 2
N_POINTS = 2
D_FFN = 64
SPATIAL_SHAPES = ((8, 8), (4, 4))             # (H, W) per level (static)
LIN = sum(h * w for h, w in SPATIAL_SHAPES)   # 80
LN_EPS = 1e-5
N_SAMP = N_HEADS * N_LEVELS * N_POINTS        # 16 sampling points per query
LP = N_LEVELS * N_POINTS                      # samples per head


def _sample_constants():
    """Per-sample (s = (h*L + l)*P + p) level constants: W, H, level_start."""
    starts, s0 = [], 0
    for (Hl, Wl) in SPATIAL_SHAPES:
        starts.append(s0)
        s0 += Hl * Wl
    w_s, h_s, st_s = [], [], []
    for _h in range(N_HEADS):
        for l in range(N_LEVELS):
            Hl, Wl = SPATIAL_SHAPES[l]
            for _p in range(N_POINTS):
                w_s.append(float(Wl)); h_s.append(float(Hl)); st_s.append(float(starts[l]))
    return np.stack([np.asarray(w_s, np.float32),
                     np.asarray(h_s, np.float32),
                     np.asarray(st_s, np.float32)], axis=0)      # (3, N_SAMP)


SAMP_CONST_NP = _sample_constants()


def _layer_norm(x, g, b):
    mu = jnp.mean(x, axis=-1, keepdims=True)
    var = jnp.mean((x - mu) ** 2, axis=-1, keepdims=True)
    return (x - mu) * jax.lax.rsqrt(var + LN_EPS) * g + b


def _softmax_rows(logits):
    m = jnp.max(logits, axis=-1, keepdims=True)
    e = jnp.exp(logits - m)
    return e * pl.reciprocal(jnp.sum(e, axis=-1, keepdims=True), approx=True)


# ----------------------------- fused decoder-layer kernel -----------------------------
def decoder_layer_kernel(tgt_ref, pos_ref, refxy_ref, src_ref,
                         sa_wqkv_ref, sa_bqkv_ref, sa_wo_ref,
                         ca_wv_ref, ca_woa_ref, ca_boa_ref, ca_wout_ref,
                         f_w1_ref, f_b1_ref, f_w2_ref,
                         samp_ref, vecs_ref, out_ref):
    f32, bf16 = jnp.float32, jnp.bfloat16

    tgt = tgt_ref[...].astype(f32)
    pos = pos_ref[...].astype(f32)

    vecs = vecs_ref[...]                                  # (10, D) packed biases / LN params
    row = lambda i: vecs[i:i + 1, :]
    sa_bo, ln2_g, ln2_b = row(0), row(1), row(2)
    ca_bv, ca_bout, ln1_g, ln1_b = row(3), row(4), row(5), row(6)
    f_b2, ln3_g, ln3_b = row(7), row(8), row(9)

    # ---------------- self-attention + norm2 ----------------
    x = tgt + pos                                         # q = k = tgt + query_pos, v = tgt
    stacked = jnp.concatenate([x, tgt], axis=0).astype(bf16)          # (2*LQ, D)
    proj = jnp.dot(stacked, sa_wqkv_ref[...],
                   preferred_element_type=f32) + sa_bqkv_ref[...]     # (2*LQ, 3D)
    q = proj[0:LQ, 0:D_MODEL]
    k = proj[0:LQ, D_MODEL:2 * D_MODEL]
    v = proj[LQ:2 * LQ, 2 * D_MODEL:3 * D_MODEL]
    scale = 1.0 / math.sqrt(HEAD_DIM)

    heads = []
    for h in range(N_HEADS):
        sl = slice(h * HEAD_DIM, (h + 1) * HEAD_DIM)
        qh = (q[:, sl] * scale).astype(bf16)
        kh = k[:, sl].astype(bf16)
        vh = v[:, sl].astype(bf16)
        s = jax.lax.dot_general(qh, kh, (((1,), (1,)), ((), ())),
                                preferred_element_type=f32)           # (LQ, LQ)
        p = _softmax_rows(s)
        heads.append(jnp.dot(p.astype(bf16), vh, preferred_element_type=f32))
    attn = jnp.concatenate(heads, axis=1)                             # (LQ, D)
    o = jnp.dot(attn.astype(bf16), sa_wo_ref[...],
                preferred_element_type=f32) + sa_bo
    tgt = _layer_norm(tgt + o, ln2_g, ln2_b)                          # dropout2 = id

    # ---------------- MSDeformAttn (cross) + norm1 ----------------
    q2 = tgt + pos
    value = jnp.dot(src_ref[...].astype(bf16), ca_wv_ref[...],
                    preferred_element_type=f32) + ca_bv               # (LIN, D)
    value = value.astype(bf16)

    # combined sampling-offset + attention-logit projection, columns = [x16 | y16 | logits16]
    oa = jnp.dot(q2.astype(bf16), ca_woa_ref[...],
                 preferred_element_type=f32) + ca_boa_ref[...]        # (LQ, 3*N_SAMP)
    offs_x = oa[:, 0:N_SAMP]
    offs_y = oa[:, N_SAMP:2 * N_SAMP]
    logits = oa[:, 2 * N_SAMP:3 * N_SAMP]

    refxy = refxy_ref[...].astype(f32)                                # (LQ, 2*N_SAMP)
    ref_x = refxy[:, 0:N_SAMP]
    ref_y = refxy[:, N_SAMP:2 * N_SAMP]

    sc = samp_ref[...]                                                # (3, N_SAMP)
    w16, h16, start16 = sc[0:1, :], sc[1:2, :], sc[2:3, :]

    # grid_sample(align_corners=False): pixel = (ref + off/W)*W - 0.5 = ref*W + off - 0.5
    pix_x = ref_x * w16 + offs_x - 0.5                                # (LQ, N_SAMP)
    pix_y = ref_y * h16 + offs_y - 0.5
    x0 = jnp.floor(pix_x)
    y0 = jnp.floor(pix_y)
    fx = pix_x - x0
    fy = pix_y - y0

    corner_w, corner_idx = [], []
    for dx, dy in ((0, 0), (1, 0), (0, 1), (1, 1)):
        xc = x0 + dx
        yc = y0 + dy
        wx = fx if dx else (1.0 - fx)
        wy = fy if dy else (1.0 - fy)
        valid = (xc >= 0.0) & (xc <= w16 - 1.0) & (yc >= 0.0) & (yc <= h16 - 1.0)
        corner_w.append(jnp.where(valid, wx * wy, 0.0))               # zeros padding
        idx_f = start16 + yc * w16 + xc
        corner_idx.append(jnp.clip(idx_f, 0.0, LIN - 1).astype(jnp.int32))

    iota_lin = jax.lax.broadcasted_iota(jnp.int32, (LQ, LIN), 1)      # hoisted, built once

    head_outs = []
    for h in range(N_HEADS):
        aw = _softmax_rows(logits[:, h * LP:(h + 1) * LP])            # (LQ, LP)
        # fold attention weights + bilinear weights + gather into one (LQ, LIN) matrix
        A = jnp.zeros((LQ, LIN), f32)
        for c in range(4):
            coeff = aw * corner_w[c][:, h * LP:(h + 1) * LP]          # (LQ, LP)
            idx_h = corner_idx[c][:, h * LP:(h + 1) * LP]
            for j in range(LP):
                A = A + jnp.where(iota_lin == idx_h[:, j:j + 1],
                                  coeff[:, j:j + 1], 0.0)
        vh = value[:, h * HEAD_DIM:(h + 1) * HEAD_DIM]                # (LIN, hd)
        head_outs.append(jnp.dot(A.astype(bf16), vh, preferred_element_type=f32))
    msda = jnp.concatenate(head_outs, axis=1)                         # (LQ, D)
    o = jnp.dot(msda.astype(bf16), ca_wout_ref[...],
                preferred_element_type=f32) + ca_bout
    tgt = _layer_norm(tgt + o, ln1_g, ln1_b)                          # dropout1 = id

    # ---------------- FFN + norm3 ----------------
    hdn = jnp.dot(tgt.astype(bf16), f_w1_ref[...],
                  preferred_element_type=f32) + f_b1_ref[...]
    hdn = jnp.maximum(hdn, 0.0)                                       # relu
    o = jnp.dot(hdn.astype(bf16), f_w2_ref[...],
                preferred_element_type=f32) + f_b2
    tgt = _layer_norm(tgt + o, ln3_g, ln3_b)                          # dropout3/4 = id

    out_ref[...] = tgt.astype(out_ref.dtype)


# ----------------------------- host-side packing & wrapper -----------------------------
def pack_params(p):
    """Concatenate projection weights, permute offset columns, pack small vectors."""
    bf16 = jnp.bfloat16
    perm = [2 * s for s in range(N_SAMP)] + [2 * s + 1 for s in range(N_SAMP)]
    woff = p["ca_woff"][:, perm]          # columns -> [x for all samples | y for all samples]
    boff = p["ca_boff"][:, perm]
    return dict(
        sa_wqkv=jnp.concatenate([p["sa_wq"], p["sa_wk"], p["sa_wv"]], axis=1).astype(bf16),
        sa_bqkv=jnp.concatenate([p["sa_bq"], p["sa_bk"], p["sa_bv"]], axis=1),
        sa_wo=p["sa_wo"].astype(bf16),
        ca_wv=p["ca_wv"].astype(bf16),
        ca_woa=jnp.concatenate([woff, p["ca_wattn"]], axis=1).astype(bf16),
        ca_boa=jnp.concatenate([boff, p["ca_battn"]], axis=1),
        ca_wout=p["ca_wout"].astype(bf16),
        f_w1=p["f_w1"].astype(bf16),
        f_b1=p["f_b1"],
        f_w2=p["f_w2"].astype(bf16),
        samp_const=jnp.asarray(SAMP_CONST_NP),
        vecs=jnp.concatenate([p["sa_bo"], p["ln2_g"], p["ln2_b"],
                              p["ca_bv"], p["ca_bout"], p["ln1_g"], p["ln1_b"],
                              p["f_b2"], p["ln3_g"], p["ln3_b"]], axis=0),
    )


def _seq_spec(last_two):
    return pl.BlockSpec((pl.Squeezed(),) + tuple(last_two), lambda b: (b, 0, 0))


def _param_spec(shape):
    nd = len(shape)
    return pl.BlockSpec(tuple(shape), lambda b, _nd=nd: (0,) * _nd)


PARAM_NAMES = ("sa_wqkv", "sa_bqkv", "sa_wo",
               "ca_wv", "ca_woa", "ca_boa", "ca_wout",
               "f_w1", "f_b1", "f_w2",
               "samp_const", "vecs")


@jax.jit
def deformable_decoder_layer(tgt, query_pos, reference_points, src, packed):
    # expand reference points to per-sample layout [x_s | y_s], s = (h*L + l)*P + p
    rx = jnp.tile(jnp.repeat(reference_points[..., 0], N_POINTS, axis=-1), (1, 1, N_HEADS))
    ry = jnp.tile(jnp.repeat(reference_points[..., 1], N_POINTS, axis=-1), (1, 1, N_HEADS))
    refxy = jnp.concatenate([rx, ry], axis=-1)            # (B, LQ, 2*N_SAMP)

    seq_args = (tgt, query_pos, refxy, src)
    param_args = tuple(packed[n] for n in PARAM_NAMES)

    in_specs = [_seq_spec(a.shape[1:]) for a in seq_args] + \
               [_param_spec(p.shape) for p in param_args]

    return pl.pallas_call(
        decoder_layer_kernel,
        out_shape=jax.ShapeDtypeStruct((B, LQ, D_MODEL), jnp.float32),
        grid_spec=pltpu.PrefetchScalarGridSpec(
            num_scalar_prefetch=0,
            grid=(B,),
            in_specs=in_specs,
            out_specs=_seq_spec((LQ, D_MODEL)),
            scratch_shapes=()),
        compiler_params=pltpu.CompilerParams(dimension_semantics=("parallel",)),
    )(*seq_args, *param_args)


# ----------------------------- pure-JAX f32 reference (for sanity check) -----------------------------
def _ln_ref(x, g, b):
    mu = x.mean(-1, keepdims=True)
    var = ((x - mu) ** 2).mean(-1, keepdims=True)
    return (x - mu) / jnp.sqrt(var + LN_EPS) * g + b


@jax.jit
def reference_forward(tgt, query_pos, reference_points, src, p):
    H, hd, L, P = N_HEADS, HEAD_DIM, N_LEVELS, N_POINTS
    # self-attention + norm2
    x = tgt + query_pos
    q = x @ p["sa_wq"] + p["sa_bq"][0]
    k = x @ p["sa_wk"] + p["sa_bk"][0]
    v = tgt @ p["sa_wv"] + p["sa_bv"][0]
    split = lambda t: t.reshape(B, LQ, H, hd).transpose(0, 2, 1, 3)
    qh, kh, vh = split(q), split(k), split(v)
    s = jnp.einsum("bhqd,bhkd->bhqk", qh, kh) / math.sqrt(hd)
    a = jax.nn.softmax(s, axis=-1)
    o = jnp.einsum("bhqk,bhkd->bhqd", a, vh).transpose(0, 2, 1, 3).reshape(B, LQ, D_MODEL)
    o = o @ p["sa_wo"] + p["sa_bo"][0]
    tgt = _ln_ref(tgt + o, p["ln2_g"][0], p["ln2_b"][0])

    # MSDeformAttn + norm1
    q2 = tgt + query_pos
    value = (src @ p["ca_wv"] + p["ca_bv"][0]).reshape(B, LIN, H, hd)
    offs = (q2 @ p["ca_woff"] + p["ca_boff"][0]).reshape(B, LQ, H, L, P, 2)
    attw = jax.nn.softmax(
        (q2 @ p["ca_wattn"] + p["ca_battn"][0]).reshape(B, LQ, H, L * P), axis=-1
    ).reshape(B, LQ, H, L, P)

    starts, s0 = [], 0
    for (Hl, Wl) in SPATIAL_SHAPES:
        starts.append(s0); s0 += Hl * Wl

    out = jnp.zeros((B, LQ, H, hd), jnp.float32)
    lin_iota = jnp.arange(LIN, dtype=jnp.int32)
    for l, (Hl, Wl) in enumerate(SPATIAL_SHAPES):
        loc = (reference_points[:, :, None, l, None, :]
               + offs[:, :, :, l, :, :] / jnp.asarray([Wl, Hl], jnp.float32))   # (B,LQ,H,P,2)
        px = loc[..., 0] * Wl - 0.5
        py = loc[..., 1] * Hl - 0.5
        x0 = jnp.floor(px); y0 = jnp.floor(py)
        fx = px - x0; fy = py - y0
        samp = jnp.zeros((B, LQ, H, P, hd), jnp.float32)
        for dx, dy in ((0, 0), (1, 0), (0, 1), (1, 1)):
            xc = x0 + dx; yc = y0 + dy
            wgt = (fx if dx else 1.0 - fx) * (fy if dy else 1.0 - fy)
            valid = (xc >= 0) & (xc <= Wl - 1) & (yc >= 0) & (yc <= Hl - 1)
            wgt = jnp.where(valid, wgt, 0.0)
            idx = jnp.clip((starts[l] + yc * Wl + xc), 0, LIN - 1).astype(jnp.int32)
            onehot = (idx[..., None] == lin_iota).astype(jnp.float32)           # (B,LQ,H,P,LIN)
            samp = samp + jnp.einsum("bqhpl,blhd->bqhpd", onehot * wgt[..., None], value)
        out = out + jnp.einsum("bqhp,bqhpd->bqhd", attw[:, :, :, l, :], samp)
    msda = out.reshape(B, LQ, D_MODEL) @ p["ca_wout"] + p["ca_bout"][0]
    tgt = _ln_ref(tgt + msda, p["ln1_g"][0], p["ln1_b"][0])

    # FFN + norm3
    hid = jnp.maximum(tgt @ p["f_w1"] + p["f_b1"][0], 0.0)
    o = hid @ p["f_w2"] + p["f_b2"][0]
    return _ln_ref(tgt + o, p["ln3_g"][0], p["ln3_b"][0])


# ----------------------------- deterministic parameter init -----------------------------
def init_params(key):
    ks = iter(jax.random.split(key, 32))

    def w(shape, scale=0.1):
        return (scale * jax.random.normal(next(ks), shape)).astype(jnp.float32)

    d, dff = D_MODEL, D_FFN
    c_off = N_HEADS * N_LEVELS * N_POINTS * 2
    c_attn = N_HEADS * N_LEVELS * N_POINTS
    return dict(
        # self-attention (nn.MultiheadAttention): in_proj split + out_proj
        sa_wq=w((d, d)), sa_wk=w((d, d)), sa_wv=w((d, d)),
        sa_bq=w((1, d)), sa_bk=w((1, d)), sa_bv=w((1, d)),
        sa_wo=w((d, d)), sa_bo=w((1, d)),
        ln2_g=jnp.ones((1, d), jnp.float32), ln2_b=jnp.zeros((1, d), jnp.float32),
        # MSDeformAttn: value_proj, sampling_offsets, attention_weights, output_proj
        ca_wv=w((d, d)), ca_bv=w((1, d)),
        ca_woff=w((d, c_off)), ca_boff=w((1, c_off), scale=0.5),
        ca_wattn=w((d, c_attn)), ca_battn=w((1, c_attn)),
        ca_wout=w((d, d)), ca_bout=w((1, d)),
        ln1_g=jnp.ones((1, d), jnp.float32), ln1_b=jnp.zeros((1, d), jnp.float32),
        # FFN
        f_w1=w((d, dff)), f_b1=w((1, dff)),
        f_w2=w((dff, d)), f_b2=w((1, d)),
        ln3_g=jnp.ones((1, d), jnp.float32), ln3_b=jnp.zeros((1, d), jnp.float32),
    )


if __name__ == "__main__":
    key = jax.random.PRNGKey(0)
    k1, k2, k3, k4, k5 = jax.random.split(key, 5)

    params = init_params(k1)
    packed = pack_params(params)
    tgt = jax.random.normal(k2, (B, LQ, D_MODEL), jnp.float32)
    query_pos = jax.random.normal(k3, (B, LQ, D_MODEL), jnp.float32)
    reference_points = jax.random.uniform(k4, (B, LQ, N_LEVELS, 2), jnp.float32)
    src = jax.random.normal(k5, (B, LIN, D_MODEL), jnp.float32)

    out = deformable_decoder_layer(tgt, query_pos, reference_points, src, packed)
    out = jax.block_until_ready(out)

    assert out.shape == (B, LQ, D_MODEL), out.shape
    assert bool(jnp.all(jnp.isfinite(out)))

    # loose tolerance: kernel uses bf16 matmuls + approx reciprocal, reference is f32
    ref = jax.block_until_ready(reference_forward(tgt, query_pos, reference_points, src, params))
    assert float(jnp.max(jnp.abs(out - ref))) < 0.25

    print("KERNEL_OK")
</pallas_src>

<mosaic_0001>
module attributes {stable_mosaic.version = 11 : i64} {
  func.func @decoder_layer_kernel(%arg0: i32, %arg1: memref<1x8x32xf32, #tpu.memory_space<vmem>>, %arg2: memref<1x8x32xf32, #tpu.memory_space<vmem>>, %arg3: memref<1x8x32xf32, #tpu.memory_space<vmem>>, %arg4: memref<1x80x32xf32, #tpu.memory_space<vmem>>, %arg5: memref<32x96xbf16, #tpu.memory_space<vmem>>, %arg6: memref<1x96xf32, #tpu.memory_space<vmem>>, %arg7: memref<32x32xbf16, #tpu.memory_space<vmem>>, %arg8: memref<32x32xbf16, #tpu.memory_space<vmem>>, %arg9: memref<32x48xbf16, #tpu.memory_space<vmem>>, %arg10: memref<1x48xf32, #tpu.memory_space<vmem>>, %arg11: memref<32x32xbf16, #tpu.memory_space<vmem>>, %arg12: memref<32x64xbf16, #tpu.memory_space<vmem>>, %arg13: memref<1x64xf32, #tpu.memory_space<vmem>>, %arg14: memref<64x32xbf16, #tpu.memory_space<vmem>>, %arg15: memref<3x16xf32, #tpu.memory_space<vmem>>, %arg16: memref<10x32xf32, #tpu.memory_space<vmem>>, %arg17: memref<1x8x32xf32, #tpu.memory_space<vmem>>) attributes {dimension_semantics = [#tpu.dimension_semantics<parallel>], iteration_bounds = array<i64: 2>, scalar_prefetch = 0 : i64, scratch_operands = 0 : i64, tpu.core_type = #tpu.core_type<tc>, window_params = [{transform_indices = @transform_0, window_bounds = array<i64: 1, 8, 32>}, {transform_indices = @transform_1, window_bounds = array<i64: 1, 8, 32>}, {transform_indices = @transform_2, window_bounds = array<i64: 1, 8, 32>}, {transform_indices = @transform_3, window_bounds = array<i64: 1, 80, 32>}, {pipeline_mode = #tpu.pipeline_mode<synchronous>, transform_indices = @transform_4, window_bounds = array<i64: 32, 96>}, {pipeline_mode = #tpu.pipeline_mode<synchronous>, transform_indices = @transform_5, window_bounds = array<i64: 1, 96>}, {pipeline_mode = #tpu.pipeline_mode<synchronous>, transform_indices = @transform_6, window_bounds = array<i64: 32, 32>}, {pipeline_mode = #tpu.pipeline_mode<synchronous>, transform_indices = @transform_7, window_bounds = array<i64: 32, 32>}, {pipeline_mode = #tpu.pipeline_mode<synchronous>, transform_indices = @transform_8, window_bounds = array<i64: 32, 48>}, {pipeline_mode = #tpu.pipeline_mode<synchronous>, transform_indices = @transform_9, window_bounds = array<i64: 1, 48>}, {pipeline_mode = #tpu.pipeline_mode<synchronous>, transform_indices = @transform_10, window_bounds = array<i64: 32, 32>}, {pipeline_mode = #tpu.pipeline_mode<synchronous>, transform_indices = @transform_11, window_bounds = array<i64: 32, 64>}, {pipeline_mode = #tpu.pipeline_mode<synchronous>, transform_indices = @transform_12, window_bounds = array<i64: 1, 64>}, {pipeline_mode = #tpu.pipeline_mode<synchronous>, transform_indices = @transform_13, window_bounds = array<i64: 64, 32>}, {pipeline_mode = #tpu.pipeline_mode<synchronous>, transform_indices = @transform_14, window_bounds = array<i64: 3, 16>}, {pipeline_mode = #tpu.pipeline_mode<synchronous>, transform_indices = @transform_15, window_bounds = array<i64: 10, 32>}, {transform_indices = @transform_16, window_bounds = array<i64: 1, 8, 32>}]} {
    %c0 = arith.constant 0 : index
    %c0_0 = arith.constant 0 : index
    %c0_1 = arith.constant 0 : index
    %0 = vector.load %arg1[%c0, %c0_0, %c0_1] : memref<1x8x32xf32, #tpu.memory_space<vmem>>, vector<1x8x32xf32>
    %1 = vector.shape_cast %0 : vector<1x8x32xf32> to vector<8x32xf32>
    %c0_2 = arith.constant 0 : index
    %c0_3 = arith.constant 0 : index
    %c0_4 = arith.constant 0 : index
    %2 = vector.load %arg2[%c0_2, %c0_3, %c0_4] : memref<1x8x32xf32, #tpu.memory_space<vmem>>, vector<1x8x32xf32>
    %3 = vector.shape_cast %2 : vector<1x8x32xf32> to vector<8x32xf32>
    %c0_5 = arith.constant 0 : index
    %c0_6 = arith.constant 0 : index
    %4 = vector.load %arg16[%c0_5, %c0_6] : memref<10x32xf32, #tpu.memory_space<vmem>>, vector<10x32xf32>
    %5 = vector.extract_strided_slice %4 {offsets = [0, 0], sizes = [1, 32], strides = [1, 1]} : vector<10x32xf32> to vector<1x32xf32>
    %6 = vector.extract_strided_slice %4 {offsets = [1, 0], sizes = [1, 32], strides = [1, 1]} : vector<10x32xf32> to vector<1x32xf32>
    %7 = vector.extract_strided_slice %4 {offsets = [2, 0], sizes = [1, 32], strides = [1, 1]} : vector<10x32xf32> to vector<1x32xf32>
    %8 = vector.extract_strided_slice %4 {offsets = [3, 0], sizes = [1, 32], strides = [1, 1]} : vector<10x32xf32> to vector<1x32xf32>
    %9 = vector.extract_strided_slice %4 {offsets = [4, 0], sizes = [1, 32], strides = [1, 1]} : vector<10x32xf32> to vector<1x32xf32>
    %10 = vector.extract_strided_slice %4 {offsets = [5, 0], sizes = [1, 32], strides = [1, 1]} : vector<10x32xf32> to vector<1x32xf32>
    %11 = vector.extract_strided_slice %4 {offsets = [6, 0], sizes = [1, 32], strides = [1, 1]} : vector<10x32xf32> to vector<1x32xf32>
    %12 = vector.extract_strided_slice %4 {offsets = [7, 0], sizes = [1, 32], strides = [1, 1]} : vector<10x32xf32> to vector<1x32xf32>
    %13 = vector.extract_strided_slice %4 {offsets = [8, 0], sizes = [1, 32], strides = [1, 1]} : vector<10x32xf32> to vector<1x32xf32>
    %14 = vector.extract_strided_slice %4 {offsets = [9, 0], sizes = [1, 32], strides = [1, 1]} : vector<10x32xf32> to vector<1x32xf32>
    %15 = arith.addf %1, %3 : vector<8x32xf32>
    %16 = tpu.concatenate %15, %1 in 0 : vector<8x32xf32>, vector<8x32xf32> -> vector<16x32xf32>
    %17 = arith.truncf %16 : vector<16x32xf32> to vector<16x32xbf16>
    %c0_7 = arith.constant 0 : index
    %c0_8 = arith.constant 0 : index
    %18 = vector.load %arg5[%c0_7, %c0_8] : memref<32x96xbf16, #tpu.memory_space<vmem>>, vector<32x96xbf16>
    %cst = arith.constant dense<0.000000e+00> : vector<16x96xf32>
    %19 = tpu.matmul %17, %18, %cst {dimension_numbers = #tpu.dot_dimension_numbers<[1], [0], [0], [1], [0, 0, 1, 1], [], []>} : vector<16x32xbf16>, vector<32x96xbf16>, vector<16x96xf32> -> vector<16x96xf32>
    %c0_9 = arith.constant 0 : index
    %c0_10 = arith.constant 0 : index
    %20 = vector.load %arg6[%c0_9, %c0_10] : memref<1x96xf32, #tpu.memory_space<vmem>>, vector<1x96xf32>
    %21 = vector.broadcast %20 : vector<1x96xf32> to vector<16x96xf32>
    %22 = arith.addf %19, %21 : vector<16x96xf32>
    %23 = vector.extract_strided_slice %22 {offsets = [0, 0], sizes = [8, 32], strides = [1, 1]} : vector<16x96xf32> to vector<8x32xf32>
    %24 = vector.extract_strided_slice %22 {offsets = [0, 32], sizes = [8, 32], strides = [1, 1]} : vector<16x96xf32> to vector<8x32xf32>
    %25 = vector.extract_strided_slice %22 {offsets = [8, 64], sizes = [8, 32], strides = [1, 1]} : vector<16x96xf32> to vector<8x32xf32>
    %26 = vector.extract_strided_slice %23 {offsets = [0, 0], sizes = [8, 8], strides = [1, 1]} : vector<8x32xf32> to vector<8x8xf32>
    %cst_11 = arith.constant 0.353553385 : f32
    %27 = vector.broadcast %cst_11 : f32 to vector<8x8xf32>
    %28 = arith.mulf %26, %27 : vector<8x8xf32>
    %29 = arith.truncf %28 : vector<8x8xf32> to vector<8x8xbf16>
    %30 = vector.extract_strided_slice %24 {offsets = [0, 0], sizes = [8, 8], strides = [1, 1]} : vector<8x32xf32> to vector<8x8xf32>
    %31 = arith.truncf %30 : vector<8x8xf32> to vector<8x8xbf16>
    %32 = vector.extract_strided_slice %25 {offsets = [0, 0], sizes = [8, 8], strides = [1, 1]} : vector<8x32xf32> to vector<8x8xf32>
    %33 = arith.truncf %32 : vector<8x8xf32> to vector<8x8xbf16>
    %cst_12 = arith.constant dense<0.000000e+00> : vector<8x8xf32>
    %34 = tpu.matmul %29, %31, %cst_12 {dimension_numbers = #tpu.dot_dimension_numbers<[1], [1], [0], [0], [0, 0, 1, 0], [], []>} : vector<8x8xbf16>, vector<8x8xbf16>, vector<8x8xf32> -> vector<8x8xf32>
    %cst_13 = arith.constant dense<0xFF800000> : vector<8xf32>
    %35 = vector.multi_reduction <maximumf>, %34, %cst_13 [1] : vector<8x8xf32> to vector<8xf32>
    %36 = vector.shape_cast %35 : vector<8xf32> to vector<8x1xf32>
    %37 = vector.broadcast %36 : vector<8x1xf32> to vector<8x8xf32>
    %38 = arith.subf %34, %37 : vector<8x8xf32>
    %39 = math.exp %38 : vector<8x8xf32>
    %cst_14 = arith.constant dense<0.000000e+00> : vector<8xf32>
    %40 = vector.multi_reduction <add>, %39, %cst_14 [1] : vector<8x8xf32> to vector<8xf32>
    %41 = vector.shape_cast %40 : vector<8xf32> to vector<8x1xf32>
    %42 = tpu.reciprocal %41 {approx = true} : vector<8x1xf32> -> vector<8x1xf32>
    %43 = vector.broadcast %42 : vector<8x1xf32> to vector<8x8xf32>
    %44 = arith.mulf %39, %43 : vector<8x8xf32>
    %45 = arith.truncf %44 : vector<8x8xf32> to vector<8x8xbf16>
    %cst_15 = arith.constant dense<0.000000e+00> : vector<8x8xf32>
    %46 = tpu.matmul %45, %33, %cst_15 {dimension_numbers = #tpu.dot_dimension_numbers<[1], [0], [0], [1], [0, 0, 1, 1], [], []>} : vector<8x8xbf16>, vector<8x8xbf16>, vector<8x8xf32> -> vector<8x8xf32>
    %47 = vector.extract_strided_slice %23 {offsets = [0, 8], sizes = [8, 8], strides = [1, 1]} : vector<8x32xf32> to vector<8x8xf32>
    %cst_16 = arith.constant 0.353553385 : f32
    %48 = vector.broadcast %cst_16 : f32 to vector<8x8xf32>
    %49 = arith.mulf %47, %48 : vector<8x8xf32>
    %50 = arith.truncf %49 : vector<8x8xf32> to vector<8x8xbf16>
    %51 = vector.extract_strided_slice %24 {offsets = [0, 8], sizes = [8, 8], strides = [1, 1]} : vector<8x32xf32> to vector<8x8xf32>
    %52 = arith.truncf %51 : vector<8x8xf32> to vector<8x8xbf16>
    %53 = vector.extract_strided_slice %25 {offsets = [0, 8], sizes = [8, 8], strides = [1, 1]} : vector<8x32xf32> to vector<8x8xf32>
    %54 = arith.truncf %53 : vector<8x8xf32> to vector<8x8xbf16>
    %cst_17 = arith.constant dense<0.000000e+00> : vector<8x8xf32>
    %55 = tpu.matmul %50, %52, %cst_17 {dimension_numbers = #tpu.dot_dimension_numbers<[1], [1], [0], [0], [0, 0, 1, 0], [], []>} : vector<8x8xbf16>, vector<8x8xbf16>, vector<8x8xf32> -> vector<8x8xf32>
    %cst_18 = arith.constant dense<0xFF800000> : vector<8xf32>
    %56 = vector.multi_reduction <maximumf>, %55, %cst_18 [1] : vector<8x8xf32> to vector<8xf32>
    %57 = vector.shape_cast %56 : vector<8xf32> to vector<8x1xf32>
    %58 = vector.broadcast %57 : vector<8x1xf32> to vector<8x8xf32>
    %59 = arith.subf %55, %58 : vector<8x8xf32>
    %60 = math.exp %59 : vector<8x8xf32>
    %cst_19 = arith.constant dense<0.000000e+00> : vector<8xf32>
    %61 = vector.multi_reduction <add>, %60, %cst_19 [1] : vector<8x8xf32> to vector<8xf32>
    %62 = vector.shape_cast %61 : vector<8xf32> to vector<8x1xf32>
    %63 = tpu.reciprocal %62 {approx = true} : vector<8x1xf32> -> vector<8x1xf32>
    %64 = vector.broadcast %63 : vector<8x1xf32> to vector<8x8xf32>
    %65 = arith.mulf %60, %64 : vector<8x8xf32>
    %66 = arith.truncf %65 : vector<8x8xf32> to vector<8x8xbf16>
    %cst_20 = arith.constant dense<0.000000e+00> : vector<8x8xf32>
    %67 = tpu.matmul %66, %54, %cst_20 {dimension_numbers = #tpu.dot_dimension_numbers<[1], [0], [0], [1], [0, 0, 1, 1], [], []>} : vector<8x8xbf16>, vector<8x8xbf16>, vector<8x8xf32> -> vector<8x8xf32>
    %68 = vector.extract_strided_slice %23 {offsets = [0, 16], sizes = [8, 8], strides = [1, 1]} : vector<8x32xf32> to vector<8x8xf32>
    %cst_21 = arith.constant 0.353553385 : f32
    %69 = vector.broadcast %cst_21 : f32 to vector<8x8xf32>
    %70 = arith.mulf %68, %69 : vector<8x8xf32>
    %71 = arith.truncf %70 : vector<8x8xf32> to vector<8x8xbf16>
    %72 = vector.extract_strided_slice %24 {offsets = [0, 16], sizes = [8, 8], strides = [1, 1]} : vector<8x32xf32> to vector<8x8xf32>
    %73 = arith.truncf %72 : vector<8x8xf32> to vector<8x8xbf16>
    %74 = vector.extract_strided_slice %25 {offsets = [0, 16], sizes = [8, 8], strides = [1, 1]} : vector<8x32xf32> to vector<8x8xf32>
    %75 = arith.truncf %74 : vector<8x8xf32> to vector<8x8xbf16>
    %cst_22 = arith.constant dense<0.000000e+00> : vector<8x8xf32>
    %76 = tpu.matmul %71, %73, %cst_22 {dimension_numbers = #tpu.dot_dimension_numbers<[1], [1], [0], [0], [0, 0, 1, 0], [], []>} : vector<8x8xbf16>, vector<8x8xbf16>, vector<8x8xf32> -> vector<8x8xf32>
    %cst_23 = arith.constant dense<0xFF800000> : vector<8xf32>
    %77 = vector.multi_reduction <maximumf>, %76, %cst_23 [1] : vector<8x8xf32> to vector<8xf32>
    %78 = vector.shape_cast %77 : vector<8xf32> to vector<8x1xf32>
    %79 = vector.broadcast %78 : vector<8x1xf32> to vector<8x8xf32>
    %80 = arith.subf %76, %79 : vector<8x8xf32>
    %81 = math.exp %80 : vector<8x8xf32>
    %cst_24 = arith.constant dense<0.000000e+00> : vector<8xf32>
    %82 = vector.multi_reduction <add>, %81, %cst_24 [1] : vector<8x8xf32> to vector<8xf32>
    %83 = vector.shape_cast %82 : vector<8xf32> to vector<8x1xf32>
    %84 = tpu.reciprocal %83 {approx = true} : vector<8x1xf32> -> vector<8x1xf32>
    %85 = vector.broadcast %84 : vector<8x1xf32> to vector<8x8xf32>
    %86 = arith.mulf %81, %85 : vector<8x8xf32>
    %87 = arith.truncf %86 : vector<8x8xf32> to vector<8x8xbf16>
    %cst_25 = arith.constant dense<0.000000e+00> : vector<8x8xf32>
    %88 = tpu.matmul %87, %75, %cst_25 {dimension_numbers = #tpu.dot_dimension_numbers<[1], [0], [0], [1], [0, 0, 1, 1], [], []>} : vector<8x8xbf16>, vector<8x8xbf16>, vector<8x8xf32> -> vector<8x8xf32>
    %89 = vector.extract_strided_slice %23 {offsets = [0, 24], sizes = [8, 8], strides = [1, 1]} : vector<8x32xf32> to vector<8x8xf32>
    %cst_26 = arith.constant 0.353553385 : f32
    %90 = vector.broadcast %cst_26 : f32 to vector<8x8xf32>
    %91 = arith.mulf %89, %90 : vector<8x8xf32>
    %92 = arith.truncf %91 : vector<8x8xf32> to vector<8x8xbf16>
    %93 = vector.extract_strided_slice %24 {offsets = [0, 24], sizes = [8, 8], strides = [1, 1]} : vector<8x32xf32> to vector<8x8xf32>
    %94 = arith.truncf %93 : vector<8x8xf32> to vector<8x8xbf16>
    %95 = vector.extract_strided_slice %25 {offsets = [0, 24], sizes = [8, 8], strides = [1, 1]} : vector<8x32xf32> to vector<8x8xf32>
    %96 = arith.truncf %95 : vector<8x8xf32> to vector<8x8xbf16>
    %cst_27 = arith.constant dense<0.000000e+00> : vector<8x8xf32>
    %97 = tpu.matmul %92, %94, %cst_27 {dimension_numbers = #tpu.dot_dimension_numbers<[1], [1], [0], [0], [0, 0, 1, 0], [], []>} : vector<8x8xbf16>, vector<8x8xbf16>, vector<8x8xf32> -> vector<8x8xf32>
    %cst_28 = arith.constant dense<0xFF800000> : vector<8xf32>
    %98 = vector.multi_reduction <maximumf>, %97, %cst_28 [1] : vector<8x8xf32> to vector<8xf32>
    %99 = vector.shape_cast %98 : vector<8xf32> to vector<8x1xf32>
    %100 = vector.broadcast %99 : vector<8x1xf32> to vector<8x8xf32>
    %101 = arith.subf %97, %100 : vector<8x8xf32>
    %102 = math.exp %101 : vector<8x8xf32>
    %cst_29 = arith.constant dense<0.000000e+00> : vector<8xf32>
    %103 = vector.multi_reduction <add>, %102, %cst_29 [1] : vector<8x8xf32> to vector<8xf32>
    %104 = vector.shape_cast %103 : vector<8xf32> to vector<8x1xf32>
    %105 = tpu.reciprocal %104 {approx = true} : vector<8x1xf32> -> vector<8x1xf32>
    %106 = vector.broadcast %105 : vector<8x1xf32> to vector<8x8xf32>
    %107 = arith.mulf %102, %106 : vector<8x8xf32>
    %108 = arith.truncf %107 : vector<8x8xf32> to vector<8x8xbf16>
    %cst_30 = arith.constant dense<0.000000e+00> : vector<8x8xf32>
    %109 = tpu.matmul %108, %96, %cst_30 {dimension_numbers = #tpu.dot_dimension_numbers<[1], [0], [0], [1], [0, 0, 1, 1], [], []>} : vector<8x8xbf16>, vector<8x8xbf16>, vector<8x8xf32> -> vector<8x8xf32>
    %110 = tpu.concatenate %46, %67, %88, %109 in 1 : vector<8x8xf32>, vector<8x8xf32>, vector<8x8xf32>, vector<8x8xf32> -> vector<8x32xf32>
    %111 = arith.truncf %110 : vector<8x32xf32> to vector<8x32xbf16>
    %c0_31 = arith.constant 0 : index
    %c0_32 = arith.constant 0 : index
    %112 = vector.load %arg7[%c0_31, %c0_32] : memref<32x32xbf16, #tpu.memory_space<vmem>>, vector<32x32xbf16>
    %cst_33 = arith.constant dense<0.000000e+00> : vector<8x32xf32>
    %113 = tpu.matmul %111, %112, %cst_33 {dimension_numbers = #tpu.dot_dimension_numbers<[1], [0], [0], [1], [0, 0, 1, 1], [], []>} : vector<8x32xbf16>, vector<32x32xbf16>, vector<8x32xf32> -> vector<8x32xf32>
    %114 = vector.broadcast %5 : vector<1x32xf32> to vector<8x32xf32>
    %115 = arith.addf %113, %114 : vector<8x32xf32>
    %116 = arith.addf %1, %115 : vector<8x32xf32>
    %cst_34 = arith.constant dense<0.000000e+00> : vector<8xf32>
    %117 = vector.multi_reduction <add>, %116, %cst_34 [1] : vector<8x32xf32> to vector<8xf32>
    %118 = vector.shape_cast %117 : vector<8xf32> to vector<8x1xf32>
    %cst_35 = arith.constant 3.200000e+01 : f32
    %119 = vector.broadcast %cst_35 : f32 to vector<8x1xf32>
    %120 = arith.divf %118, %119 : vector<8x1xf32>
    %121 = vector.broadcast %120 : vector<8x1xf32> to vector<8x32xf32>
    %122 = arith.subf %116, %121 : vector<8x32xf32>
    %123 = arith.mulf %122, %122 : vector<8x32xf32>
    %cst_36 = arith.constant dense<0.000000e+00> : vector<8xf32>
    %124 = vector.multi_reduction <add>, %123, %cst_36 [1] : vector<8x32xf32> to vector<8xf32>
    %125 = vector.shape_cast %124 : vector<8xf32> to vector<8x1xf32>
    %cst_37 = arith.constant 3.200000e+01 : f32
    %126 = vector.broadcast %cst_37 : f32 to vector<8x1xf32>
    %127 = arith.divf %125, %126 : vector<8x1xf32>
    %128 = vector.broadcast %120 : vector<8x1xf32> to vector<8x32xf32>
    %129 = arith.subf %116, %128 : vector<8x32xf32>
    %cst_38 = arith.constant 9.99999974E-6 : f32
    %130 = vector.broadcast %cst_38 : f32 to vector<8x1xf32>
    %131 = arith.addf %127, %130 : vector<8x1xf32>
    %132 = math.rsqrt %131 : vector<8x1xf32>
    %133 = vector.broadcast %132 : vector<8x1xf32> to vector<8x32xf32>
    %134 = arith.mulf %129, %133 : vector<8x32xf32>
    %135 = vector.broadcast %6 : vector<1x32xf32> to vector<8x32xf32>
    %136 = arith.mulf %134, %135 : vector<8x32xf32>
    %137 = vector.broadcast %7 : vector<1x32xf32> to vector<8x32xf32>
    %138 = arith.addf %136, %137 : vector<8x32xf32>
    %139 = arith.addf %138, %3 : vector<8x32xf32>
    %c0_39 = arith.constant 0 : index
    %c0_40 = arith.constant 0 : index
    %c0_41 = arith.constant 0 : index
    %140 = vector.load %arg4[%c0_39, %c0_40, %c0_41] : memref<1x80x32xf32, #tpu.memory_space<vmem>>, vector<1x80x32xf32>
    %141 = vector.shape_cast %140 : vector<1x80x32xf32> to vector<80x32xf32>
    %142 = arith.truncf %141 : vector<80x32xf32> to vector<80x32xbf16>
    %c0_42 = arith.constant 0 : index
    %c0_43 = arith.constant 0 : index
    %143 = vector.load %arg8[%c0_42, %c0_43] : memref<32x32xbf16, #tpu.memory_space<vmem>>, vector<32x32xbf16>
    %cst_44 = arith.constant dense<0.000000e+00> : vector<80x32xf32>
    %144 = tpu.matmul %142, %143, %cst_44 {dimension_numbers = #tpu.dot_dimension_numbers<[1], [0], [0], [1], [0, 0, 1, 1], [], []>} : vector<80x32xbf16>, vector<32x32xbf16>, vector<80x32xf32> -> vector<80x32xf32>
    %145 = vector.broadcast %8 : vector<1x32xf32> to vector<80x32xf32>
    %146 = arith.addf %144, %145 : vector<80x32xf32>
    %147 = arith.truncf %146 : vector<80x32xf32> to vector<80x32xbf16>
    %148 = arith.truncf %139 : vector<8x32xf32> to vector<8x32xbf16>
    %c0_45 = arith.constant 0 : index
    %c0_46 = arith.constant 0 : index
    %149 = vector.load %arg9[%c0_45, %c0_46] : memref<32x48xbf16, #tpu.memory_space<vmem>>, vector<32x48xbf16>
    %cst_47 = arith.constant dense<0.000000e+00> : vector<8x48xf32>
    %150 = tpu.matmul %148, %149, %cst_47 {dimension_numbers = #tpu.dot_dimension_numbers<[1], [0], [0], [1], [0, 0, 1, 1], [], []>} : vector<8x32xbf16>, vector<32x48xbf16>, vector<8x48xf32> -> vector<8x48xf32>
    %c0_48 = arith.constant 0 : index
    %c0_49 = arith.constant 0 : index
    %151 = vector.load %arg10[%c0_48, %c0_49] : memref<1x48xf32, #tpu.memory_space<vmem>>, vector<1x48xf32>
    %152 = vector.broadcast %151 : vector<1x48xf32> to vector<8x48xf32>
    %153 = arith.addf %150, %152 : vector<8x48xf32>
    %154 = vector.extract_strided_slice %153 {offsets = [0, 0], sizes = [8, 16], strides = [1, 1]} : vector<8x48xf32> to vector<8x16xf32>
    %155 = vector.extract_strided_slice %153 {offsets = [0, 16], sizes = [8, 16], strides = [1, 1]} : vector<8x48xf32> to vector<8x16xf32>
    %156 = vector.extract_strided_slice %153 {offsets = [0, 32], sizes = [8, 16], strides = [1, 1]} : vector<8x48xf32> to vector<8x16xf32>
    %c0_50 = arith.constant 0 : index
    %c0_51 = arith.constant 0 : index
    %c0_52 = arith.constant 0 : index
    %157 = vector.load %arg3[%c0_50, %c0_51, %c0_52] : memref<1x8x32xf32, #tpu.memory_space<vmem>>, vector<1x8x32xf32>
    %158 = vector.shape_cast %157 : vector<1x8x32xf32> to vector<8x32xf32>
    %159 = vector.extract_strided_slice %158 {offsets = [0, 0], sizes = [8, 16], strides = [1, 1]} : vector<8x32xf32> to vector<8x16xf32>
    %160 = vector.extract_strided_slice %158 {offsets = [0, 16], sizes = [8, 16], strides = [1, 1]} : vector<8x32xf32> to vector<8x16xf32>
    %c0_53 = arith.constant 0 : index
    %c0_54 = arith.constant 0 : index
    %161 = vector.load %arg15[%c0_53, %c0_54] : memref<3x16xf32, #tpu.memory_space<vmem>>, vector<3x16xf32>
    %162 = vector.extract_strided_slice %161 {offsets = [0, 0], sizes = [1, 16], strides = [1, 1]} : vector<3x16xf32> to vector<1x16xf32>
    %163 = vector.extract_strided_slice %161 {offsets = [1, 0], sizes = [1, 16], strides = [1, 1]} : vector<3x16xf32> to vector<1x16xf32>
    %164 = vector.extract_strided_slice %161 {offsets = [2, 0], sizes = [1, 16], strides = [1, 1]} : vector<3x16xf32> to vector<1x16xf32>
    %165 = vector.broadcast %162 : vector<1x16xf32> to vector<8x16xf32>
    %166 = arith.mulf %159, %165 : vector<8x16xf32>
    %167 = arith.addf %166, %154 : vector<8x16xf32>
    %cst_55 = arith.constant 5.000000e-01 : f32
    %168 = vector.broadcast %cst_55 : f32 to vector<8x16xf32>
    %169 = arith.subf %167, %168 : vector<8x16xf32>
    %170 = vector.broadcast %163 : vector<1x16xf32> to vector<8x16xf32>
    %171 = arith.mulf %160, %170 : vector<8x16xf32>
    %172 = arith.addf %171, %155 : vector<8x16xf32>
    %cst_56 = arith.constant 5.000000e-01 : f32
    %173 = vector.broadcast %cst_56 : f32 to vector<8x16xf32>
    %174 = arith.subf %172, %173 : vector<8x16xf32>
    %175 = math.floor %169 : vector<8x16xf32>
    %176 = math.floor %174 : vector<8x16xf32>
    %177 = arith.subf %169, %175 : vector<8x16xf32>
    %178 = arith.subf %174, %176 : vector<8x16xf32>
    %cst_57 = arith.constant 0.000000e+00 : f32
    %179 = vector.broadcast %cst_57 : f32 to vector<8x16xf32>
    %180 = arith.addf %175, %179 : vector<8x16xf32>
    %cst_58 = arith.constant 0.000000e+00 : f32
    %181 = vector.broadcast %cst_58 : f32 to vector<8x16xf32>
    %182 = arith.addf %176, %181 : vector<8x16xf32>
    %cst_59 = arith.constant 1.000000e+00 : f32
    %183 = vector.broadcast %cst_59 : f32 to vector<8x16xf32>
    %184 = arith.subf %183, %177 : vector<8x16xf32>
    %cst_60 = arith.constant 1.000000e+00 : f32
    %185 = vector.broadcast %cst_60 : f32 to vector<8x16xf32>
    %186 = arith.subf %185, %178 : vector<8x16xf32>
    %cst_61 = arith.constant 0.000000e+00 : f32
    %187 = vector.broadcast %cst_61 : f32 to vector<8x16xf32>
    %188 = arith.cmpf oge, %180, %187 : vector<8x16xf32>
    %cst_62 = arith.constant 1.000000e+00 : f32
    %189 = vector.broadcast %cst_62 : f32 to vector<1x16xf32>
    %190 = arith.subf %162, %189 : vector<1x16xf32>
    %191 = vector.broadcast %190 : vector<1x16xf32> to vector<8x16xf32>
    %192 = arith.cmpf ole, %180, %191 : vector<8x16xf32>
    %193 = arith.andi %188, %192 : vector<8x16xi1>
    %cst_63 = arith.constant 0.000000e+00 : f32
    %194 = vector.broadcast %cst_63 : f32 to vector<8x16xf32>
    %195 = arith.cmpf oge, %182, %194 : vector<8x16xf32>
    %196 = arith.andi %193, %195 : vector<8x16xi1>
    %cst_64 = arith.constant 1.000000e+00 : f32
    %197 = vector.broadcast %cst_64 : f32 to vector<1x16xf32>
    %198 = arith.subf %163, %197 : vector<1x16xf32>
    %199 = vector.broadcast %198 : vector<1x16xf32> to vector<8x16xf32>
    %200 = arith.cmpf ole, %182, %199 : vector<8x16xf32>
    %201 = arith.andi %196, %200 : vector<8x16xi1>
    %202 = arith.mulf %184, %186 : vector<8x16xf32>
    %cst_65 = arith.constant 0.000000e+00 : f32
    %203 = vector.broadcast %cst_65 : f32 to vector<8x16xf32>
    %204 = arith.select %201, %202, %203 : vector<8x16xi1>, vector<8x16xf32>
    %205 = vector.broadcast %162 : vector<1x16xf32> to vector<8x16xf32>
    %206 = arith.mulf %182, %205 : vector<8x16xf32>
    %207 = vector.broadcast %164 : vector<1x16xf32> to vector<8x16xf32>
    %208 = arith.addf %207, %206 : vector<8x16xf32>
    %209 = arith.addf %208, %180 : vector<8x16xf32>
    %cst_66 = arith.constant 0.000000e+00 : f32
    %c79_i32 = arith.constant 79 : i32
    %210 = vector.broadcast %cst_66 : f32 to vector<8x16xf32>
    %211 = arith.maximumf %210, %209 : vector<8x16xf32>
    %212 = arith.sitofp %c79_i32 : i32 to f32
    %213 = vector.broadcast %212 : f32 to vector<8x16xf32>
    %214 = arith.minimumf %213, %211 : vector<8x16xf32>
    %215 = arith.fptosi %214 : vector<8x16xf32> to vector<8x16xi32>
    %cst_67 = arith.constant 1.000000e+00 : f32
    %216 = vector.broadcast %cst_67 : f32 to vector<8x16xf32>
    %217 = arith.addf %175, %216 : vector<8x16xf32>
    %cst_68 = arith.constant 0.000000e+00 : f32
    %218 = vector.broadcast %cst_68 : f32 to vector<8x16xf32>
    %219 = arith.addf %176, %218 : vector<8x16xf32>
    %cst_69 = arith.constant 1.000000e+00 : f32
    %220 = vector.broadcast %cst_69 : f32 to vector<8x16xf32>
    %221 = arith.subf %220, %178 : vector<8x16xf32>
    %cst_70 = arith.constant 0.000000e+00 : f32
    %222 = vector.broadcast %cst_70 : f32 to vector<8x16xf32>
    %223 = arith.cmpf oge, %217, %222 : vector<8x16xf32>
    %cst_71 = arith.constant 1.000000e+00 : f32
    %224 = vector.broadcast %cst_71 : f32 to vector<1x16xf32>
    %225 = arith.subf %162, %224 : vector<1x16xf32>
    %226 = vector.broadcast %225 : vector<1x16xf32> to vector<8x16xf32>
    %227 = arith.cmpf ole, %217, %226 : vector<8x16xf32>
    %228 = arith.andi %223, %227 : vector<8x16xi1>
    %cst_72 = arith.constant 0.000000e+00 : f32
    %229 = vector.broadcast %cst_72 : f32 to vector<8x16xf32>
    %230 = arith.cmpf oge, %219, %229 : vector<8x16xf32>
    %231 = arith.andi %228, %230 : vector<8x16xi1>
    %cst_73 = arith.constant 1.000000e+00 : f32
    %232 = vector.broadcast %cst_73 : f32 to vector<1x16xf32>
    %233 = arith.subf %163, %232 : vector<1x16xf32>
    %234 = vector.broadcast %233 : vector<1x16xf32> to vector<8x16xf32>
    %235 = arith.cmpf ole, %219, %234 : vector<8x16xf32>
    %236 = arith.andi %231, %235 : vector<8x16xi1>
    %237 = arith.mulf %177, %221 : vector<8x16xf32>
    %cst_74 = arith.constant 0.000000e+00 : f32
    %238 = vector.broadcast %cst_74 : f32 to vector<8x16xf32>
    %239 = arith.select %236, %237, %238 : vector<8x16xi1>, vector<8x16xf32>
    %240 = vector.broadcast %162 : vector<1x16xf32> to vector<8x16xf32>
    %241 = arith.mulf %219, %240 : vector<8x16xf32>
    %242 = vector.broadcast %164 : vector<1x16xf32> to vector<8x16xf32>
    %243 = arith.addf %242, %241 : vector<8x16xf32>
    %244 = arith.addf %243, %217 : vector<8x16xf32>
    %cst_75 = arith.constant 0.000000e+00 : f32
    %c79_i32_76 = arith.constant 79 : i32
    %245 = vector.broadcast %cst_75 : f32 to vector<8x16xf32>
    %246 = arith.maximumf %245, %244 : vector<8x16xf32>
    %247 = arith.sitofp %c79_i32_76 : i32 to f32
    %248 = vector.broadcast %247 : f32 to vector<8x16xf32>
    %249 = arith.minimumf %248, %246 : vector<8x16xf32>
    %250 = arith.fptosi %249 : vector<8x16xf32> to vector<8x16xi32>
    %cst_77 = arith.constant 0.000000e+00 : f32
    %251 = vector.broadcast %cst_77 : f32 to vector<8x16xf32>
    %252 = arith.addf %175, %251 : vector<8x16xf32>
    %cst_78 = arith.constant 1.000000e+00 : f32
    %253 = vector.broadcast %cst_78 : f32 to vector<8x16xf32>
    %254 = arith.addf %176, %253 : vector<8x16xf32>
    %cst_79 = arith.constant 1.000000e+00 : f32
    %255 = vector.broadcast %cst_79 : f32 to vector<8x16xf32>
    %256 = arith.subf %255, %177 : vector<8x16xf32>
    %cst_80 = arith.constant 0.000000e+00 : f32
    %257 = vector.broadcast %cst_80 : f32 to vector<8x16xf32>
    %258 = arith.cmpf oge, %252, %257 : vector<8x16xf32>
    %cst_81 = arith.constant 1.000000e+00 : f32
    %259 = vector.broadcast %cst_81 : f32 to vector<1x16xf32>
    %260 = arith.subf %162, %259 : vector<1x16xf32>
    %261 = vector.broadcast %260 : vector<1x16xf32> to vector<8x16xf32>
    %262 = arith.cmpf ole, %252, %261 : vector<8x16xf32>
    %263 = arith.andi %258, %262 : vector<8x16xi1>
    %cst_82 = arith.constant 0.000000e+00 : f32
    %264 = vector.broadcast %cst_82 : f32 to vector<8x16xf32>
    %265 = arith.cmpf oge, %254, %264 : vector<8x16xf32>
    %266 = arith.andi %263, %265 : vector<8x16xi1>
    %cst_83 = arith.constant 1.000000e+00 : f32
    %267 = vector.broadcast %cst_83 : f32 to vector<1x16xf32>
    %268 = arith.subf %163, %267 : vector<1x16xf32>
    %269 = vector.broadcast %268 : vector<1x16xf32> to vector<8x16xf32>
    %270 = arith.cmpf ole, %254, %269 : vector<8x16xf32>
    %271 = arith.andi %266, %270 : vector<8x16xi1>
    %272 = arith.mulf %256, %178 : vector<8x16xf32>
    %cst_84 = arith.constant 0.000000e+00 : f32
    %273 = vector.broadcast %cst_84 : f32 to vector<8x16xf32>
    %274 = arith.select %271, %272, %273 : vector<8x16xi1>, vector<8x16xf32>
    %275 = vector.broadcast %162 : vector<1x16xf32> to vector<8x16xf32>
    %276 = arith.mulf %254, %275 : vector<8x16xf32>
    %277 = vector.broadcast %164 : vector<1x16xf32> to vector<8x16xf32>
    %278 = arith.addf %277, %276 : vector<8x16xf32>
    %279 = arith.addf %278, %252 : vector<8x16xf32>
    %cst_85 = arith.constant 0.000000e+00 : f32
    %c79_i32_86 = arith.constant 79 : i32
    %280 = vector.broadcast %cst_85 : f32 to vector<8x16xf32>
    %281 = arith.maximumf %280, %279 : vector<8x16xf32>
    %282 = arith.sitofp %c79_i32_86 : i32 to f32
    %283 = vector.broadcast %282 : f32 to vector<8x16xf32>
    %284 = arith.minimumf %283, %281 : vector<8x16xf32>
    %285 = arith.fptosi %284 : vector<8x16xf32> to vector<8x16xi32>
    %cst_87 = arith.constant 1.000000e+00 : f32
    %286 = vector.broadcast %cst_87 : f32 to vector<8x16xf32>
    %287 = arith.addf %175, %286 : vector<8x16xf32>
    %cst_88 = arith.constant 1.000000e+00 : f32
    %288 = vector.broadcast %cst_88 : f32 to vector<8x16xf32>
    %289 = arith.addf %176, %288 : vector<8x16xf32>
    %cst_89 = arith.constant 0.000000e+00 : f32
    %290 = vector.broadcast %cst_89 : f32 to vector<8x16xf32>
    %291 = arith.cmpf oge, %287, %290 : vector<8x16xf32>
    %cst_90 = arith.constant 1.000000e+00 : f32
    %292 = vector.broadcast %cst_90 : f32 to vector<1x16xf32>
    %293 = arith.subf %162, %292 : vector<1x16xf32>
    %294 = vector.broadcast %293 : vector<1x16xf32> to vector<8x16xf32>
    %295 = arith.cmpf ole, %287, %294 : vector<8x16xf32>
    %296 = arith.andi %291, %295 : vector<8x16xi1>
    %cst_91 = arith.constant 0.000000e+00 : f32
    %297 = vector.broadcast %cst_91 : f32 to vector<8x16xf32>
    %298 = arith.cmpf oge, %289, %297 : vector<8x16xf32>
    %299 = arith.andi %296, %298 : vector<8x16xi1>
    %cst_92 = arith.constant 1.000000e+00 : f32
    %300 = vector.broadcast %cst_92 : f32 to vector<1x16xf32>
    %301 = arith.subf %163, %300 : vector<1x16xf32>
    %302 = vector.broadcast %301 : vector<1x16xf32> to vector<8x16xf32>
    %303 = arith.cmpf ole, %289, %302 : vector<8x16xf32>
    %304 = arith.andi %299, %303 : vector<8x16xi1>
    %305 = arith.mulf %177, %178 : vector<8x16xf32>
    %cst_93 = arith.constant 0.000000e+00 : f32
    %306 = vector.broadcast %cst_93 : f32 to vector<8x16xf32>
    %307 = arith.select %304, %305, %306 : vector<8x16xi1>, vector<8x16xf32>
    %308 = vector.broadcast %162 : vector<1x16xf32> to vector<8x16xf32>
    %309 = arith.mulf %289, %308 : vector<8x16xf32>
    %310 = vector.broadcast %164 : vector<1x16xf32> to vector<8x16xf32>
    %311 = arith.addf %310, %309 : vector<8x16xf32>
    %312 = arith.addf %311, %287 : vector<8x16xf32>
    %cst_94 = arith.constant 0.000000e+00 : f32
    %c79_i32_95 = arith.constant 79 : i32
    %313 = vector.broadcast %cst_94 : f32 to vector<8x16xf32>
    %314 = arith.maximumf %313, %312 : vector<8x16xf32>
    %315 = arith.sitofp %c79_i32_95 : i32 to f32
    %316 = vector.broadcast %315 : f32 to vector<8x16xf32>
    %317 = arith.minimumf %316, %314 : vector<8x16xf32>
    %318 = arith.fptosi %317 : vector<8x16xf32> to vector<8x16xi32>
    %319 = tpu.iota {dimensions = array<i32: 1>} : vector<8x80xi32>
    %320 = vector.extract_strided_slice %156 {offsets = [0, 0], sizes = [8, 4], strides = [1, 1]} : vector<8x16xf32> to vector<8x4xf32>
    %cst_96 = arith.constant dense<0xFF800000> : vector<8xf32>
    %321 = vector.multi_reduction <maximumf>, %320, %cst_96 [1] : vector<8x4xf32> to vector<8xf32>
    %322 = vector.shape_cast %321 : vector<8xf32> to vector<8x1xf32>
    %323 = vector.broadcast %322 : vector<8x1xf32> to vector<8x4xf32>
    %324 = arith.subf %320, %323 : vector<8x4xf32>
    %325 = math.exp %324 : vector<8x4xf32>
    %cst_97 = arith.constant dense<0.000000e+00> : vector<8xf32>
    %326 = vector.multi_reduction <add>, %325, %cst_97 [1] : vector<8x4xf32> to vector<8xf32>
    %327 = vector.shape_cast %326 : vector<8xf32> to vector<8x1xf32>
    %328 = tpu.reciprocal %327 {approx = true} : vector<8x1xf32> -> vector<8x1xf32>
    %329 = vector.broadcast %328 : vector<8x1xf32> to vector<8x4xf32>
    %330 = arith.mulf %325, %329 : vector<8x4xf32>
    %cst_98 = arith.constant 0.000000e+00 : f32
    %331 = vector.broadcast %cst_98 : f32 to vector<8x80xf32>
    %332 = vector.extract_strided_slice %204 {offsets = [0, 0], sizes = [8, 4], strides = [1, 1]} : vector<8x16xf32> to vector<8x4xf32>
    %333 = arith.mulf %330, %332 : vector<8x4xf32>
    %334 = vector.extract_strided_slice %215 {offsets = [0, 0], sizes = [8, 4], strides = [1, 1]} : vector<8x16xi32> to vector<8x4xi32>
    %335 = vector.extract_strided_slice %334 {offsets = [0, 0], sizes = [8, 1], strides = [1, 1]} : vector<8x4xi32> to vector<8x1xi32>
    %336 = vector.broadcast %335 : vector<8x1xi32> to vector<8x80xi32>
    %337 = arith.cmpi eq, %319, %336 : vector<8x80xi32>
    %338 = vector.extract_strided_slice %333 {offsets = [0, 0], sizes = [8, 1], strides = [1, 1]} : vector<8x4xf32> to vector<8x1xf32>
    %cst_99 = arith.constant 0.000000e+00 : f32
    %339 = vector.shape_cast %338 : vector<8x1xf32> to vector<8x1xf32>
    %340 = vector.broadcast %339 : vector<8x1xf32> to vector<8x80xf32>
    %341 = vector.broadcast %cst_99 : f32 to vector<8x80xf32>
    %342 = arith.select %337, %340, %341 : vector<8x80xi1>, vector<8x80xf32>
    %343 = arith.addf %331, %342 : vector<8x80xf32>
    %344 = vector.extract_strided_slice %334 {offsets = [0, 1], sizes = [8, 1], strides = [1, 1]} : vector<8x4xi32> to vector<8x1xi32>
    %345 = vector.broadcast %344 : vector<8x1xi32> to vector<8x80xi32>
    %346 = arith.cmpi eq, %319, %345 : vector<8x80xi32>
    %347 = vector.extract_strided_slice %333 {offsets = [0, 1], sizes = [8, 1], strides = [1, 1]} : vector<8x4xf32> to vector<8x1xf32>
    %cst_100 = arith.constant 0.000000e+00 : f32
    %348 = vector.shape_cast %347 : vector<8x1xf32> to vector<8x1xf32>
    %349 = vector.broadcast %348 : vector<8x1xf32> to vector<8x80xf32>
    %350 = vector.broadcast %cst_100 : f32 to vector<8x80xf32>
    %351 = arith.select %346, %349, %350 : vector<8x80xi1>, vector<8x80xf32>
    %352 = arith.addf %343, %351 : vector<8x80xf32>
    %353 = vector.extract_strided_slice %334 {offsets = [0, 2], sizes = [8, 1], strides = [1, 1]} : vector<8x4xi32> to vector<8x1xi32>
    %354 = vector.broadcast %353 : vector<8x1xi32> to vector<8x80xi32>
    %355 = arith.cmpi eq, %319, %354 : vector<8x80xi32>
    %356 = vector.extract_strided_slice %333 {offsets = [0, 2], sizes = [8, 1], strides = [1, 1]} : vector<8x4xf32> to vector<8x1xf32>
    %cst_101 = arith.constant 0.000000e+00 : f32
    %357 = vector.shape_cast %356 : vector<8x1xf32> to vector<8x1xf32>
    %358 = vector.broadcast %357 : vector<8x1xf32> to vector<8x80xf32>
    %359 = vector.broadcast %cst_101 : f32 to vector<8x80xf32>
    %360 = arith.select %355, %358, %359 : vector<8x80xi1>, vector<8x80xf32>
    %361 = arith.addf %352, %360 : vector<8x80xf32>
    %362 = vector.extract_strided_slice %334 {offsets = [0, 3], sizes = [8, 1], strides = [1, 1]} : vector<8x4xi32> to vector<8x1xi32>
    %363 = vector.broadcast %362 : vector<8x1xi32> to vector<8x80xi32>
    %364 = arith.cmpi eq, %319, %363 : vector<8x80xi32>
    %365 = vector.extract_strided_slice %333 {offsets = [0, 3], sizes = [8, 1], strides = [1, 1]} : vector<8x4xf32> to vector<8x1xf32>
    %cst_102 = arith.constant 0.000000e+00 : f32
    %366 = vector.shape_cast %365 : vector<8x1xf32> to vector<8x1xf32>
    %367 = vector.broadcast %366 : vector<8x1xf32> to vector<8x80xf32>
    %368 = vector.broadcast %cst_102 : f32 to vector<8x80xf32>
    %369 = arith.select %364, %367, %368 : vector<8x80xi1>, vector<8x80xf32>
    %370 = arith.addf %361, %369 : vector<8x80xf32>
    %371 = vector.extract_strided_slice %239 {offsets = [0, 0], sizes = [8, 4], strides = [1, 1]} : vector<8x16xf32> to vector<8x4xf32>
    %372 = arith.mulf %330, %371 : vector<8x4xf32>
    %373 = vector.extract_strided_slice %250 {offsets = [0, 0], sizes = [8, 4], strides = [1, 1]} : vector<8x16xi32> to vector<8x4xi32>
    %374 = vector.extract_strided_slice %373 {offsets = [0, 0], sizes = [8, 1], strides = [1, 1]} : vector<8x4xi32> to vector<8x1xi32>
    %375 = vector.broadcast %374 : vector<8x1xi32> to vector<8x80xi32>
    %376 = arith.cmpi eq, %319, %375 : vector<8x80xi32>
    %377 = vector.extract_strided_slice %372 {offsets = [0, 0], sizes = [8, 1], strides = [1, 1]} : vector<8x4xf32> to vector<8x1xf32>
    %cst_103 = arith.constant 0.000000e+00 : f32
    %378 = vector.shape_cast %377 : vector<8x1xf32> to vector<8x1xf32>
    %379 = vector.broadcast %378 : vector<8x1xf32> to vector<8x80xf32>
    %380 = vector.broadcast %cst_103 : f32 to vector<8x80xf32>
    %381 = arith.select %376, %379, %380 : vector<8x80xi1>, vector<8x80xf32>
    %382 = arith.addf %370, %381 : vector<8x80xf32>
    %383 = vector.extract_strided_slice %373 {offsets = [0, 1], sizes = [8, 1], strides = [1, 1]} : vector<8x4xi32> to vector<8x1xi32>
    %384 = vector.broadcast %383 : vector<8x1xi32> to vector<8x80xi32>
    %385 = arith.cmpi eq, %319, %384 : vector<8x80xi32>
    %386 = vector.extract_strided_slice %372 {offsets = [0, 1], sizes = [8, 1], strides = [1, 1]} : vector<8x4xf32> to vector<8x1xf32>
    %cst_104 = arith.constant 0.000000e+00 : f32
    %387 = vector.shape_cast %386 : vector<8x1xf32> to vector<8x1xf32>
    %388 = vector.broadcast %387 : vector<8x1xf32> to vector<8x80xf32>
    %389 = vector.broadcast %cst_104 : f32 to vector<8x80xf32>
    %390 = arith.select %385, %388, %389 : vector<8x80xi1>, vector<8x80xf32>
    %391 = arith.addf %382, %390 : vector<8x80xf32>
    %392 = vector.extract_strided_slice %373 {offsets = [0, 2], sizes = [8, 1], strides = [1, 1]} : vector<8x4xi32> to vector<8x1xi32>
    %393 = vector.broadcast %392 : vector<8x1xi32> to vector<8x80xi32>
    %394 = arith.cmpi eq, %319, %393 : vector<8x80xi32>
    %395 = vector.extract_strided_slice %372 {offsets = [0, 2], sizes = [8, 1], strides = [1, 1]} : vector<8x4xf32> to vector<8x1xf32>
    %cst_105 = arith.constant 0.000000e+00 : f32
    %396 = vector.shape_cast %395 : vector<8x1xf32> to vector<8x1xf32>
    %397 = vector.broadcast %396 : vector<8x1xf32> to vector<8x80xf32>
    %398 = vector.broadcast %cst_105 : f32 to vector<8x80xf32>
    %399 = arith.select %394, %397, %398 : vector<8x80xi1>, vector<8x80xf32>
    %400 = arith.addf %391, %399 : vector<8x80xf32>
    %401 = vector.extract_strided_slice %373 {offsets = [0, 3], sizes = [8, 1], strides = [1, 1]} : vector<8x4xi32> to vector<8x1xi32>
    %402 = vector.broadcast %401 : vector<8x1xi32> to vector<8x80xi32>
    %403 = arith.cmpi eq, %319, %402 : vector<8x80xi32>
    %404 = vector.extract_strided_slice %372 {offsets = [0, 3], sizes = [8, 1], strides = [1, 1]} : vector<8x4xf32> to vector<8x1xf32>
    %cst_106 = arith.constant 0.000000e+00 : f32
    %405 = vector.shape_cast %404 : vector<8x1xf32> to vector<8x1xf32>
    %406 = vector.broadcast %405 : vector<8x1xf32> to vector<8x80xf32>
    %407 = vector.broadcast %cst_106 : f32 to vector<8x80xf32>
    %408 = arith.select %403, %406, %407 : vector<8x80xi1>, vector<8x80xf32>
    %409 = arith.addf %400, %408 : vector<8x80xf32>
    %410 = vector.extract_strided_slice %274 {offsets = [0, 0], sizes = [8, 4], strides = [1, 1]} : vector<8x16xf32> to vector<8x4xf32>
    %411 = arith.mulf %330, %410 : vector<8x4xf32>
    %412 = vector.extract_strided_slice %285 {offsets = [0, 0], sizes = [8, 4], strides = [1, 1]} : vector<8x16xi32> to vector<8x4xi32>
    %413 = vector.extract_strided_slice %412 {offsets = [0, 0], sizes = [8, 1], strides = [1, 1]} : vector<8x4xi32> to vector<8x1xi32>
    %414 = vector.broadcast %413 : vector<8x1xi32> to vector<8x80xi32>
    %415 = arith.cmpi eq, %319, %414 : vector<8x80xi32>
    %416 = vector.extract_strided_slice %411 {offsets = [0, 0], sizes = [8, 1], strides = [1, 1]} : vector<8x4xf32> to vector<8x1xf32>
    %cst_107 = arith.constant 0.000000e+00 : f32
    %417 = vector.shape_cast %416 : vector<8x1xf32> to vector<8x1xf32>
    %418 = vector.broadcast %417 : vector<8x1xf32> to vector<8x80xf32>
    %419 = vector.broadcast %cst_107 : f32 to vector<8x80xf32>
    %420 = arith.select %415, %418, %419 : vector<8x80xi1>, vector<8x80xf32>
    %421 = arith.addf %409, %420 : vector<8x80xf32>
    %422 = vector.extract_strided_slice %412 {offsets = [0, 1], sizes = [8, 1], strides = [1, 1]} : vector<8x4xi32> to vector<8x1xi32>
    %423 = vector.broadcast %422 : vector<8x1xi32> to vector<8x80xi32>
    %424 = arith.cmpi eq, %319, %423 : vector<8x80xi32>
    %425 = vector.extract_strided_slice %411 {offsets = [0, 1], sizes = [8, 1], strides = [1, 1]} : vector<8x4xf32> to vector<8x1xf32>
    %cst_108 = arith.constant 0.000000e+00 : f32
    %426 = vector.shape_cast %425 : vector<8x1xf32> to vector<8x1xf32>
    %427 = vector.broadcast %426 : vector<8x1xf32> to vector<8x80xf32>
    %428 = vector.broadcast %cst_108 : f32 to vector<8x80xf32>
    %429 = arith.select %424, %427, %428 : vector<8x80xi1>, vector<8x80xf32>
    %430 = arith.addf %421, %429 : vector<8x80xf32>
    %431 = vector.extract_strided_slice %412 {offsets = [0, 2], sizes = [8, 1], strides = [1, 1]} : vector<8x4xi32> to vector<8x1xi32>
    %432 = vector.broadcast %431 : vector<8x1xi32> to vector<8x80xi32>
    %433 = arith.cmpi eq, %319, %432 : vector<8x80xi32>
    %434 = vector.extract_strided_slice %411 {offsets = [0, 2], sizes = [8, 1], strides = [1, 1]} : vector<8x4xf32> to vector<8x1xf32>
    %cst_109 = arith.constant 0.000000e+00 : f32
    %435 = vector.shape_cast %434 : vector<8x1xf32> to vector<8x1xf32>
    %436 = vector.broadcast %435 : vector<8x1xf32> to vector<8x80xf32>
    %437 = vector.broadcast %cst_109 : f32 to vector<8x80xf32>
    %438 = arith.select %433, %436, %437 : vector<8x80xi1>, vector<8x80xf32>
    %439 = arith.addf %430, %438 : vector<8x80xf32>
    %440 = vector.extract_strided_slice %412 {offsets = [0, 3], sizes = [8, 1], strides = [1, 1]} : vector<8x4xi32> to vector<8x1xi32>
    %441 = vector.broadcast %440 : vector<8x1xi32> to vector<8x80xi32>
    %442 = arith.cmpi eq, %319, %441 : vector<8x80xi32>
    %443 = vector.extract_strided_slice %411 {offsets = [0, 3], sizes = [8, 1], strides = [1, 1]} : vector<8x4xf32> to vector<8x1xf32>
    %cst_110 = arith.constant 0.000000e+00 : f32
    %444 = vector.shape_cast %443 : vector<8x1xf32> to vector<8x1xf32>
    %445 = vector.broadcast %444 : vector<8x1xf32> to vector<8x80xf32>
    %446 = vector.broadcast %cst_110 : f32 to vector<8x80xf32>
    %447 = arith.select %442, %445, %446 : vector<8x80xi1>, vector<8x80xf32>
    %448 = arith.addf %439, %447 : vector<8x80xf32>
    %449 = vector.extract_strided_slice %307 {offsets = [0, 0], sizes = [8, 4], strides = [1, 1]} : vector<8x16xf32> to vector<8x4xf32>
    %450 = arith.mulf %330, %449 : vector<8x4xf32>
    %451 = vector.extract_strided_slice %318 {offsets = [0, 0], sizes = [8, 4], strides = [1, 1]} : vector<8x16xi32> to vector<8x4xi32>
    %452 = vector.extract_strided_slice %451 {offsets = [0, 0], sizes = [8, 1], strides = [1, 1]} : vector<8x4xi32> to vector<8x1xi32>
    %453 = vector.broadcast %452 : vector<8x1xi32> to vector<8x80xi32>
    %454 = arith.cmpi eq, %319, %453 : vector<8x80xi32>
    %455 = vector.extract_strided_slice %450 {offsets = [0, 0], sizes = [8, 1], strides = [1, 1]} : vector<8x4xf32> to vector<8x1xf32>
    %cst_111 = arith.constant 0.000000e+00 : f32
    %456 = vector.shape_cast %455 : vector<8x1xf32> to vector<8x1xf32>
    %457 = vector.broadcast %456 : vector<8x1xf32> to vector<8x80xf32>
    %458 = vector.broadcast %cst_111 : f32 to vector<8x80xf32>
    %459 = arith.select %454, %457, %458 : vector<8x80xi1>, vector<8x80xf32>
    %460 = arith.addf %448, %459 : vector<8x80xf32>
    %461 = vector.extract_strided_slice %451 {offsets = [0, 1], sizes = [8, 1], strides = [1, 1]} : vector<8x4xi32> to vector<8x1xi32>
    %462 = vector.broadcast %461 : vector<8x1xi32> to vector<8x80xi32>
    %463 = arith.cmpi eq, %319, %462 : vector<8x80xi32>
    %464 = vector.extract_strided_slice %450 {offsets = [0, 1], sizes = [8, 1], strides = [1, 1]} : vector<8x4xf32> to vector<8x1xf32>
    %cst_112 = arith.constant 0.000000e+00 : f32
    %465 = vector.shape_cast %464 : vector<8x1xf32> to vector<8x1xf32>
    %466 = vector.broadcast %465 : vector<8x1xf32> to vector<8x80xf32>
    %467 = vector.broadcast %cst_112 : f32 to vector<8x80xf32>
    %468 = arith.select %463, %466, %467 : vector<8x80xi1>, vector<8x80xf32>
    %469 = arith.addf %460, %468 : vector<8x80xf32>
    %470 = vector.extract_strided_slice %451 {offsets = [0, 2], sizes = [8, 1], strides = [1, 1]} : vector<8x4xi32> to vector<8x1xi32>
    %471 = vector.broadcast %470 : vector<8x1xi32> to vector<8x80xi32>
    %472 = arith.cmpi eq, %319, %471 : vector<8x80xi32>
    %473 = vector.extract_strided_slice %450 {offsets = [0, 2], sizes = [8, 1], strides = [1, 1]} : vector<8x4xf32> to vector<8x1xf32>
    %cst_113 = arith.constant 0.000000e+00 : f32
    %474 = vector.shape_cast %473 : vector<8x1xf32> to vector<8x1xf32>
    %475 = vector.broadcast %474 : vector<8x1xf32> to vector<8x80xf32>
    %476 = vector.broadcast %cst_113 : f32 to vector<8x80xf32>
    %477 = arith.select %472, %475, %476 : vector<8x80xi1>, vector<8x80xf32>
    %478 = arith.addf %469, %477 : vector<8x80xf32>
    %479 = vector.extract_strided_slice %451 {offsets = [0, 3], sizes = [8, 1], strides = [1, 1]} : vector<8x4xi32> to vector<8x1xi32>
    %480 = vector.broadcast %479 : vector<8x1xi32> to vector<8x80xi32>
    %481 = arith.cmpi eq, %319, %480 : vector<8x80xi32>
    %482 = vector.extract_strided_slice %450 {offsets = [0, 3], sizes = [8, 1], strides = [1, 1]} : vector<8x4xf32> to vector<8x1xf32>
    %cst_114 = arith.constant 0.000000e+00 : f32
    %483 = vector.shape_cast %482 : vector<8x1xf32> to vector<8x1xf32>
    %484 = vector.broadcast %483 : vector<8x1xf32> to vector<8x80xf32>
    %485 = vector.broadcast %cst_114 : f32 to vector<8x80xf32>
    %486 = arith.select %481, %484, %485 : vector<8x80xi1>, vector<8x80xf32>
    %487 = arith.addf %478, %486 : vector<8x80xf32>
    %488 = vector.extract_strided_slice %147 {offsets = [0, 0], sizes = [80, 8], strides = [1, 1]} : vector<80x32xbf16> to vector<80x8xbf16>
    %489 = arith.truncf %487 : vector<8x80xf32> to vector<8x80xbf16>
    %cst_115 = arith.constant dense<0.000000e+00> : vector<8x8xf32>
    %490 = tpu.matmul %489, %488, %cst_115 {dimension_numbers = #tpu.dot_dimension_numbers<[1], [0], [0], [1], [0, 0, 1, 1], [], []>} : vector<8x80xbf16>, vector<80x8xbf16>, vector<8x8xf32> -> vector<8x8xf32>
    %491 = vector.extract_strided_slice %156 {offsets = [0, 4], sizes = [8, 4], strides = [1, 1]} : vector<8x16xf32> to vector<8x4xf32>
    %cst_116 = arith.constant dense<0xFF800000> : vector<8xf32>
    %492 = vector.multi_reduction <maximumf>, %491, %cst_116 [1] : vector<8x4xf32> to vector<8xf32>
    %493 = vector.shape_cast %492 : vector<8xf32> to vector<8x1xf32>
    %494 = vector.broadcast %493 : vector<8x1xf32> to vector<8x4xf32>
    %495 = arith.subf %491, %494 : vector<8x4xf32>
    %496 = math.exp %495 : vector<8x4xf32>
    %cst_117 = arith.constant dense<0.000000e+00> : vector<8xf32>
    %497 = vector.multi_reduction <add>, %496, %cst_117 [1] : vector<8x4xf32> to vector<8xf32>
    %498 = vector.shape_cast %497 : vector<8xf32> to vector<8x1xf32>
    %499 = tpu.reciprocal %498 {approx = true} : vector<8x1xf32> -> vector<8x1xf32>
    %500 = vector.broadcast %499 : vector<8x1xf32> to vector<8x4xf32>
    %501 = arith.mulf %496, %500 : vector<8x4xf32>
    %cst_118 = arith.constant 0.000000e+00 : f32
    %502 = vector.broadcast %cst_118 : f32 to vector<8x80xf32>
    %503 = vector.extract_strided_slice %204 {offsets = [0, 4], sizes = [8, 4], strides = [1, 1]} : vector<8x16xf32> to vector<8x4xf32>
    %504 = arith.mulf %501, %503 : vector<8x4xf32>
    %505 = vector.extract_strided_slice %215 {offsets = [0, 4], sizes = [8, 4], strides = [1, 1]} : vector<8x16xi32> to vector<8x4xi32>
    %506 = vector.extract_strided_slice %505 {offsets = [0, 0], sizes = [8, 1], strides = [1, 1]} : vector<8x4xi32> to vector<8x1xi32>
    %507 = vector.broadcast %506 : vector<8x1xi32> to vector<8x80xi32>
    %508 = arith.cmpi eq, %319, %507 : vector<8x80xi32>
    %509 = vector.extract_strided_slice %504 {offsets = [0, 0], sizes = [8, 1], strides = [1, 1]} : vector<8x4xf32> to vector<8x1xf32>
    %cst_119 = arith.constant 0.000000e+00 : f32
    %510 = vector.shape_cast %509 : vector<8x1xf32> to vector<8x1xf32>
    %511 = vector.broadcast %510 : vector<8x1xf32> to vector<8x80xf32>
    %512 = vector.broadcast %cst_119 : f32 to vector<8x80xf32>
    %513 = arith.select %508, %511, %512 : vector<8x80xi1>, vector<8x80xf32>
    %514 = arith.addf %502, %513 : vector<8x80xf32>
    %515 = vector.extract_strided_slice %505 {offsets = [0, 1], sizes = [8, 1], strides = [1, 1]} : vector<8x4xi32> to vector<8x1xi32>
    %516 = vector.broadcast %515 : vector<8x1xi32> to vector<8x80xi32>
    %517 = arith.cmpi eq, %319, %516 : vector<8x80xi32>
    %518 = vector.extract_strided_slice %504 {offsets = [0, 1], sizes = [8, 1], strides = [1, 1]} : vector<8x4xf32> to vector<8x1xf32>
    %cst_120 = arith.constant 0.000000e+00 : f32
    %519 = vector.shape_cast %518 : vector<8x1xf32> to vector<8x1xf32>
    %520 = vector.broadcast %519 : vector<8x1xf32> to vector<8x80xf32>
    %521 = vector.broadcast %cst_120 : f32 to vector<8x80xf32>
    %522 = arith.select %517, %520, %521 : vector<8x80xi1>, vector<8x80xf32>
    %523 = arith.addf %514, %522 : vector<8x80xf32>
    %524 = vector.extract_strided_slice %505 {offsets = [0, 2], sizes = [8, 1], strides = [1, 1]} : vector<8x4xi32> to vector<8x1xi32>
    %525 = vector.broadcast %524 : vector<8x1xi32> to vector<8x80xi32>
    %526 = arith.cmpi eq, %319, %525 : vector<8x80xi32>
    %527 = vector.extract_strided_slice %504 {offsets = [0, 2], sizes = [8, 1], strides = [1, 1]} : vector<8x4xf32> to vector<8x1xf32>
    %cst_121 = arith.constant 0.000000e+00 : f32
    %528 = vector.shape_cast %527 : vector<8x1xf32> to vector<8x1xf32>
    %529 = vector.broadcast %528 : vector<8x1xf32> to vector<8x80xf32>
    %530 = vector.broadcast %cst_121 : f32 to vector<8x80xf32>
    %531 = arith.select %526, %529, %530 : vector<8x80xi1>, vector<8x80xf32>
    %532 = arith.addf %523, %531 : vector<8x80xf32>
    %533 = vector.extract_strided_slice %505 {offsets = [0, 3], sizes = [8, 1], strides = [1, 1]} : vector<8x4xi32> to vector<8x1xi32>
    %534 = vector.broadcast %533 : vector<8x1xi32> to vector<8x80xi32>
    %535 = arith.cmpi eq, %319, %534 : vector<8x80xi32>
    %536 = vector.extract_strided_slice %504 {offsets = [0, 3], sizes = [8, 1], strides = [1, 1]} : vector<8x4xf32> to vector<8x1xf32>
    %cst_122 = arith.constant 0.000000e+00 : f32
    %537 = vector.shape_cast %536 : vector<8x1xf32> to vector<8x1xf32>
    %538 = vector.broadcast %537 : vector<8x1xf32> to vector<8x80xf32>
    %539 = vector.broadcast %cst_122 : f32 to vector<8x80xf32>
    %540 = arith.select %535, %538, %539 : vector<8x80xi1>, vector<8x80xf32>
    %541 = arith.addf %532, %540 : vector<8x80xf32>
    %542 = vector.extract_strided_slice %239 {offsets = [0, 4], sizes = [8, 4], strides = [1, 1]} : vector<8x16xf32> to vector<8x4xf32>
    %543 = arith.mulf %501, %542 : vector<8x4xf32>
    %544 = vector.extract_strided_slice %250 {offsets = [0, 4], sizes = [8, 4], strides = [1, 1]} : vector<8x16xi32> to vector<8x4xi32>
    %545 = vector.extract_strided_slice %544 {offsets = [0, 0], sizes = [8, 1], strides = [1, 1]} : vector<8x4xi32> to vector<8x1xi32>
    %546 = vector.broadcast %545 : vector<8x1xi32> to vector<8x80xi32>
    %547 = arith.cmpi eq, %319, %546 : vector<8x80xi32>
    %548 = vector.extract_strided_slice %543 {offsets = [0, 0], sizes = [8, 1], strides = [1, 1]} : vector<8x4xf32> to vector<8x1xf32>
    %cst_123 = arith.constant 0.000000e+00 : f32
    %549 = vector.shape_cast %548 : vector<8x1xf32> to vector<8x1xf32>
    %550 = vector.broadcast %549 : vector<8x1xf32> to vector<8x80xf32>
    %551 = vector.broadcast %cst_123 : f32 to vector<8x80xf32>
    %552 = arith.select %547, %550, %551 : vector<8x80xi1>, vector<8x80xf32>
    %553 = arith.addf %541, %552 : vector<8x80xf32>
    %554 = vector.extract_strided_slice %544 {offsets = [0, 1], sizes = [8, 1], strides = [1, 1]} : vector<8x4xi32> to vector<8x1xi32>
    %555 = vector.broadcast %554 : vector<8x1xi32> to vector<8x80xi32>
    %556 = arith.cmpi eq, %319, %555 : vector<8x80xi32>
    %557 = vector.extract_strided_slice %543 {offsets = [0, 1], sizes = [8, 1], strides = [1, 1]} : vector<8x4xf32> to vector<8x1xf32>
    %cst_124 = arith.constant 0.000000e+00 : f32
    %558 = vector.shape_cast %557 : vector<8x1xf32> to vector<8x1xf32>
    %559 = vector.broadcast %558 : vector<8x1xf32> to vector<8x80xf32>
    %560 = vector.broadcast %cst_124 : f32 to vector<8x80xf32>
    %561 = arith.select %556, %559, %560 : vector<8x80xi1>, vector<8x80xf32>
    %562 = arith.addf %553, %561 : vector<8x80xf32>
    %563 = vector.extract_strided_slice %544 {offsets = [0, 2], sizes = [8, 1], strides = [1, 1]} : vector<8x4xi32> to vector<8x1xi32>
    %564 = vector.broadcast %563 : vector<8x1xi32> to vector<8x80xi32>
    %565 = arith.cmpi eq, %319, %564 : vector<8x80xi32>
    %566 = vector.extract_strided_slice %543 {offsets = [0, 2], sizes = [8, 1], strides = [1, 1]} : vector<8x4xf32> to vector<8x1xf32>
    %cst_125 = arith.constant 0.000000e+00 : f32
    %567 = vector.shape_cast %566 : vector<8x1xf32> to vector<8x1xf32>
    %568 = vector.broadcast %567 : vector<8x1xf32> to vector<8x80xf32>
    %569 = vector.broadcast %cst_125 : f32 to vector<8x80xf32>
    %570 = arith.select %565, %568, %569 : vector<8x80xi1>, vector<8x80xf32>
    %571 = arith.addf %562, %570 : vector<8x80xf32>
    %572 = vector.extract_strided_slice %544 {offsets = [0, 3], sizes = [8, 1], strides = [1, 1]} : vector<8x4xi32> to vector<8x1xi32>
    %573 = vector.broadcast %572 : vector<8x1xi32> to vector<8x80xi32>
    %574 = arith.cmpi eq, %319, %573 : vector<8x80xi32>
    %575 = vector.extract_strided_slice %543 {offsets = [0, 3], sizes = [8, 1], strides = [1, 1]} : vector<8x4xf32> to vector<8x1xf32>
    %cst_126 = arith.constant 0.000000e+00 : f32
    %576 = vector.shape_cast %575 : vector<8x1xf32> to vector<8x1xf32>
    %577 = vector.broadcast %576 : vector<8x1xf32> to vector<8x80xf32>
    %578 = vector.broadcast %cst_126 : f32 to vector<8x80xf32>
    %579 = arith.select %574, %577, %578 : vector<8x80xi1>, vector<8x80xf32>
    %580 = arith.addf %571, %579 : vector<8x80xf32>
    %581 = vector.extract_strided_slice %274 {offsets = [0, 4], sizes = [8, 4], strides = [1, 1]} : vector<8x16xf32> to vector<8x4xf32>
    %582 = arith.mulf %501, %581 : vector<8x4xf32>
    %583 = vector.extract_strided_slice %285 {offsets = [0, 4], sizes = [8, 4], strides = [1, 1]} : vector<8x16xi32> to vector<8x4xi32>
    %584 = vector.extract_strided_slice %583 {offsets = [0, 0], sizes = [8, 1], strides = [1, 1]} : vector<8x4xi32> to vector<8x1xi32>
    %585 = vector.broadcast %584 : vector<8x1xi32> to vector<8x80xi32>
    %586 = arith.cmpi eq, %319, %585 : vector<8x80xi32>
    %587 = vector.extract_strided_slice %582 {offsets = [0, 0], sizes = [8, 1], strides = [1, 1]} : vector<8x4xf32> to vector<8x1xf32>
    %cst_127 = arith.constant 0.000000e+00 : f32
    %588 = vector.shape_cast %587 : vector<8x1xf32> to vector<8x1xf32>
    %589 = vector.broadcast %588 : vector<8x1xf32> to vector<8x80xf32>
    %590 = vector.broadcast %cst_127 : f32 to vector<8x80xf32>
    %591 = arith.select %586, %589, %590 : vector<8x80xi1>, vector<8x80xf32>
    %592 = arith.addf %580, %591 : vector<8x80xf32>
    %593 = vector.extract_strided_slice %583 {offsets = [0, 1], sizes = [8, 1], strides = [1, 1]} : vector<8x4xi32> to vector<8x1xi32>
    %594 = vector.broadcast %593 : vector<8x1xi32> to vector<8x80xi32>
    %595 = arith.cmpi eq, %319, %594 : vector<8x80xi32>
    %596 = vector.extract_strided_slice %582 {offsets = [0, 1], sizes = [8, 1], strides = [1, 1]} : vector<8x4xf32> to vector<8x1xf32>
    %cst_128 = arith.constant 0.000000e+00 : f32
    %597 = vector.shape_cast %596 : vector<8x1xf32> to vector<8x1xf32>
    %598 = vector.broadcast %597 : vector<8x1xf32> to vector<8x80xf32>
    %599 = vector.broadcast %cst_128 : f32 to vector<8x80xf32>
    %600 = arith.select %595, %598, %599 : vector<8x80xi1>, vector<8x80xf32>
    %601 = arith.addf %592, %600 : vector<8x80xf32>
    %602 = vector.extract_strided_slice %583 {offsets = [0, 2], sizes = [8, 1], strides = [1, 1]} : vector<8x4xi32> to vector<8x1xi32>
    %603 = vector.broadcast %602 : vector<8x1xi32> to vector<8x80xi32>
    %604 = arith.cmpi eq, %319, %603 : vector<8x80xi32>
    %605 = vector.extract_strided_slice %582 {offsets = [0, 2], sizes = [8, 1], strides = [1, 1]} : vector<8x4xf32> to vector<8x1xf32>
    %cst_129 = arith.constant 0.000000e+00 : f32
    %606 = vector.shape_cast %605 : vector<8x1xf32> to vector<8x1xf32>
    %607 = vector.broadcast %606 : vector<8x1xf32> to vector<8x80xf32>
    %608 = vector.broadcast %cst_129 : f32 to vector<8x80xf32>
    %609 = arith.select %604, %607, %608 : vector<8x80xi1>, vector<8x80xf32>
    %610 = arith.addf %601, %609 : vector<8x80xf32>
    %611 = vector.extract_strided_slice %583 {offsets = [0, 3], sizes = [8, 1], strides = [1, 1]} : vector<8x4xi32> to vector<8x1xi32>
    %612 = vector.broadcast %611 : vector<8x1xi32> to vector<8x80xi32>
    %613 = arith.cmpi eq, %319, %612 : vector<8x80xi32>
    %614 = vector.extract_strided_slice %582 {offsets = [0, 3], sizes = [8, 1], strides = [1, 1]} : vector<8x4xf32> to vector<8x1xf32>
    %cst_130 = arith.constant 0.000000e+00 : f32
    %615 = vector.shape_cast %614 : vector<8x1xf32> to vector<8x1xf32>
    %616 = vector.broadcast %615 : vector<8x1xf32> to vector<8x80xf32>
    %617 = vector.broadcast %cst_130 : f32 to vector<8x80xf32>
    %618 = arith.select %613, %616, %617 : vector<8x80xi1>, vector<8x80xf32>
    %619 = arith.addf %610, %618 : vector<8x80xf32>
    %620 = vector.extract_strided_slice %307 {offsets = [0, 4], sizes = [8, 4], strides = [1, 1]} : vector<8x16xf32> to vector<8x4xf32>
    %621 = arith.mulf %501, %620 : vector<8x4xf32>
    %622 = vector.extract_strided_slice %318 {offsets = [0, 4], sizes = [8, 4], strides = [1, 1]} : vector<8x16xi32> to vector<8x4xi32>
    %623 = vector.extract_strided_slice %622 {offsets = [0, 0], sizes = [8, 1], strides = [1, 1]} : vector<8x4xi32> to vector<8x1xi32>
    %624 = vector.broadcast %623 : vector<8x1xi32> to vector<8x80xi32>
    %625 = arith.cmpi eq, %319, %624 : vector<8x80xi32>
    %626 = vector.extract_strided_slice %621 {offsets = [0, 0], sizes = [8, 1], strides = [1, 1]} : vector<8x4xf32> to vector<8x1xf32>
    %cst_131 = arith.constant 0.000000e+00 : f32
    %627 = vector.shape_cast %626 : vector<8x1xf32> to vector<8x1xf32>
    %628 = vector.broadcast %627 : vector<8x1xf32> to vector<8x80xf32>
    %629 = vector.broadcast %cst_131 : f32 to vector<8x80xf32>
    %630 = arith.select %625, %628, %629 : vector<8x80xi1>, vector<8x80xf32>
    %631 = arith.addf %619, %630 : vector<8x80xf32>
    %632 = vector.extract_strided_slice %622 {offsets = [0, 1], sizes = [8, 1], strides = [1, 1]} : vector<8x4xi32> to vector<8x1xi32>
    %633 = vector.broadcast %632 : vector<8x1xi32> to vector<8x80xi32>
    %634 = arith.cmpi eq, %319, %633 : vector<8x80xi32>
    %635 = vector.extract_strided_slice %621 {offsets = [0, 1], sizes = [8, 1], strides = [1, 1]} : vector<8x4xf32> to vector<8x1xf32>
    %cst_132 = arith.constant 0.000000e+00 : f32
    %636 = vector.shape_cast %635 : vector<8x1xf32> to vector<8x1xf32>
    %637 = vector.broadcast %636 : vector<8x1xf32> to vector<8x80xf32>
    %638 = vector.broadcast %cst_132 : f32 to vector<8x80xf32>
    %639 = arith.select %634, %637, %638 : vector<8x80xi1>, vector<8x80xf32>
    %640 = arith.addf %631, %639 : vector<8x80xf32>
    %641 = vector.extract_strided_slice %622 {offsets = [0, 2], sizes = [8, 1], strides = [1, 1]} : vector<8x4xi32> to vector<8x1xi32>
    %642 = vector.broadcast %641 : vector<8x1xi32> to vector<8x80xi32>
    %643 = arith.cmpi eq, %319, %642 : vector<8x80xi32>
    %644 = vector.extract_strided_slice %621 {offsets = [0, 2], sizes = [8, 1], strides = [1, 1]} : vector<8x4xf32> to vector<8x1xf32>
    %cst_133 = arith.constant 0.000000e+00 : f32
    %645 = vector.shape_cast %644 : vector<8x1xf32> to vector<8x1xf32>
    %646 = vector.broadcast %645 : vector<8x1xf32> to vector<8x80xf32>
    %647 = vector.broadcast %cst_133 : f32 to vector<8x80xf32>
    %648 = arith.select %643, %646, %647 : vector<8x80xi1>, vector<8x80xf32>
    %649 = arith.addf %640, %648 : vector<8x80xf32>
    %650 = vector.extract_strided_slice %622 {offsets = [0, 3], sizes = [8, 1], strides = [1, 1]} : vector<8x4xi32> to vector<8x1xi32>
    %651 = vector.broadcast %650 : vector<8x1xi32> to vector<8x80xi32>
    %652 = arith.cmpi eq, %319, %651 : vector<8x80xi32>
    %653 = vector.extract_strided_slice %621 {offsets = [0, 3], sizes = [8, 1], strides = [1, 1]} : vector<8x4xf32> to vector<8x1xf32>
    %cst_134 = arith.constant 0.000000e+00 : f32
    %654 = vector.shape_cast %653 : vector<8x1xf32> to vector<8x1xf32>
    %655 = vector.broadcast %654 : vector<8x1xf32> to vector<8x80xf32>
    %656 = vector.broadcast %cst_134 : f32 to vector<8x80xf32>
    %657 = arith.select %652, %655, %656 : vector<8x80xi1>, vector<8x80xf32>
    %658 = arith.addf %649, %657 : vector<8x80xf32>
    %659 = vector.extract_strided_slice %147 {offsets = [0, 8], sizes = [80, 8], strides = [1, 1]} : vector<80x32xbf16> to vector<80x8xbf16>
    %660 = arith.truncf %658 : vector<8x80xf32> to vector<8x80xbf16>
    %cst_135 = arith.constant dense<0.000000e+00> : vector<8x8xf32>
    %661 = tpu.matmul %660, %659, %cst_135 {dimension_numbers = #tpu.dot_dimension_numbers<[1], [0], [0], [1], [0, 0, 1, 1], [], []>} : vector<8x80xbf16>, vector<80x8xbf16>, vector<8x8xf32> -> vector<8x8xf32>
    %662 = vector.extract_strided_slice %156 {offsets = [0, 8], sizes = [8, 4], strides = [1, 1]} : vector<8x16xf32> to vector<8x4xf32>
    %cst_136 = arith.constant dense<0xFF800000> : vector<8xf32>
    %663 = vector.multi_reduction <maximumf>, %662, %cst_136 [1] : vector<8x4xf32> to vector<8xf32>
    %664 = vector.shape_cast %663 : vector<8xf32> to vector<8x1xf32>
    %665 = vector.broadcast %664 : vector<8x1xf32> to vector<8x4xf32>
    %666 = arith.subf %662, %665 : vector<8x4xf32>
    %667 = math.exp %666 : vector<8x4xf32>
    %cst_137 = arith.constant dense<0.000000e+00> : vector<8xf32>
    %668 = vector.multi_reduction <add>, %667, %cst_137 [1] : vector<8x4xf32> to vector<8xf32>
    %669 = vector.shape_cast %668 : vector<8xf32> to vector<8x1xf32>
    %670 = tpu.reciprocal %669 {approx = true} : vector<8x1xf32> -> vector<8x1xf32>
    %671 = vector.broadcast %670 : vector<8x1xf32> to vector<8x4xf32>
    %672 = arith.mulf %667, %671 : vector<8x4xf32>
    %cst_138 = arith.constant 0.000000e+00 : f32
    %673 = vector.broadcast %cst_138 : f32 to vector<8x80xf32>
    %674 = vector.extract_strided_slice %204 {offsets = [0, 8], sizes = [8, 4], strides = [1, 1]} : vector<8x16xf32> to vector<8x4xf32>
    %675 = arith.mulf %672, %674 : vector<8x4xf32>
    %676 = vector.extract_strided_slice %215 {offsets = [0, 8], sizes = [8, 4], strides = [1, 1]} : vector<8x16xi32> to vector<8x4xi32>
    %677 = vector.extract_strided_slice %676 {offsets = [0, 0], sizes = [8, 1], strides = [1, 1]} : vector<8x4xi32> to vector<8x1xi32>
    %678 = vector.broadcast %677 : vector<8x1xi32> to vector<8x80xi32>
    %679 = arith.cmpi eq, %319, %678 : vector<8x80xi32>
    %680 = vector.extract_strided_slice %675 {offsets = [0, 0], sizes = [8, 1], strides = [1, 1]} : vector<8x4xf32> to vector<8x1xf32>
    %cst_139 = arith.constant 0.000000e+00 : f32
    %681 = vector.shape_cast %680 : vector<8x1xf32> to vector<8x1xf32>
    %682 = vector.broadcast %681 : vector<8x1xf32> to vector<8x80xf32>
    %683 = vector.broadcast %cst_139 : f32 to vector<8x80xf32>
    %684 = arith.select %679, %682, %683 : vector<8x80xi1>, vector<8x80xf32>
    %685 = arith.addf %673, %684 : vector<8x80xf32>
    %686 = vector.extract_strided_slice %676 {offsets = [0, 1], sizes = [8, 1], strides = [1, 1]} : vector<8x4xi32> to vector<8x1xi32>
    %687 = vector.broadcast %686 : vector<8x1xi32> to vector<8x80xi32>
    %688 = arith.cmpi eq, %319, %687 : vector<8x80xi32>
    %689 = vector.extract_strided_slice %675 {offsets = [0, 1], sizes = [8, 1], strides = [1, 1]} : vector<8x4xf32> to vector<8x1xf32>
    %cst_140 = arith.constant 0.000000e+00 : f32
    %690 = vector.shape_cast %689 : vector<8x1xf32> to vector<8x1xf32>
    %691 = vector.broadcast %690 : vector<8x1xf32> to vector<8x80xf32>
    %692 = vector.broadcast %cst_140 : f32 to vector<8x80xf32>
    %693 = arith.select %688, %691, %692 : vector<8x80xi1>, vector<8x80xf32>
    %694 = arith.addf %685, %693 : vector<8x80xf32>
    %695 = vector.extract_strided_slice %676 {offsets = [0, 2], sizes = [8, 1], strides = [1, 1]} : vector<8x4xi32> to vector<8x1xi32>
    %696 = vector.broadcast %695 : vector<8x1xi32> to vector<8x80xi32>
    %697 = arith.cmpi eq, %319, %696 : vector<8x80xi32>
    %698 = vector.extract_strided_slice %675 {offsets = [0, 2], sizes = [8, 1], strides = [1, 1]} : vector<8x4xf32> to vector<8x1xf32>
    %cst_141 = arith.constant 0.000000e+00 : f32
    %699 = vector.shape_cast %698 : vector<8x1xf32> to vector<8x1xf32>
    %700 = vector.broadcast %699 : vector<8x1xf32> to vector<8x80xf32>
    %701 = vector.broadcast %cst_141 : f32 to vector<8x80xf32>
    %702 = arith.select %697, %700, %701 : vector<8x80xi1>, vector<8x80xf32>
    %703 = arith.addf %694, %702 : vector<8x80xf32>
    %704 = vector.extract_strided_slice %676 {offsets = [0, 3], sizes = [8, 1], strides = [1, 1]} : vector<8x4xi32> to vector<8x1xi32>
    %705 = vector.broadcast %704 : vector<8x1xi32> to vector<8x80xi32>
    %706 = arith.cmpi eq, %319, %705 : vector<8x80xi32>
    %707 = vector.extract_strided_slice %675 {offsets = [0, 3], sizes = [8, 1], strides = [1, 1]} : vector<8x4xf32> to vector<8x1xf32>
    %cst_142 = arith.constant 0.000000e+00 : f32
    %708 = vector.shape_cast %707 : vector<8x1xf32> to vector<8x1xf32>
    %709 = vector.broadcast %708 : vector<8x1xf32> to vector<8x80xf32>
    %710 = vector.broadcast %cst_142 : f32 to vector<8x80xf32>
    %711 = arith.select %706, %709, %710 : vector<8x80xi1>, vector<8x80xf32>
    %712 = arith.addf %703, %711 : vector<8x80xf32>
    %713 = vector.extract_strided_slice %239 {offsets = [0, 8], sizes = [8, 4], strides = [1, 1]} : vector<8x16xf32> to vector<8x4xf32>
    %714 = arith.mulf %672, %713 : vector<8x4xf32>
    %715 = vector.extract_strided_slice %250 {offsets = [0, 8], sizes = [8, 4], strides = [1, 1]} : vector<8x16xi32> to vector<8x4xi32>
    %716 = vector.extract_strided_slice %715 {offsets = [0, 0], sizes = [8, 1], strides = [1, 1]} : vector<8x4xi32> to vector<8x1xi32>
    %717 = vector.broadcast %716 : vector<8x1xi32> to vector<8x80xi32>
    %718 = arith.cmpi eq, %319, %717 : vector<8x80xi32>
    %719 = vector.extract_strided_slice %714 {offsets = [0, 0], sizes = [8, 1], strides = [1, 1]} : vector<8x4xf32> to vector<8x1xf32>
    %cst_143 = arith.constant 0.000000e+00 : f32
    %720 = vector.shape_cast %719 : vector<8x1xf32> to vector<8x1xf32>
    %721 = vector.broadcast %720 : vector<8x1xf32> to vector<8x80xf32>
    %722 = vector.broadcast %cst_143 : f32 to vector<8x80xf32>
    %723 = arith.select %718, %721, %722 : vector<8x80xi1>, vector<8x80xf32>
    %724 = arith.addf %712, %723 : vector<8x80xf32>
    %725 = vector.extract_strided_slice %715 {offsets = [0, 1], sizes = [8, 1], strides = [1, 1]} : vector<8x4xi32> to vector<8x1xi32>
    %726 = vector.broadcast %725 : vector<8x1xi32> to vector<8x80xi32>
    %727 = arith.cmpi eq, %319, %726 : vector<8x80xi32>
    %728 = vector.extract_strided_slice %714 {offsets = [0, 1], sizes = [8, 1], strides = [1, 1]} : vector<8x4xf32> to vector<8x1xf32>
    %cst_144 = arith.constant 0.000000e+00 : f32
    %729 = vector.shape_cast %728 : vector<8x1xf32> to vector<8x1xf32>
    %730 = vector.broadcast %729 : vector<8x1xf32> to vector<8x80xf32>
    %731 = vector.broadcast %cst_144 : f32 to vector<8x80xf32>
    %732 = arith.select %727, %730, %731 : vector<8x80xi1>, vector<8x80xf32>
    %733 = arith.addf %724, %732 : vector<8x80xf32>
    %734 = vector.extract_strided_slice %715 {offsets = [0, 2], sizes = [8, 1], strides = [1, 1]} : vector<8x4xi32> to vector<8x1xi32>
    %735 = vector.broadcast %734 : vector<8x1xi32> to vector<8x80xi32>
    %736 = arith.cmpi eq, %319, %735 : vector<8x80xi32>
    %737 = vector.extract_strided_slice %714 {offsets = [0, 2], sizes = [8, 1], strides = [1, 1]} : vector<8x4xf32> to vector<8x1xf32>
    %cst_145 = arith.constant 0.000000e+00 : f32
    %738 = vector.shape_cast %737 : vector<8x1xf32> to vector<8x1xf32>
    %739 = vector.broadcast %738 : vector<8x1xf32> to vector<8x80xf32>
    %740 = vector.broadcast %cst_145 : f32 to vector<8x80xf32>
    %741 = arith.select %736, %739, %740 : vector<8x80xi1>, vector<8x80xf32>
    %742 = arith.addf %733, %741 : vector<8x80xf32>
    %743 = vector.extract_strided_slice %715 {offsets = [0, 3], sizes = [8, 1], strides = [1, 1]} : vector<8x4xi32> to vector<8x1xi32>
    %744 = vector.broadcast %743 : vector<8x1xi32> to vector<8x80xi32>
    %745 = arith.cmpi eq, %319, %744 : vector<8x80xi32>
    %746 = vector.extract_strided_slice %714 {offsets = [0, 3], sizes = [8, 1], strides = [1, 1]} : vector<8x4xf32> to vector<8x1xf32>
    %cst_146 = arith.constant 0.000000e+00 : f32
    %747 = vector.shape_cast %746 : vector<8x1xf32> to vector<8x1xf32>
    %748 = vector.broadcast %747 : vector<8x1xf32> to vector<8x80xf32>
    %749 = vector.broadcast %cst_146 : f32 to vector<8x80xf32>
    %750 = arith.select %745, %748, %749 : vector<8x80xi1>, vector<8x80xf32>
    %751 = arith.addf %742, %750 : vector<8x80xf32>
    %752 = vector.extract_strided_slice %274 {offsets = [0, 8], sizes = [8, 4], strides = [1, 1]} : vector<8x16xf32> to vector<8x4xf32>
    %753 = arith.mulf %672, %752 : vector<8x4xf32>
    %754 = vector.extract_strided_slice %285 {offsets = [0, 8], sizes = [8, 4], strides = [1, 1]} : vector<8x16xi32> to vector<8x4xi32>
    %755 = vector.extract_strided_slice %754 {offsets = [0, 0], sizes = [8, 1], strides = [1, 1]} : vector<8x4xi32> to vector<8x1xi32>
    %756 = vector.broadcast %755 : vector<8x1xi32> to vector<8x80xi32>
    %757 = arith.cmpi eq, %319, %756 : vector<8x80xi32>
    %758 = vector.extract_strided_slice %753 {offsets = [0, 0], sizes = [8, 1], strides = [1, 1]} : vector<8x4xf32> to vector<8x1xf32>
    %cst_147 = arith.constant 0.000000e+00 : f32
    %759 = vector.shape_cast %758 : vector<8x1xf32> to vector<8x1xf32>
    %760 = vector.broadcast %759 : vector<8x1xf32> to vector<8x80xf32>
    %761 = vector.broadcast %cst_147 : f32 to vector<8x80xf32>
    %762 = arith.select %757, %760, %761 : vector<8x80xi1>, vector<8x80xf32>
    %763 = arith.addf %751, %762 : vector<8x80xf32>
    %764 = vector.extract_strided_slice %754 {offsets = [0, 1], sizes = [8, 1], strides = [1, 1]} : vector<8x4xi32> to vector<8x1xi32>
    %765 = vector.broadcast %764 : vector<8x1xi32> to vector<8x80xi32>
    %766 = arith.cmpi eq, %319, %765 : vector<8x80xi32>
    %767 = vector.extract_strided_slice %753 {offsets = [0, 1], sizes = [8, 1], strides = [1, 1]} : vector<8x4xf32> to vector<8x1xf32>
    %cst_148 = arith.constant 0.000000e+00 : f32
    %768 = vector.shape_cast %767 : vector<8x1xf32> to vector<8x1xf32>
    %769 = vector.broadcast %768 : vector<8x1xf32> to vector<8x80xf32>
    %770 = vector.broadcast %cst_148 : f32 to vector<8x80xf32>
    %771 = arith.select %766, %769, %770 : vector<8x80xi1>, vector<8x80xf32>
    %772 = arith.addf %763, %771 : vector<8x80xf32>
    %773 = vector.extract_strided_slice %754 {offsets = [0, 2], sizes = [8, 1], strides = [1, 1]} : vector<8x4xi32> to vector<8x1xi32>
    %774 = vector.broadcast %773 : vector<8x1xi32> to vector<8x80xi32>
    %775 = arith.cmpi eq, %319, %774 : vector<8x80xi32>
    %776 = vector.extract_strided_slice %753 {offsets = [0, 2], sizes = [8, 1], strides = [1, 1]} : vector<8x4xf32> to vector<8x1xf32>
    %cst_149 = arith.constant 0.000000e+00 : f32
    %777 = vector.shape_cast %776 : vector<8x1xf32> to vector<8x1xf32>
    %778 = vector.broadcast %777 : vector<8x1xf32> to vector<8x80xf32>
    %779 = vector.broadcast %cst_149 : f32 to vector<8x80xf32>
    %780 = arith.select %775, %778, %779 : vector<8x80xi1>, vector<8x80xf32>
    %781 = arith.addf %772, %780 : vector<8x80xf32>
    %782 = vector.extract_strided_slice %754 {offsets = [0, 3], sizes = [8, 1], strides = [1, 1]} : vector<8x4xi32> to vector<8x1xi32>
    %783 = vector.broadcast %782 : vector<8x1xi32> to vector<8x80xi32>
    %784 = arith.cmpi eq, %319, %783 : vector<8x80xi32>
    %785 = vector.extract_strided_slice %753 {offsets = [0, 3], sizes = [8, 1], strides = [1, 1]} : vector<8x4xf32> to vector<8x1xf32>
    %cst_150 = arith.constant 0.000000e+00 : f32
    %786 = vector.shape_cast %785 : vector<8x1xf32> to vector<8x1xf32>
    %787 = vector.broadcast %786 : vector<8x1xf32> to vector<8x80xf32>
    %788 = vector.broadcast %cst_150 : f32 to vector<8x80xf32>
    %789 = arith.select %784, %787, %788 : vector<8x80xi1>, vector<8x80xf32>
    %790 = arith.addf %781, %789 : vector<8x80xf32>
    %791 = vector.extract_strided_slice %307 {offsets = [0, 8], sizes = [8, 4], strides = [1, 1]} : vector<8x16xf32> to vector<8x4xf32>
    %792 = arith.mulf %672, %791 : vector<8x4xf32>
    %793 = vector.extract_strided_slice %318 {offsets = [0, 8], sizes = [8, 4], strides = [1, 1]} : vector<8x16xi32> to vector<8x4xi32>
    %794 = vector.extract_strided_slice %793 {offsets = [0, 0], sizes = [8, 1], strides = [1, 1]} : vector<8x4xi32> to vector<8x1xi32>
    %795 = vector.broadcast %794 : vector<8x1xi32> to vector<8x80xi32>
    %796 = arith.cmpi eq, %319, %795 : vector<8x80xi32>
    %797 = vector.extract_strided_slice %792 {offsets = [0, 0], sizes = [8, 1], strides = [1, 1]} : vector<8x4xf32> to vector<8x1xf32>
    %cst_151 = arith.constant 0.000000e+00 : f32
    %798 = vector.shape_cast %797 : vector<8x1xf32> to vector<8x1xf32>
    %799 = vector.broadcast %798 : vector<8x1xf32> to vector<8x80xf32>
    %800 = vector.broadcast %cst_151 : f32 to vector<8x80xf32>
    %801 = arith.select %796, %799, %800 : vector<8x80xi1>, vector<8x80xf32>
    %802 = arith.addf %790, %801 : vector<8x80xf32>
    %803 = vector.extract_strided_slice %793 {offsets = [0, 1], sizes = [8, 1], strides = [1, 1]} : vector<8x4xi32> to vector<8x1xi32>
    %804 = vector.broadcast %803 : vector<8x1xi32> to vector<8x80xi32>
    %805 = arith.cmpi eq, %319, %804 : vector<8x80xi32>
    %806 = vector.extract_strided_slice %792 {offsets = [0, 1], sizes = [8, 1], strides = [1, 1]} : vector<8x4xf32> to vector<8x1xf32>
    %cst_152 = arith.constant 0.000000e+00 : f32
    %807 = vector.shape_cast %806 : vector<8x1xf32> to vector<8x1xf32>
    %808 = vector.broadcast %807 : vector<8x1xf32> to vector<8x80xf32>
    %809 = vector.broadcast %cst_152 : f32 to vector<8x80xf32>
    %810 = arith.select %805, %808, %809 : vector<8x80xi1>, vector<8x80xf32>
    %811 = arith.addf %802, %810 : vector<8x80xf32>
    %812 = vector.extract_strided_slice %793 {offsets = [0, 2], sizes = [8, 1], strides = [1, 1]} : vector<8x4xi32> to vector<8x1xi32>
    %813 = vector.broadcast %812 : vector<8x1xi32> to vector<8x80xi32>
    %814 = arith.cmpi eq, %319, %813 : vector<8x80xi32>
    %815 = vector.extract_strided_slice %792 {offsets = [0, 2], sizes = [8, 1], strides = [1, 1]} : vector<8x4xf32> to vector<8x1xf32>
    %cst_153 = arith.constant 0.000000e+00 : f32
    %816 = vector.shape_cast %815 : vector<8x1xf32> to vector<8x1xf32>
    %817 = vector.broadcast %816 : vector<8x1xf32> to vector<8x80xf32>
    %818 = vector.broadcast %cst_153 : f32 to vector<8x80xf32>
    %819 = arith.select %814, %817, %818 : vector<8x80xi1>, vector<8x80xf32>
    %820 = arith.addf %811, %819 : vector<8x80xf32>
    %821 = vector.extract_strided_slice %793 {offsets = [0, 3], sizes = [8, 1], strides = [1, 1]} : vector<8x4xi32> to vector<8x1xi32>
    %822 = vector.broadcast %821 : vector<8x1xi32> to vector<8x80xi32>
    %823 = arith.cmpi eq, %319, %822 : vector<8x80xi32>
    %824 = vector.extract_strided_slice %792 {offsets = [0, 3], sizes = [8, 1], strides = [1, 1]} : vector<8x4xf32> to vector<8x1xf32>
    %cst_154 = arith.constant 0.000000e+00 : f32
    %825 = vector.shape_cast %824 : vector<8x1xf32> to vector<8x1xf32>
    %826 = vector.broadcast %825 : vector<8x1xf32> to vector<8x80xf32>
    %827 = vector.broadcast %cst_154 : f32 to vector<8x80xf32>
    %828 = arith.select %823, %826, %827 : vector<8x80xi1>, vector<8x80xf32>
    %829 = arith.addf %820, %828 : vector<8x80xf32>
    %830 = vector.extract_strided_slice %147 {offsets = [0, 16], sizes = [80, 8], strides = [1, 1]} : vector<80x32xbf16> to vector<80x8xbf16>
    %831 = arith.truncf %829 : vector<8x80xf32> to vector<8x80xbf16>
    %cst_155 = arith.constant dense<0.000000e+00> : vector<8x8xf32>
    %832 = tpu.matmul %831, %830, %cst_155 {dimension_numbers = #tpu.dot_dimension_numbers<[1], [0], [0], [1], [0, 0, 1, 1], [], []>} : vector<8x80xbf16>, vector<80x8xbf16>, vector<8x8xf32> -> vector<8x8xf32>
    %833 = vector.extract_strided_slice %156 {offsets = [0, 12], sizes = [8, 4], strides = [1, 1]} : vector<8x16xf32> to vector<8x4xf32>
    %cst_156 = arith.constant dense<0xFF800000> : vector<8xf32>
    %834 = vector.multi_reduction <maximumf>, %833, %cst_156 [1] : vector<8x4xf32> to vector<8xf32>
    %835 = vector.shape_cast %834 : vector<8xf32> to vector<8x1xf32>
    %836 = vector.broadcast %835 : vector<8x1xf32> to vector<8x4xf32>
    %837 = arith.subf %833, %836 : vector<8x4xf32>
    %838 = math.exp %837 : vector<8x4xf32>
    %cst_157 = arith.constant dense<0.000000e+00> : vector<8xf32>
    %839 = vector.multi_reduction <add>, %838, %cst_157 [1] : vector<8x4xf32> to vector<8xf32>
    %840 = vector.shape_cast %839 : vector<8xf32> to vector<8x1xf32>
    %841 = tpu.reciprocal %840 {approx = true} : vector<8x1xf32> -> vector<8x1xf32>
    %842 = vector.broadcast %841 : vector<8x1xf32> to vector<8x4xf32>
    %843 = arith.mulf %838, %842 : vector<8x4xf32>
    %cst_158 = arith.constant 0.000000e+00 : f32
    %844 = vector.broadcast %cst_158 : f32 to vector<8x80xf32>
    %845 = vector.extract_strided_slice %204 {offsets = [0, 12], sizes = [8, 4], strides = [1, 1]} : vector<8x16xf32> to vector<8x4xf32>
    %846 = arith.mulf %843, %845 : vector<8x4xf32>
    %847 = vector.extract_strided_slice %215 {offsets = [0, 12], sizes = [8, 4], strides = [1, 1]} : vector<8x16xi32> to vector<8x4xi32>
    %848 = vector.extract_strided_slice %847 {offsets = [0, 0], sizes = [8, 1], strides = [1, 1]} : vector<8x4xi32> to vector<8x1xi32>
    %849 = vector.broadcast %848 : vector<8x1xi32> to vector<8x80xi32>
    %850 = arith.cmpi eq, %319, %849 : vector<8x80xi32>
    %851 = vector.extract_strided_slice %846 {offsets = [0, 0], sizes = [8, 1], strides = [1, 1]} : vector<8x4xf32> to vector<8x1xf32>
    %cst_159 = arith.constant 0.000000e+00 : f32
    %852 = vector.shape_cast %851 : vector<8x1xf32> to vector<8x1xf32>
    %853 = vector.broadcast %852 : vector<8x1xf32> to vector<8x80xf32>
    %854 = vector.broadcast %cst_159 : f32 to vector<8x80xf32>
    %855 = arith.select %850, %853, %854 : vector<8x80xi1>, vector<8x80xf32>
    %856 = arith.addf %844, %855 : vector<8x80xf32>
    %857 = vector.extract_strided_slice %847 {offsets = [0, 1], sizes = [8, 1], strides = [1, 1]} : vector<8x4xi32> to vector<8x1xi32>
    %858 = vector.broadcast %857 : vector<8x1xi32> to vector<8x80xi32>
    %859 = arith.cmpi eq, %319, %858 : vector<8x80xi32>
    %860 = vector.extract_strided_slice %846 {offsets = [0, 1], sizes = [8, 1], strides = [1, 1]} : vector<8x4xf32> to vector<8x1xf32>
    %cst_160 = arith.constant 0.000000e+00 : f32
    %861 = vector.shape_cast %860 : vector<8x1xf32> to vector<8x1xf32>
    %862 = vector.broadcast %861 : vector<8x1xf32> to vector<8x80xf32>
    %863 = vector.broadcast %cst_160 : f32 to vector<8x80xf32>
    %864 = arith.select %859, %862, %863 : vector<8x80xi1>, vector<8x80xf32>
    %865 = arith.addf %856, %864 : vector<8x80xf32>
    %866 = vector.extract_strided_slice %847 {offsets = [0, 2], sizes = [8, 1], strides = [1, 1]} : vector<8x4xi32> to vector<8x1xi32>
    %867 = vector.broadcast %866 : vector<8x1xi32> to vector<8x80xi32>
    %868 = arith.cmpi eq, %319, %867 : vector<8x80xi32>
    %869 = vector.extract_strided_slice %846 {offsets = [0, 2], sizes = [8, 1], strides = [1, 1]} : vector<8x4xf32> to vector<8x1xf32>
    %cst_161 = arith.constant 0.000000e+00 : f32
    %870 = vector.shape_cast %869 : vector<8x1xf32> to vector<8x1xf32>
    %871 = vector.broadcast %870 : vector<8x1xf32> to vector<8x80xf32>
    %872 = vector.broadcast %cst_161 : f32 to vector<8x80xf32>
    %873 = arith.select %868, %871, %872 : vector<8x80xi1>, vector<8x80xf32>
    %874 = arith.addf %865, %873 : vector<8x80xf32>
    %875 = vector.extract_strided_slice %847 {offsets = [0, 3], sizes = [8, 1], strides = [1, 1]} : vector<8x4xi32> to vector<8x1xi32>
    %876 = vector.broadcast %875 : vector<8x1xi32> to vector<8x80xi32>
    %877 = arith.cmpi eq, %319, %876 : vector<8x80xi32>
    %878 = vector.extract_strided_slice %846 {offsets = [0, 3], sizes = [8, 1], strides = [1, 1]} : vector<8x4xf32> to vector<8x1xf32>
    %cst_162 = arith.constant 0.000000e+00 : f32
    %879 = vector.shape_cast %878 : vector<8x1xf32> to vector<8x1xf32>
    %880 = vector.broadcast %879 : vector<8x1xf32> to vector<8x80xf32>
    %881 = vector.broadcast %cst_162 : f32 to vector<8x80xf32>
    %882 = arith.select %877, %880, %881 : vector<8x80xi1>, vector<8x80xf32>
    %883 = arith.addf %874, %882 : vector<8x80xf32>
    %884 = vector.extract_strided_slice %239 {offsets = [0, 12], sizes = [8, 4], strides = [1, 1]} : vector<8x16xf32> to vector<8x4xf32>
    %885 = arith.mulf %843, %884 : vector<8x4xf32>
    %886 = vector.extract_strided_slice %250 {offsets = [0, 12], sizes = [8, 4], strides = [1, 1]} : vector<8x16xi32> to vector<8x4xi32>
    %887 = vector.extract_strided_slice %886 {offsets = [0, 0], sizes = [8, 1], strides = [1, 1]} : vector<8x4xi32> to vector<8x1xi32>
    %888 = vector.broadcast %887 : vector<8x1xi32> to vector<8x80xi32>
    %889 = arith.cmpi eq, %319, %888 : vector<8x80xi32>
    %890 = vector.extract_strided_slice %885 {offsets = [0, 0], sizes = [8, 1], strides = [1, 1]} : vector<8x4xf32> to vector<8x1xf32>
    %cst_163 = arith.constant 0.000000e+00 : f32
    %891 = vector.shape_cast %890 : vector<8x1xf32> to vector<8x1xf32>
    %892 = vector.broadcast %891 : vector<8x1xf32> to vector<8x80xf32>
    %893 = vector.broadcast %cst_163 : f32 to vector<8x80xf32>
    %894 = arith.select %889, %892, %893 : vector<8x80xi1>, vector<8x80xf32>
    %895 = arith.addf %883, %894 : vector<8x80xf32>
    %896 = vector.extract_strided_slice %886 {offsets = [0, 1], sizes = [8, 1], strides = [1, 1]} : vector<8x4xi32> to vector<8x1xi32>
    %897 = vector.broadcast %896 : vector<8x1xi32> to vector<8x80xi32>
    %898 = arith.cmpi eq, %319, %897 : vector<8x80xi32>
    %899 = vector.extract_strided_slice %885 {offsets = [0, 1], sizes = [8, 1], strides = [1, 1]} : vector<8x4xf32> to vector<8x1xf32>
    %cst_164 = arith.constant 0.000000e+00 : f32
    %900 = vector.shape_cast %899 : vector<8x1xf32> to vector<8x1xf32>
    %901 = vector.broadcast %900 : vector<8x1xf32> to vector<8x80xf32>
    %902 = vector.broadcast %cst_164 : f32 to vector<8x80xf32>
    %903 = arith.select %898, %901, %902 : vector<8x80xi1>, vector<8x80xf32>
    %904 = arith.addf %895, %903 : vector<8x80xf32>
    %905 = vector.extract_strided_slice %886 {offsets = [0, 2], sizes = [8, 1], strides = [1, 1]} : vector<8x4xi32> to vector<8x1xi32>
    %906 = vector.broadcast %905 : vector<8x1xi32> to vector<8x80xi32>
    %907 = arith.cmpi eq, %319, %906 : vector<8x80xi32>
    %908 = vector.extract_strided_slice %885 {offsets = [0, 2], sizes = [8, 1], strides = [1, 1]} : vector<8x4xf32> to vector<8x1xf32>
    %cst_165 = arith.constant 0.000000e+00 : f32
    %909 = vector.shape_cast %908 : vector<8x1xf32> to vector<8x1xf32>
    %910 = vector.broadcast %909 : vector<8x1xf32> to vector<8x80xf32>
    %911 = vector.broadcast %cst_165 : f32 to vector<8x80xf32>
    %912 = arith.select %907, %910, %911 : vector<8x80xi1>, vector<8x80xf32>
    %913 = arith.addf %904, %912 : vector<8x80xf32>
    %914 = vector.extract_strided_slice %886 {offsets = [0, 3], sizes = [8, 1], strides = [1, 1]} : vector<8x4xi32> to vector<8x1xi32>
    %915 = vector.broadcast %914 : vector<8x1xi32> to vector<8x80xi32>
    %916 = arith.cmpi eq, %319, %915 : vector<8x80xi32>
    %917 = vector.extract_strided_slice %885 {offsets = [0, 3], sizes = [8, 1], strides = [1, 1]} : vector<8x4xf32> to vector<8x1xf32>
    %cst_166 = arith.constant 0.000000e+00 : f32
    %918 = vector.shape_cast %917 : vector<8x1xf32> to vector<8x1xf32>
    %919 = vector.broadcast %918 : vector<8x1xf32> to vector<8x80xf32>
    %920 = vector.broadcast %cst_166 : f32 to vector<8x80xf32>
    %921 = arith.select %916, %919, %920 : vector<8x80xi1>, vector<8x80xf32>
    %922 = arith.addf %913, %921 : vector<8x80xf32>
    %923 = vector.extract_strided_slice %274 {offsets = [0, 12], sizes = [8, 4], strides = [1, 1]} : vector<8x16xf32> to vector<8x4xf32>
    %924 = arith.mulf %843, %923 : vector<8x4xf32>
    %925 = vector.extract_strided_slice %285 {offsets = [0, 12], sizes = [8, 4], strides = [1, 1]} : vector<8x16xi32> to vector<8x4xi32>
    %926 = vector.extract_strided_slice %925 {offsets = [0, 0], sizes = [8, 1], strides = [1, 1]} : vector<8x4xi32> to vector<8x1xi32>
    %927 = vector.broadcast %926 : vector<8x1xi32> to vector<8x80xi32>
    %928 = arith.cmpi eq, %319, %927 : vector<8x80xi32>
    %929 = vector.extract_strided_slice %924 {offsets = [0, 0], sizes = [8, 1], strides = [1, 1]} : vector<8x4xf32> to vector<8x1xf32>
    %cst_167 = arith.constant 0.000000e+00 : f32
    %930 = vector.shape_cast %929 : vector<8x1xf32> to vector<8x1xf32>
    %931 = vector.broadcast %930 : vector<8x1xf32> to vector<8x80xf32>
    %932 = vector.broadcast %cst_167 : f32 to vector<8x80xf32>
    %933 = arith.select %928, %931, %932 : vector<8x80xi1>, vector<8x80xf32>
    %934 = arith.addf %922, %933 : vector<8x80xf32>
    %935 = vector.extract_strided_slice %925 {offsets = [0, 1], sizes = [8, 1], strides = [1, 1]} : vector<8x4xi32> to vector<8x1xi32>
    %936 = vector.broadcast %935 : vector<8x1xi32> to vector<8x80xi32>
    %937 = arith.cmpi eq, %319, %936 : vector<8x80xi32>
    %938 = vector.extract_strided_slice %924 {offsets = [0, 1], sizes = [8, 1], strides = [1, 1]} : vector<8x4xf32> to vector<8x1xf32>
    %cst_168 = arith.constant 0.000000e+00 : f32
    %939 = vector.shape_cast %938 : vector<8x1xf32> to vector<8x1xf32>
    %940 = vector.broadcast %939 : vector<8x1xf32> to vector<8x80xf32>
    %941 = vector.broadcast %cst_168 : f32 to vector<8x80xf32>
    %942 = arith.select %937, %940, %941 : vector<8x80xi1>, vector<8x80xf32>
    %943 = arith.addf %934, %942 : vector<8x80xf32>
    %944 = vector.extract_strided_slice %925 {offsets = [0, 2], sizes = [8, 1], strides = [1, 1]} : vector<8x4xi32> to vector<8x1xi32>
    %945 = vector.broadcast %944 : vector<8x1xi32> to vector<8x80xi32>
    %946 = arith.cmpi eq, %319, %945 : vector<8x80xi32>
    %947 = vector.extract_strided_slice %924 {offsets = [0, 2], sizes = [8, 1], strides = [1, 1]} : vector<8x4xf32> to vector<8x1xf32>
    %cst_169 = arith.constant 0.000000e+00 : f32
    %948 = vector.shape_cast %947 : vector<8x1xf32> to vector<8x1xf32>
    %949 = vector.broadcast %948 : vector<8x1xf32> to vector<8x80xf32>
    %950 = vector.broadcast %cst_169 : f32 to vector<8x80xf32>
    %951 = arith.select %946, %949, %950 : vector<8x80xi1>, vector<8x80xf32>
    %952 = arith.addf %943, %951 : vector<8x80xf32>
    %953 = vector.extract_strided_slice %925 {offsets = [0, 3], sizes = [8, 1], strides = [1, 1]} : vector<8x4xi32> to vector<8x1xi32>
    %954 = vector.broadcast %953 : vector<8x1xi32> to vector<8x80xi32>
    %955 = arith.cmpi eq, %319, %954 : vector<8x80xi32>
    %956 = vector.extract_strided_slice %924 {offsets = [0, 3], sizes = [8, 1], strides = [1, 1]} : vector<8x4xf32> to vector<8x1xf32>
    %cst_170 = arith.constant 0.000000e+00 : f32
    %957 = vector.shape_cast %956 : vector<8x1xf32> to vector<8x1xf32>
    %958 = vector.broadcast %957 : vector<8x1xf32> to vector<8x80xf32>
    %959 = vector.broadcast %cst_170 : f32 to vector<8x80xf32>
    %960 = arith.select %955, %958, %959 : vector<8x80xi1>, vector<8x80xf32>
    %961 = arith.addf %952, %960 : vector<8x80xf32>
    %962 = vector.extract_strided_slice %307 {offsets = [0, 12], sizes = [8, 4], strides = [1, 1]} : vector<8x16xf32> to vector<8x4xf32>
    %963 = arith.mulf %843, %962 : vector<8x4xf32>
    %964 = vector.extract_strided_slice %318 {offsets = [0, 12], sizes = [8, 4], strides = [1, 1]} : vector<8x16xi32> to vector<8x4xi32>
    %965 = vector.extract_strided_slice %964 {offsets = [0, 0], sizes = [8, 1], strides = [1, 1]} : vector<8x4xi32> to vector<8x1xi32>
    %966 = vector.broadcast %965 : vector<8x1xi32> to vector<8x80xi32>
    %967 = arith.cmpi eq, %319, %966 : vector<8x80xi32>
    %968 = vector.extract_strided_slice %963 {offsets = [0, 0], sizes = [8, 1], strides = [1, 1]} : vector<8x4xf32> to vector<8x1xf32>
    %cst_171 = arith.constant 0.000000e+00 : f32
    %969 = vector.shape_cast %968 : vector<8x1xf32> to vector<8x1xf32>
    %970 = vector.broadcast %969 : vector<8x1xf32> to vector<8x80xf32>
    %971 = vector.broadcast %cst_171 : f32 to vector<8x80xf32>
    %972 = arith.select %967, %970, %971 : vector<8x80xi1>, vector<8x80xf32>
    %973 = arith.addf %961, %972 : vector<8x80xf32>
    %974 = vector.extract_strided_slice %964 {offsets = [0, 1], sizes = [8, 1], strides = [1, 1]} : vector<8x4xi32> to vector<8x1xi32>
    %975 = vector.broadcast %974 : vector<8x1xi32> to vector<8x80xi32>
    %976 = arith.cmpi eq, %319, %975 : vector<8x80xi32>
    %977 = vector.extract_strided_slice %963 {offsets = [0, 1], sizes = [8, 1], strides = [1, 1]} : vector<8x4xf32> to vector<8x1xf32>
    %cst_172 = arith.constant 0.000000e+00 : f32
    %978 = vector.shape_cast %977 : vector<8x1xf32> to vector<8x1xf32>
    %979 = vector.broadcast %978 : vector<8x1xf32> to vector<8x80xf32>
    %980 = vector.broadcast %cst_172 : f32 to vector<8x80xf32>
    %981 = arith.select %976, %979, %980 : vector<8x80xi1>, vector<8x80xf32>
    %982 = arith.addf %973, %981 : vector<8x80xf32>
    %983 = vector.extract_strided_slice %964 {offsets = [0, 2], sizes = [8, 1], strides = [1, 1]} : vector<8x4xi32> to vector<8x1xi32>
    %984 = vector.broadcast %983 : vector<8x1xi32> to vector<8x80xi32>
    %985 = arith.cmpi eq, %319, %984 : vector<8x80xi32>
    %986 = vector.extract_strided_slice %963 {offsets = [0, 2], sizes = [8, 1], strides = [1, 1]} : vector<8x4xf32> to vector<8x1xf32>
    %cst_173 = arith.constant 0.000000e+00 : f32
    %987 = vector.shape_cast %986 : vector<8x1xf32> to vector<8x1xf32>
    %988 = vector.broadcast %987 : vector<8x1xf32> to vector<8x80xf32>
    %989 = vector.broadcast %cst_173 : f32 to vector<8x80xf32>
    %990 = arith.select %985, %988, %989 : vector<8x80xi1>, vector<8x80xf32>
    %991 = arith.addf %982, %990 : vector<8x80xf32>
    %992 = vector.extract_strided_slice %964 {offsets = [0, 3], sizes = [8, 1], strides = [1, 1]} : vector<8x4xi32> to vector<8x1xi32>
    %993 = vector.broadcast %992 : vector<8x1xi32> to vector<8x80xi32>
    %994 = arith.cmpi eq, %319, %993 : vector<8x80xi32>
    %995 = vector.extract_strided_slice %963 {offsets = [0, 3], sizes = [8, 1], strides = [1, 1]} : vector<8x4xf32> to vector<8x1xf32>
    %cst_174 = arith.constant 0.000000e+00 : f32
    %996 = vector.shape_cast %995 : vector<8x1xf32> to vector<8x1xf32>
    %997 = vector.broadcast %996 : vector<8x1xf32> to vector<8x80xf32>
    %998 = vector.broadcast %cst_174 : f32 to vector<8x80xf32>
    %999 = arith.select %994, %997, %998 : vector<8x80xi1>, vector<8x80xf32>
    %1000 = arith.addf %991, %999 : vector<8x80xf32>
    %1001 = vector.extract_strided_slice %147 {offsets = [0, 24], sizes = [80, 8], strides = [1, 1]} : vector<80x32xbf16> to vector<80x8xbf16>
    %1002 = arith.truncf %1000 : vector<8x80xf32> to vector<8x80xbf16>
    %cst_175 = arith.constant dense<0.000000e+00> : vector<8x8xf32>
    %1003 = tpu.matmul %1002, %1001, %cst_175 {dimension_numbers = #tpu.dot_dimension_numbers<[1], [0], [0], [1], [0, 0, 1, 1], [], []>} : vector<8x80xbf16>, vector<80x8xbf16>, vector<8x8xf32> -> vector<8x8xf32>
    %1004 = tpu.concatenate %490, %661, %832, %1003 in 1 : vector<8x8xf32>, vector<8x8xf32>, vector<8x8xf32>, vector<8x8xf32> -> vector<8x32xf32>
    %1005 = arith.truncf %1004 : vector<8x32xf32> to vector<8x32xbf16>
    %c0_176 = arith.constant 0 : index
    %c0_177 = arith.constant 0 : index
    %1006 = vector.load %arg11[%c0_176, %c0_177] : memref<32x32xbf16, #tpu.memory_space<vmem>>, vector<32x32xbf16>
    %cst_178 = arith.constant dense<0.000000e+00> : vector<8x32xf32>
    %1007 = tpu.matmul %1005, %1006, %cst_178 {dimension_numbers = #tpu.dot_dimension_numbers<[1], [0], [0], [1], [0, 0, 1, 1], [], []>} : vector<8x32xbf16>, vector<32x32xbf16>, vector<8x32xf32> -> vector<8x32xf32>
    %1008 = vector.broadcast %9 : vector<1x32xf32> to vector<8x32xf32>
    %1009 = arith.addf %1007, %1008 : vector<8x32xf32>
    %1010 = arith.addf %138, %1009 : vector<8x32xf32>
    %cst_179 = arith.constant dense<0.000000e+00> : vector<8xf32>
    %1011 = vector.multi_reduction <add>, %1010, %cst_179 [1] : vector<8x32xf32> to vector<8xf32>
    %1012 = vector.shape_cast %1011 : vector<8xf32> to vector<8x1xf32>
    %cst_180 = arith.constant 3.200000e+01 : f32
    %1013 = vector.broadcast %cst_180 : f32 to vector<8x1xf32>
    %1014 = arith.divf %1012, %1013 : vector<8x1xf32>
    %1015 = vector.broadcast %1014 : vector<8x1xf32> to vector<8x32xf32>
    %1016 = arith.subf %1010, %1015 : vector<8x32xf32>
    %1017 = arith.mulf %1016, %1016 : vector<8x32xf32>
    %cst_181 = arith.constant dense<0.000000e+00> : vector<8xf32>
    %1018 = vector.multi_reduction <add>, %1017, %cst_181 [1] : vector<8x32xf32> to vector<8xf32>
    %1019 = vector.shape_cast %1018 : vector<8xf32> to vector<8x1xf32>
    %cst_182 = arith.constant 3.200000e+01 : f32
    %1020 = vector.broadcast %cst_182 : f32 to vector<8x1xf32>
    %1021 = arith.divf %1019, %1020 : vector<8x1xf32>
    %1022 = vector.broadcast %1014 : vector<8x1xf32> to vector<8x32xf32>
    %1023 = arith.subf %1010, %1022 : vector<8x32xf32>
    %cst_183 = arith.constant 9.99999974E-6 : f32
    %1024 = vector.broadcast %cst_183 : f32 to vector<8x1xf32>
    %1025 = arith.addf %1021, %1024 : vector<8x1xf32>
    %1026 = math.rsqrt %1025 : vector<8x1xf32>
    %1027 = vector.broadcast %1026 : vector<8x1xf32> to vector<8x32xf32>
    %1028 = arith.mulf %1023, %1027 : vector<8x32xf32>
    %1029 = vector.broadcast %10 : vector<1x32xf32> to vector<8x32xf32>
    %1030 = arith.mulf %1028, %1029 : vector<8x32xf32>
    %1031 = vector.broadcast %11 : vector<1x32xf32> to vector<8x32xf32>
    %1032 = arith.addf %1030, %1031 : vector<8x32xf32>
    %1033 = arith.truncf %1032 : vector<8x32xf32> to vector<8x32xbf16>
    %c0_184 = arith.constant 0 : index
    %c0_185 = arith.constant 0 : index
    %1034 = vector.load %arg12[%c0_184, %c0_185] : memref<32x64xbf16, #tpu.memory_space<vmem>>, vector<32x64xbf16>
    %cst_186 = arith.constant dense<0.000000e+00> : vector<8x64xf32>
    %1035 = tpu.matmul %1033, %1034, %cst_186 {dimension_numbers = #tpu.dot_dimension_numbers<[1], [0], [0], [1], [0, 0, 1, 1], [], []>} : vector<8x32xbf16>, vector<32x64xbf16>, vector<8x64xf32> -> vector<8x64xf32>
    %c0_187 = arith.constant 0 : index
    %c0_188 = arith.constant 0 : index
    %1036 = vector.load %arg13[%c0_187, %c0_188] : memref<1x64xf32, #tpu.memory_space<vmem>>, vector<1x64xf32>
    %1037 = vector.broadcast %1036 : vector<1x64xf32> to vector<8x64xf32>
    %1038 = arith.addf %1035, %1037 : vector<8x64xf32>
    %cst_189 = arith.constant 0.000000e+00 : f32
    %1039 = vector.broadcast %cst_189 : f32 to vector<8x64xf32>
    %1040 = arith.maximumf %1038, %1039 : vector<8x64xf32>
    %1041 = arith.truncf %1040 : vector<8x64xf32> to vector<8x64xbf16>
    %c0_190 = arith.constant 0 : index
    %c0_191 = arith.constant 0 : index
    %1042 = vector.load %arg14[%c0_190, %c0_191] : memref<64x32xbf16, #tpu.memory_space<vmem>>, vector<64x32xbf16>
    %cst_192 = arith.constant dense<0.000000e+00> : vector<8x32xf32>
    %1043 = tpu.matmul %1041, %1042, %cst_192 {dimension_numbers = #tpu.dot_dimension_numbers<[1], [0], [0], [1], [0, 0, 1, 1], [], []>} : vector<8x64xbf16>, vector<64x32xbf16>, vector<8x32xf32> -> vector<8x32xf32>
    %1044 = vector.broadcast %12 : vector<1x32xf32> to vector<8x32xf32>
    %1045 = arith.addf %1043, %1044 : vector<8x32xf32>
    %1046 = arith.addf %1032, %1045 : vector<8x32xf32>
    %cst_193 = arith.constant dense<0.000000e+00> : vector<8xf32>
    %1047 = vector.multi_reduction <add>, %1046, %cst_193 [1] : vector<8x32xf32> to vector<8xf32>
    %1048 = vector.shape_cast %1047 : vector<8xf32> to vector<8x1xf32>
    %cst_194 = arith.constant 3.200000e+01 : f32
    %1049 = vector.broadcast %cst_194 : f32 to vector<8x1xf32>
    %1050 = arith.divf %1048, %1049 : vector<8x1xf32>
    %1051 = vector.broadcast %1050 : vector<8x1xf32> to vector<8x32xf32>
    %1052 = arith.subf %1046, %1051 : vector<8x32xf32>
    %1053 = arith.mulf %1052, %1052 : vector<8x32xf32>
    %cst_195 = arith.constant dense<0.000000e+00> : vector<8xf32>
    %1054 = vector.multi_reduction <add>, %1053, %cst_195 [1] : vector<8x32xf32> to vector<8xf32>
    %1055 = vector.shape_cast %1054 : vector<8xf32> to vector<8x1xf32>
    %cst_196 = arith.constant 3.200000e+01 : f32
    %1056 = vector.broadcast %cst_196 : f32 to vector<8x1xf32>
    %1057 = arith.divf %1055, %1056 : vector<8x1xf32>
    %1058 = vector.broadcast %1050 : vector<8x1xf32> to vector<8x32xf32>
    %1059 = arith.subf %1046, %1058 : vector<8x32xf32>
    %cst_197 = arith.constant 9.99999974E-6 : f32
    %1060 = vector.broadcast %cst_197 : f32 to vector<8x1xf32>
    %1061 = arith.addf %1057, %1060 : vector<8x1xf32>
    %1062 = math.rsqrt %1061 : vector<8x1xf32>
    %1063 = vector.broadcast %1062 : vector<8x1xf32> to vector<8x32xf32>
    %1064 = arith.mulf %1059, %1063 : vector<8x32xf32>
    %1065 = vector.broadcast %13 : vector<1x32xf32> to vector<8x32xf32>
    %1066 = arith.mulf %1064, %1065 : vector<8x32xf32>
    %1067 = vector.broadcast %14 : vector<1x32xf32> to vector<8x32xf32>
    %1068 = arith.addf %1066, %1067 : vector<8x32xf32>
    %c0_198 = arith.constant 0 : index
    %c0_199 = arith.constant 0 : index
    %c0_200 = arith.constant 0 : index
    %1069 = vector.load %arg17[%c0_198, %c0_199, %c0_200] : memref<1x8x32xf32, #tpu.memory_space<vmem>>, vector<1x8x32xf32>
    %1070 = vector.shape_cast %1069 : vector<1x8x32xf32> to vector<8x32xf32>
    %1071 = vector.shape_cast %1068 : vector<8x32xf32> to vector<1x8x32xf32>
    tpu.vector_store %arg17[%c0_198, %c0_199, %c0_200], %1071 {strides = array<i32>} : memref<1x8x32xf32, #tpu.memory_space<vmem>>, vector<1x8x32xf32>,
    return
  }
  func.func @transform_0(%arg0: i32) -> (i32, i32, i32) {
    %c0_i32 = arith.constant 0 : i32
    %c0_i32_0 = arith.constant 0 : i32
    %c0_i32_1 = arith.constant 0 : i32
    return %arg0, %c0_i32, %c0_i32_0 : i32, i32, i32
  }
  func.func @transform_1(%arg0: i32) -> (i32, i32, i32) {
    %c0_i32 = arith.constant 0 : i32
    %c0_i32_0 = arith.constant 0 : i32
    %c0_i32_1 = arith.constant 0 : i32
    return %arg0, %c0_i32, %c0_i32_0 : i32, i32, i32
  }
  func.func @transform_2(%arg0: i32) -> (i32, i32, i32) {
    %c0_i32 = arith.constant 0 : i32
    %c0_i32_0 = arith.constant 0 : i32
    %c0_i32_1 = arith.constant 0 : i32
    return %arg0, %c0_i32, %c0_i32_0 : i32, i32, i32
  }
  func.func @transform_3(%arg0: i32) -> (i32, i32, i32) {
    %c0_i32 = arith.constant 0 : i32
    %c0_i32_0 = arith.constant 0 : i32
    %c0_i32_1 = arith.constant 0 : i32
    return %arg0, %c0_i32, %c0_i32_0 : i32, i32, i32
  }
  func.func @transform_4(%arg0: i32) -> (i32, i32) {
    %c0_i32 = arith.constant 0 : i32
    %c0_i32_0 = arith.constant 0 : i32
    %c0_i32_1 = arith.constant 0 : i32
    return %c0_i32, %c0_i32_0 : i32, i32
  }
  func.func @transform_5(%arg0: i32) -> (i32, i32) {
    %c0_i32 = arith.constant 0 : i32
    %c0_i32_0 = arith.constant 0 : i32
    %c0_i32_1 = arith.constant 0 : i32
    return %c0_i32, %c0_i32_0 : i32, i32
  }
  func.func @transform_6(%arg0: i32) -> (i32, i32) {
    %c0_i32 = arith.constant 0 : i32
    %c0_i32_0 = arith.constant 0 : i32
    %c0_i32_1 = arith.constant 0 : i32
    return %c0_i32, %c0_i32_0 : i32, i32
  }
  func.func @transform_7(%arg0: i32) -> (i32, i32) {
    %c0_i32 = arith.constant 0 : i32
    %c0_i32_0 = arith.constant 0 : i32
    %c0_i32_1 = arith.constant 0 : i32
    return %c0_i32, %c0_i32_0 : i32, i32
  }
  func.func @transform_8(%arg0: i32) -> (i32, i32) {
    %c0_i32 = arith.constant 0 : i32
    %c0_i32_0 = arith.constant 0 : i32
    %c0_i32_1 = arith.constant 0 : i32
    return %c0_i32, %c0_i32_0 : i32, i32
  }
  func.func @transform_9(%arg0: i32) -> (i32, i32) {
    %c0_i32 = arith.constant 0 : i32
    %c0_i32_0 = arith.constant 0 : i32
    %c0_i32_1 = arith.constant 0 : i32
    return %c0_i32, %c0_i32_0 : i32, i32
  }
  func.func @transform_10(%arg0: i32) -> (i32, i32) {
    %c0_i32 = arith.constant 0 : i32
    %c0_i32_0 = arith.constant 0 : i32
    %c0_i32_1 = arith.constant 0 : i32
    return %c0_i32, %c0_i32_0 : i32, i32
  }
  func.func @transform_11(%arg0: i32) -> (i32, i32) {
    %c0_i32 = arith.constant 0 : i32
    %c0_i32_0 = arith.constant 0 : i32
    %c0_i32_1 = arith.constant 0 : i32
    return %c0_i32, %c0_i32_0 : i32, i32
  }
  func.func @transform_12(%arg0: i32) -> (i32, i32) {
    %c0_i32 = arith.constant 0 : i32
    %c0_i32_0 = arith.constant 0 : i32
    %c0_i32_1 = arith.constant 0 : i32
    return %c0_i32, %c0_i32_0 : i32, i32
  }
  func.func @transform_13(%arg0: i32) -> (i32, i32) {
    %c0_i32 = arith.constant 0 : i32
    %c0_i32_0 = arith.constant 0 : i32
    %c0_i32_1 = arith.constant 0 : i32
    return %c0_i32, %c0_i32_0 : i32, i32
  }
  func.func @transform_14(%arg0: i32) -> (i32, i32) {
    %c0_i32 = arith.constant 0 : i32
    %c0_i32_0 = arith.constant 0 : i32
    %c0_i32_1 = arith.constant 0 : i32
    return %c0_i32, %c0_i32_0 : i32, i32
  }
  func.func @transform_15(%arg0: i32) -> (i32, i32) {
    %c0_i32 = arith.constant 0 : i32
    %c0_i32_0 = arith.constant 0 : i32
    %c0_i32_1 = arith.constant 0 : i32
    return %c0_i32, %c0_i32_0 : i32, i32
  }
  func.func @transform_16(%arg0: i32) -> (i32, i32, i32) {
    %c0_i32 = arith.constant 0 : i32
    %c0_i32_0 = arith.constant 0 : i32
    %c0_i32_1 = arith.constant 0 : i32
    return %arg0, %c0_i32, %c0_i32_0 : i32, i32, i32
  }
}

</mosaic_0001>

<llo_original>
// kernel: deformable_decoder_layer.1
$region0: #{deformable_decoder_layer.1}
  #allocation0 [shape = 'u32[]', space=smem, size = 0x4, offset = 0x4, fixed_abs, tag = 'smem constant byte address 0x4 - core index']
  #allocation1 [shape = 'u32[72,128]{1,0:T(1,128)}', space=vmem, size = 0x9000, scoped, tag = 'internal scratch']
  %s0 = inlined_call_operand.vmem [shape: f32[2,8,32], index: 0, kind: input, shape index: {}]
  %s1 = inlined_call_operand.vmem [shape: f32[2,8,32], index: 1, kind: input, shape index: {}]
  %s2 = inlined_call_operand.vmem [shape: f32[2,8,32], index: 2, kind: input, shape index: {}]
  %s3 = inlined_call_operand.vmem [shape: f32[2,80,32], index: 3, kind: input, shape index: {}]
  %s4 = inlined_call_operand.vmem [shape: bf16[32,96], index: 4, kind: input, shape index: {}]
  %s5 = inlined_call_operand.vmem [shape: f32[1,96], index: 5, kind: input, shape index: {}]
  %s6 = inlined_call_operand.vmem [shape: bf16[32,32], index: 6, kind: input, shape index: {}]
  %s7 = inlined_call_operand.vmem [shape: bf16[32,32], index: 7, kind: input, shape index: {}]
  %s8 = inlined_call_operand.vmem [shape: bf16[32,48], index: 8, kind: input, shape index: {}]
  %s9 = inlined_call_operand.vmem [shape: f32[1,48], index: 9, kind: input, shape index: {}]
  %s10 = inlined_call_operand.vmem [shape: bf16[32,32], index: 10, kind: input, shape index: {}]
  %s11 = inlined_call_operand.vmem [shape: bf16[32,64], index: 11, kind: input, shape index: {}]
  %s12 = inlined_call_operand.vmem [shape: f32[1,64], index: 12, kind: input, shape index: {}]
  %s13 = inlined_call_operand.vmem [shape: bf16[64,32], index: 13, kind: input, shape index: {}]
  %s14 = inlined_call_operand.vmem [shape: f32[3,16], index: 14, kind: input, shape index: {}]
  %s15 = inlined_call_operand.vmem [shape: f32[10,32], index: 15, kind: input, shape index: {}]
  %s16 = inlined_call_operand.hbm [shape: f32[2,8,32], index: 16, kind: output, shape index: {}]
  %s17 = sld [smem:[#allocation0]]
  $region97: #{deformable_decoder_layer.1} parent=0
    _
  %s19 = ssub.s32 1, %s17
  %s20 = scalar_select 0, %s19, %s17
  $region1: #{deformable_decoder_layer.1} parent=0
    #allocation2 [shape = 'u8[8192]{0}', space=vmem, size = 0x2000, scoped, tag = 'output window, operand 0']
    #allocation3 [shape = 's32[2]{0}', space=sflag, size = 0x8, scoped, tag = 'scoped memory for deformable_decoder_layer.1']
    %21 = vsyncpa [#allocation3], 0
    %s22 = scalar_lea.sflag [#allocation3], 1
    %23 = vsyncpa %s22, 0
    loop: start=0, step=1, limit=4
    $region2: #{deformable_decoder_layer.1} parent=1 // loop_pre_header
      _
    $region3: #{deformable_decoder_layer.1} parent=1 // loop_header
      %s25 = sphi 0, %s29
      %p26 = scmp.ge.s32.totalorder %s25, 4
      %s35 = sphi 0, %s37
      %s38 = sphi 0, %s35
      %s39 = sphi 0, %s38
      %s55 = sphi 0, %s39
      %s61 = sphi 0, %s63
      %s64 = sphi 0, %s61
      %s65 = sphi 0, %s64
      %s81 = sphi 0, %s65
      %s87 = sphi 0, %s89
      %s90 = sphi 0, %s87
      %s91 = sphi 0, %s90
      %s107 = sphi 0, %s91
      %s113 = sphi 0, %s115
      %s116 = sphi 0, %s113
      %s117 = sphi 0, %s116
      %s133 = sphi 0, %s117
      %s137 = sphi 0, %s137
      %s139 = sphi 0, %s137
      %s140 = sphi 0, %s139
      %s154 = sphi 0, %s140
      %s158 = sphi 0, %s158
      %s160 = sphi 0, %s158
      %s161 = sphi 0, %s160
      %s175 = sphi 0, %s161
      %s179 = sphi 0, %s179
      %s181 = sphi 0, %s179
      %s182 = sphi 0, %s181
      %s196 = sphi 0, %s182
      %s200 = sphi 0, %s200
      %s202 = sphi 0, %s200
      %s203 = sphi 0, %s202
      %s217 = sphi 0, %s203
      %s221 = sphi 0, %s221
      %s223 = sphi 0, %s221
      %s224 = sphi 0, %s223
      %s238 = sphi 0, %s224
      %s242 = sphi 0, %s242
      %s244 = sphi 0, %s242
      %s245 = sphi 0, %s244
      %s259 = sphi 0, %s245
      %s263 = sphi 0, %s263
      %s265 = sphi 0, %s263
      %s266 = sphi 0, %s265
      %s280 = sphi 0, %s266
      %s284 = sphi 0, %s284
      %s286 = sphi 0, %s284
      %s287 = sphi 0, %s286
      %s301 = sphi 0, %s287
      %s305 = sphi 0, %s305
      %s307 = sphi 0, %s305
      %s308 = sphi 0, %s307
      %s322 = sphi 0, %s308
      %s326 = sphi 0, %s326
      %s328 = sphi 0, %s326
      %s329 = sphi 0, %s328
      %s343 = sphi 0, %s329
      %s347 = sphi 0, %s347
      %s349 = sphi 0, %s347
      %s350 = sphi 0, %s349
      %s364 = sphi 0, %s350
      %s368 = sphi 0, %s368
      %s370 = sphi 0, %s368
      %s371 = sphi 0, %s370
      %s385 = sphi 0, %s371
      %s391 = sphi 0, %s393
      %s394 = sphi 0, %s391
      %s395 = sphi 0, %s394
      %s411 = sphi 0, %s395
    $region4: #{deformable_decoder_layer.1} parent=1 // loop_header_branch
      %28 = sbr.rel (%p26) target = $region8
    $region5: #{deformable_decoder_layer.1} parent=1 // loop_body
      %s30 = ssub.s32 %s25, 1
      %s31 = ssub.s32 %s25, 2
      %s32 = sadd.s32 %s25, 1
      %s33 = ssub.s32 %s25, %s32
      %p34 = scmp.eq.s32.totalorder %s33, 0
      %s36 = sadd.s32 %s35, 1
      %s37 = scalar_select %p34, %s35, %s36
      %p40 = pneg %p34
      %p41 = scmp.eq.s32.totalorder %s25, 1
      %p42 = por %p40, %p41
      %p43 = scmp.ne.s32.totalorder %s35, %s38
      %p44 = scmp.eq.s32.totalorder %s25, 0
      %p45 = por %p43, %p44
      %p46 = scmp.ne.s32.totalorder %s35, %s38
      %p47 = scmp.eq.s32.totalorder %s30, 1
      %p48 = por %p46, %p47
      %p49 = scmp.ne.s32.totalorder %s38, %s39
      %p50 = scmp.eq.s32.totalorder %s30, 0
      %p51 = por %p49, %p50
      %p52 = scmp.ne.s32.totalorder %s38, %s39
      %p53 = scmp.eq.s32.totalorder %s31, 1
      %p54 = por %p52, %p53
      %p56 = scmp.ne.s32.totalorder %s39, %s55
      %p57 = scmp.eq.s32.totalorder %s31, 0
      %p58 = por %p56, %p57
      %s59 = ssub.s32 %s25, %s32
      %p60 = scmp.eq.s32.totalorder %s59, 0
      %s62 = sadd.s32 %s61, 1
      %s63 = scalar_select %p60, %s61, %s62
      %p66 = pneg %p60
      %p67 = scmp.eq.s32.totalorder %s25, 1
      %p68 = por %p66, %p67
      %p69 = scmp.ne.s32.totalorder %s61, %s64
      %p70 = scmp.eq.s32.totalorder %s25, 0
      %p71 = por %p69, %p70
      %p72 = scmp.ne.s32.totalorder %s61, %s64
      %p73 = scmp.eq.s32.totalorder %s30, 1
      %p74 = por %p72, %p73
      %p75 = scmp.ne.s32.totalorder %s64, %s65
      %p76 = scmp.eq.s32.totalorder %s30, 0
      %p77 = por %p75, %p76
      %p78 = scmp.ne.s32.totalorder %s64, %s65
      %p79 = scmp.eq.s32.totalorder %s31, 1
      %p80 = por %p78, %p79
      %p82 = scmp.ne.s32.totalorder %s65, %s81
      %p83 = scmp.eq.s32.totalorder %s31, 0
      %p84 = por %p82, %p83
      %s85 = ssub.s32 %s25, %s32
      %p86 = scmp.eq.s32.totalorder %s85, 0
      %s88 = sadd.s32 %s87, 1
      %s89 = scalar_select %p86, %s87, %s88
      %p92 = pneg %p86
      %p93 = scmp.eq.s32.totalorder %s25, 1
      %p94 = por %p92, %p93
      %p95 = scmp.ne.s32.totalorder %s87, %s90
      %p96 = scmp.eq.s32.totalorder %s25, 0
      %p97 = por %p95, %p96
      %p98 = scmp.ne.s32.totalorder %s87, %s90
      %p99 = scmp.eq.s32.totalorder %s30, 1
      %p100 = por %p98, %p99
      %p101 = scmp.ne.s32.totalorder %s90, %s91
      %p102 = scmp.eq.s32.totalorder %s30, 0
      %p103 = por %p101, %p102
      %p104 = scmp.ne.s32.totalorder %s90, %s91
      %p105 = scmp.eq.s32.totalorder %s31, 1
      %p106 = por %p104, %p105
      %p108 = scmp.ne.s32.totalorder %s91, %s107
      %p109 = scmp.eq.s32.totalorder %s31, 0
      %p110 = por %p108, %p109
      %s111 = ssub.s32 %s25, %s32
      %p112 = scmp.eq.s32.totalorder %s111, 0
      %s114 = sadd.s32 %s113, 1
      %s115 = scalar_select %p112, %s113, %s114
      %p118 = pneg %p112
      %p119 = scmp.eq.s32.totalorder %s25, 1
      %p120 = por %p118, %p119
      %p121 = scmp.ne.s32.totalorder %s113, %s116
      %p122 = scmp.eq.s32.totalorder %s25, 0
      %p123 = por %p121, %p122
      %p124 = scmp.ne.s32.totalorder %s113, %s116
      %p125 = scmp.eq.s32.totalorder %s30, 1
      %p126 = por %p124, %p125
      %p127 = scmp.ne.s32.totalorder %s116, %s117
      %p128 = scmp.eq.s32.totalorder %s30, 0
      %p129 = por %p127, %p128
      %p130 = scmp.ne.s32.totalorder %s116, %s117
      %p131 = scmp.eq.s32.totalorder %s31, 1
      %p132 = por %p130, %p131
      %p134 = scmp.ne.s32.totalorder %s117, %s133
      %p135 = scmp.eq.s32.totalorder %s31, 0
      %p136 = por %p134, %p135
      %s138 = sadd.s32 %s137, 1
      %p141 = scmp.eq.s32.totalorder %s25, 1
      %p142 = scmp.ne.s32.totalorder %s137, %s139
      %p143 = scmp.eq.s32.totalorder %s25, 0
      %p144 = por %p142, %p143
      %p145 = scmp.ne.s32.totalorder %s137, %s139
      %p146 = scmp.eq.s32.totalorder %s30, 1
      %p147 = por %p145, %p146
      %p148 = scmp.ne.s32.totalorder %s139, %s140
      %p149 = scmp.eq.s32.totalorder %s30, 0
      %p150 = por %p148, %p149
      %p151 = scmp.ne.s32.totalorder %s139, %s140
      %p152 = scmp.eq.s32.totalorder %s31, 1
      %p153 = por %p151, %p152
      %p155 = scmp.ne.s32.totalorder %s140, %s154
      %p156 = scmp.eq.s32.totalorder %s31, 0
      %p157 = por %p155, %p156
      %s159 = sadd.s32 %s158, 1
      %p162 = scmp.eq.s32.totalorder %s25, 1
      %p163 = scmp.ne.s32.totalorder %s158, %s160
      %p164 = scmp.eq.s32.totalorder %s25, 0
      %p165 = por %p163, %p164
      %p166 = scmp.ne.s32.totalorder %s158, %s160
      %p167 = scmp.eq.s32.totalorder %s30, 1
      %p168 = por %p166, %p167
      %p169 = scmp.ne.s32.totalorder %s160, %s161
      %p170 = scmp.eq.s32.totalorder %s30, 0
      %p171 = por %p169, %p170
      %p172 = scmp.ne.s32.totalorder %s160, %s161
      %p173 = scmp.eq.s32.totalorder %s31, 1
      %p174 = por %p172, %p173
      %p176 = scmp.ne.s32.totalorder %s161, %s175
      %p177 = scmp.eq.s32.totalorder %s31, 0
      %p178 = por %p176, %p177
      %s180 = sadd.s32 %s179, 1
      %p183 = scmp.eq.s32.totalorder %s25, 1
      %p184 = scmp.ne.s32.totalorder %s179, %s181
      %p185 = scmp.eq.s32.totalorder %s25, 0
      %p186 = por %p184, %p185
      %p187 = scmp.ne.s32.totalorder %s179, %s181
      %p188 = scmp.eq.s32.totalorder %s30, 1
      %p189 = por %p187, %p188
      %p190 = scmp.ne.s32.totalorder %s181, %s182
      %p191 = scmp.eq.s32.totalorder %s30, 0
      %p192 = por %p190, %p191
      %p193 = scmp.ne.s32.totalorder %s181, %s182
      %p194 = scmp.eq.s32.totalorder %s31, 1
      %p195 = por %p193, %p194
      %p197 = scmp.ne.s32.totalorder %s182, %s196
      %p198 = scmp.eq.s32.totalorder %s31, 0
      %p199 = por %p197, %p198
      %s201 = sadd.s32 %s200, 1
      %p204 = scmp.eq.s32.totalorder %s25, 1
      %p205 = scmp.ne.s32.totalorder %s200, %s202
      %p206 = scmp.eq.s32.totalorder %s25, 0
      %p207 = por %p205, %p206
      %p208 = scmp.ne.s32.totalorder %s200, %s202
      %p209 = scmp.eq.s32.totalorder %s30, 1
      %p210 = por %p208, %p209
      %p211 = scmp.ne.s32.totalorder %s202, %s203
      %p212 = scmp.eq.s32.totalorder %s30, 0
      %p213 = por %p211, %p212
      %p214 = scmp.ne.s32.totalorder %s202, %s203
      %p215 = scmp.eq.s32.totalorder %s31, 1
      %p216 = por %p214, %p215
      %p218 = scmp.ne.s32.totalorder %s203, %s217
      %p219 = scmp.eq.s32.totalorder %s31, 0
      %p220 = por %p218, %p219
      %s222 = sadd.s32 %s221, 1
      %p225 = scmp.eq.s32.totalorder %s25, 1
      %p226 = scmp.ne.s32.totalorder %s221, %s223
      %p227 = scmp.eq.s32.totalorder %s25, 0
      %p228 = por %p226, %p227
      %p229 = scmp.ne.s32.totalorder %s221, %s223
      %p230 = scmp.eq.s32.totalorder %s30, 1
      %p231 = por %p229, %p230
      %p232 = scmp.ne.s32.totalorder %s223, %s224
      %p233 = scmp.eq.s32.totalorder %s30, 0
      %p234 = por %p232, %p233
      %p235 = scmp.ne.s32.totalorder %s223, %s224
      %p236 = scmp.eq.s32.totalorder %s31, 1
      %p237 = por %p235, %p236
      %p239 = scmp.ne.s32.totalorder %s224, %s238
      %p240 = scmp.eq.s32.totalorder %s31, 0
      %p241 = por %p239, %p240
      %s243 = sadd.s32 %s242, 1
      %p246 = scmp.eq.s32.totalorder %s25, 1
      %p247 = scmp.ne.s32.totalorder %s242, %s244
      %p248 = scmp.eq.s32.totalorder %s25, 0
      %p249 = por %p247, %p248
      %p250 = scmp.ne.s32.totalorder %s242, %s244
      %p251 = scmp.eq.s32.totalorder %s30, 1
      %p252 = por %p250, %p251
      %p253 = scmp.ne.s32.totalorder %s244, %s245
      %p254 = scmp.eq.s32.totalorder %s30, 0
      %p255 = por %p253, %p254
      %p256 = scmp.ne.s32.totalorder %s244, %s245
      %p257 = scmp.eq.s32.totalorder %s31, 1
      %p258 = por %p256, %p257
      %p260 = scmp.ne.s32.totalorder %s245, %s259
      %p261 = scmp.eq.s32.totalorder %s31, 0
      %p262 = por %p260, %p261
      %s264 = sadd.s32 %s263, 1
      %p267 = scmp.eq.s32.totalorder %s25, 1
      %p268 = scmp.ne.s32.totalorder %s263, %s265
      %p269 = scmp.eq.s32.totalorder %s25, 0
      %p270 = por %p268, %p269
      %p271 = scmp.ne.s32.totalorder %s263, %s265
      %p272 = scmp.eq.s32.totalorder %s30, 1
      %p273 = por %p271, %p272
      %p274 = scmp.ne.s32.totalorder %s265, %s266
      %p275 = scmp.eq.s32.totalorder %s30, 0
      %p276 = por %p274, %p275
      %p277 = scmp.ne.s32.totalorder %s265, %s266
      %p278 = scmp.eq.s32.totalorder %s31, 1
      %p279 = por %p277, %p278
      %p281 = scmp.ne.s32.totalorder %s266, %s280
      %p282 = scmp.eq.s32.totalorder %s31, 0
      %p283 = por %p281, %p282
      %s285 = sadd.s32 %s284, 1
      %p288 = scmp.eq.s32.totalorder %s25, 1
      %p289 = scmp.ne.s32.totalorder %s284, %s286
      %p290 = scmp.eq.s32.totalorder %s25, 0
      %p291 = por %p289, %p290
      %p292 = scmp.ne.s32.totalorder %s284, %s286
      %p293 = scmp.eq.s32.totalorder %s30, 1
      %p294 = por %p292, %p293
      %p295 = scmp.ne.s32.totalorder %s286, %s287
      %p296 = scmp.eq.s32.totalorder %s30, 0
      %p297 = por %p295, %p296
      %p298 = scmp.ne.s32.totalorder %s286, %s287
      %p299 = scmp.eq.s32.totalorder %s31, 1
      %p300 = por %p298, %p299
      %p302 = scmp.ne.s32.totalorder %s287, %s301
      %p303 = scmp.eq.s32.totalorder %s31, 0
      %p304 = por %p302, %p303
      %s306 = sadd.s32 %s305, 1
      %p309 = scmp.eq.s32.totalorder %s25, 1
      %p310 = scmp.ne.s32.totalorder %s305, %s307
      %p311 = scmp.eq.s32.totalorder %s25, 0
      %p312 = por %p310, %p311
      %p313 = scmp.ne.s32.totalorder %s305, %s307
      %p314 = scmp.eq.s32.totalorder %s30, 1
      %p315 = por %p313, %p314
      %p316 = scmp.ne.s32.totalorder %s307, %s308
      %p317 = scmp.eq.s32.totalorder %s30, 0
      %p318 = por %p316, %p317
      %p319 = scmp.ne.s32.totalorder %s307, %s308
      %p320 = scmp.eq.s32.totalorder %s31, 1
      %p321 = por %p319, %p320
      %p323 = scmp.ne.s32.totalorder %s308, %s322
      %p324 = scmp.eq.s32.totalorder %s31, 0
      %p325 = por %p323, %p324
      %s327 = sadd.s32 %s326, 1
      %p330 = scmp.eq.s32.totalorder %s25, 1
      %p331 = scmp.ne.s32.totalorder %s326, %s328
      %p332 = scmp.eq.s32.totalorder %s25, 0
      %p333 = por %p331, %p332
      %p334 = scmp.ne.s32.totalorder %s326, %s328
      %p335 = scmp.eq.s32.totalorder %s30, 1
      %p336 = por %p334, %p335
      %p337 = scmp.ne.s32.totalorder %s328, %s329
      %p338 = scmp.eq.s32.totalorder %s30, 0
      %p339 = por %p337, %p338
      %p340 = scmp.ne.s32.totalorder %s328, %s329
      %p341 = scmp.eq.s32.totalorder %s31, 1
      %p342 = por %p340, %p341
      %p344 = scmp.ne.s32.totalorder %s329, %s343
      %p345 = scmp.eq.s32.totalorder %s31, 0
      %p346 = por %p344, %p345
      %s348 = sadd.s32 %s347, 1
      %p351 = scmp.eq.s32.totalorder %s25, 1
      %p352 = scmp.ne.s32.totalorder %s347, %s349
      %p353 = scmp.eq.s32.totalorder %s25, 0
      %p354 = por %p352, %p353
      %p355 = scmp.ne.s32.totalorder %s347, %s349
      %p356 = scmp.eq.s32.totalorder %s30, 1
      %p357 = por %p355, %p356
      %p358 = scmp.ne.s32.totalorder %s349, %s350
      %p359 = scmp.eq.s32.totalorder %s30, 0
      %p360 = por %p358, %p359
      %p361 = scmp.ne.s32.totalorder %s349, %s350
      %p362 = scmp.eq.s32.totalorder %s31, 1
      %p363 = por %p361, %p362
      %p365 = scmp.ne.s32.totalorder %s350, %s364
      %p366 = scmp.eq.s32.totalorder %s31, 0
      %p367 = por %p365, %p366
      %s369 = sadd.s32 %s368, 1
      %p372 = scmp.eq.s32.totalorder %s25, 1
      %p373 = scmp.ne.s32.totalorder %s368, %s370
      %p374 = scmp.eq.s32.totalorder %s25, 0
      %p375 = por %p373, %p374
      %p376 = scmp.ne.s32.totalorder %s368, %s370
      %p377 = scmp.eq.s32.totalorder %s30, 1
      %p378 = por %p376, %p377
      %p379 = scmp.ne.s32.totalorder %s370, %s371
      %p380 = scmp.eq.s32.totalorder %s30, 0
      %p381 = por %p379, %p380
      %p382 = scmp.ne.s32.totalorder %s370, %s371
      %p383 = scmp.eq.s32.totalorder %s31, 1
      %p384 = por %p382, %p383
      %p386 = scmp.ne.s32.totalorder %s371, %s385
      %p387 = scmp.eq.s32.totalorder %s31, 0
      %p388 = por %p386, %p387
      %s389 = ssub.s32 %s25, %s32
      %p390 = scmp.eq.s32.totalorder %s389, 0
      %s392 = sadd.s32 %s391, 1
      %s393 = scalar_select %p390, %s391, %s392
      %p396 = pneg %p390
      %p397 = scmp.eq.s32.totalorder %s25, 1
      %p398 = por %p396, %p397
      %p399 = scmp.ne.s32.totalorder %s391, %s394
      %p400 = scmp.eq.s32.totalorder %s25, 0
      %p401 = por %p399, %p400
      %p402 = scmp.ne.s32.totalorder %s391, %s394
      %p403 = scmp.eq.s32.totalorder %s30, 1
      %p404 = por %p402, %p403
      %p405 = scmp.ne.s32.totalorder %s394, %s395
      %p406 = scmp.eq.s32.totalorder %s30, 0
      %p407 = por %p405, %p406
      %p408 = scmp.ne.s32.totalorder %s394, %s395
      %p409 = scmp.eq.s32.totalorder %s31, 1
      %p410 = por %p408, %p409
      %p412 = scmp.ne.s32.totalorder %s395, %s411
      %p413 = scmp.eq.s32.totalorder %s31, 0
      %p414 = por %p412, %p413
      %p415 = scmp.le.s32.totalorder 1, %s25
      %p416 = scmp.lt.s32.totalorder %s25, 3
      %p417 = pnand %p415, %p416
      %p418 = pneg %p417
      // Predicated region
      $region9: #{deformable_decoder_layer.1} parent=5 // pred_check
        _
      $region10: #{deformable_decoder_layer.1} parent=5 // pred_check_branch
        %420 = sbr.rel (%p417) target = $region12
      $region11: #{deformable_decoder_layer.1} parent=5 // pred_region
        %s421 = ssub.s32 %s25, 1
        // Predicated region
        $region13: #{deformable_decoder_layer.1} parent=11 // pred_check
          %p422 = pneg %p150
        $region14: #{deformable_decoder_layer.1} parent=11 // pred_check_branch
          %424 = sbr.rel (%p422) target = $region16
        $region15: #{deformable_decoder_layer.1} parent=11 // pred_region
          _
        $region16: #{deformable_decoder_layer.1} parent=11 // pred_fallthru
          _
        // Predicated region
        $region17: #{deformable_decoder_layer.1} parent=11 // pred_check
          %p425 = pneg %p171
        $region18: #{deformable_decoder_layer.1} parent=11 // pred_check_branch
          %427 = sbr.rel (%p425) target = $region20
        $region19: #{deformable_decoder_layer.1} parent=11 // pred_region
          _
        $region20: #{deformable_decoder_layer.1} parent=11 // pred_fallthru
          _
        // Predicated region
        $region21: #{deformable_decoder_layer.1} parent=11 // pred_check
          %p428 = pneg %p192
        $region22: #{deformable_decoder_layer.1} parent=11 // pred_check_branch
          %430 = sbr.rel (%p428) target = $region24
        $region23: #{deformable_decoder_layer.1} parent=11 // pred_region
          _
        $region24: #{deformable_decoder_layer.1} parent=11 // pred_fallthru
          _
        // Predicated region
        $region25: #{deformable_decoder_layer.1} parent=11 // pred_check
          %p431 = pneg %p213
        $region26: #{deformable_decoder_layer.1} parent=11 // pred_check_branch
          %433 = sbr.rel (%p431) target = $region28
        $region27: #{deformable_decoder_layer.1} parent=11 // pred_region
          _
        $region28: #{deformable_decoder_layer.1} parent=11 // pred_fallthru
          _
        // Predicated region
        $region29: #{deformable_decoder_layer.1} parent=11 // pred_check
          %p434 = pneg %p234
        $region30: #{deformable_decoder_layer.1} parent=11 // pred_check_branch
          %436 = sbr.rel (%p434) target = $region32
        $region31: #{deformable_decoder_layer.1} parent=11 // pred_region
          _
        $region32: #{deformable_decoder_layer.1} parent=11 // pred_fallthru
          _
        // Predicated region
        $region33: #{deformable_decoder_layer.1} parent=11 // pred_check
          %p437 = pneg %p255
        $region34: #{deformable_decoder_layer.1} parent=11 // pred_check_branch
          %439 = sbr.rel (%p437) target = $region36
        $region35: #{deformable_decoder_layer.1} parent=11 // pred_region
          _
        $region36: #{deformable_decoder_layer.1} parent=11 // pred_fallthru
          _
        // Predicated region
        $region37: #{deformable_decoder_layer.1} parent=11 // pred_check
          %p440 = pneg %p276
        $region38: #{deformable_decoder_layer.1} parent=11 // pred_check_branch
          %442 = sbr.rel (%p440) target = $region40
        $region39: #{deformable_decoder_layer.1} parent=11 // pred_region
          _
        $region40: #{deformable_decoder_layer.1} parent=11 // pred_fallthru
          _
        // Predicated region
        $region41: #{deformable_decoder_layer.1} parent=11 // pred_check
          %p443 = pneg %p297
        $region42: #{deformable_decoder_layer.1} parent=11 // pred_check_branch
          %445 = sbr.rel (%p443) target = $region44
        $region43: #{deformable_decoder_layer.1} parent=11 // pred_region
          _
        $region44: #{deformable_decoder_layer.1} parent=11 // pred_fallthru
          _
        // Predicated region
        $region45: #{deformable_decoder_layer.1} parent=11 // pred_check
          %p446 = pneg %p318
        $region46: #{deformable_decoder_layer.1} parent=11 // pred_check_branch
          %448 = sbr.rel (%p446) target = $region48
        $region47: #{deformable_decoder_layer.1} parent=11 // pred_region
          _
        $region48: #{deformable_decoder_layer.1} parent=11 // pred_fallthru
          _
        // Predicated region
        $region49: #{deformable_decoder_layer.1} parent=11 // pred_check
          %p449 = pneg %p339
        $region50: #{deformable_decoder_layer.1} parent=11 // pred_check_branch
          %451 = sbr.rel (%p449) target = $region52
        $region51: #{deformable_decoder_layer.1} parent=11 // pred_region
          _
        $region52: #{deformable_decoder_layer.1} parent=11 // pred_fallthru
          _
        // Predicated region
        $region53: #{deformable_decoder_layer.1} parent=11 // pred_check
          %p452 = pneg %p360
        $region54: #{deformable_decoder_layer.1} parent=11 // pred_check_branch
          %454 = sbr.rel (%p452) target = $region56
        $region55: #{deformable_decoder_layer.1} parent=11 // pred_region
          _
        $region56: #{deformable_decoder_layer.1} parent=11 // pred_fallthru
          _
        // Predicated region
        $region57: #{deformable_decoder_layer.1} parent=11 // pred_check
          %p455 = pneg %p381
        $region58: #{deformable_decoder_layer.1} parent=11 // pred_check_branch
          %457 = sbr.rel (%p455) target = $region60
        $region59: #{deformable_decoder_layer.1} parent=11 // pred_region
          _
        $region60: #{deformable_decoder_layer.1} parent=11 // pred_fallthru
          _
      $region12: #{deformable_decoder_layer.1} parent=5 // pred_fallthru
        _
      %p458 = scmp.lt.s32.totalorder %s25, 2
      // Predicated region
      $region61: #{deformable_decoder_layer.1} parent=5 // pred_check
        %p459 = pneg %p458
      $region62: #{deformable_decoder_layer.1} parent=5 // pred_check_branch
        %461 = sbr.rel (%p459) target = $region64
      $region63: #{deformable_decoder_layer.1} parent=5 // pred_region
        // Predicated region
        $region65: #{deformable_decoder_layer.1} parent=63 // pred_check
          %p462 = pneg %p45
        $region66: #{deformable_decoder_layer.1} parent=63 // pred_check_branch
          %464 = sbr.rel (%p462) target = $region68
        $region67: #{deformable_decoder_layer.1} parent=63 // pred_region
          %p465 = scmp.lt.s32.totalorder %s25, 1
          %s466 = scalar_select %p465, %s25, 1
          %s467 = smul.addr %s466, 8
          %s468 = scalar_lea.vmem %s0, %s467
        $region68: #{deformable_decoder_layer.1} parent=63 // pred_fallthru
          _
        // Predicated region
        $region69: #{deformable_decoder_layer.1} parent=63 // pred_check
          %p469 = pneg %p71
        $region70: #{deformable_decoder_layer.1} parent=63 // pred_check_branch
          %471 = sbr.rel (%p469) target = $region72
        $region71: #{deformable_decoder_layer.1} parent=63 // pred_region
          %p472 = scmp.lt.s32.totalorder %s25, 1
          %s473 = scalar_select %p472, %s25, 1
          %s474 = smul.addr %s473, 8
          %s475 = scalar_lea.vmem %s1, %s474
        $region72: #{deformable_decoder_layer.1} parent=63 // pred_fallthru
          _
        // Predicated region
        $region73: #{deformable_decoder_layer.1} parent=63 // pred_check
          %p476 = pneg %p97
        $region74: #{deformable_decoder_layer.1} parent=63 // pred_check_branch
          %478 = sbr.rel (%p476) target = $region76
        $region75: #{deformable_decoder_layer.1} parent=63 // pred_region
          %p479 = scmp.lt.s32.totalorder %s25, 1
          %s480 = scalar_select %p479, %s25, 1
          %s481 = smul.addr %s480, 8
          %s482 = scalar_lea.vmem %s2, %s481
        $region76: #{deformable_decoder_layer.1} parent=63 // pred_fallthru
          _
        // Predicated region
        $region77: #{deformable_decoder_layer.1} parent=63 // pred_check
          %p483 = pneg %p123
        $region78: #{deformable_decoder_layer.1} parent=63 // pred_check_branch
          %485 = sbr.rel (%p483) target = $region80
        $region79: #{deformable_decoder_layer.1} parent=63 // pred_region
          %p486 = scmp.lt.s32.totalorder %s25, 1
          %s487 = scalar_select %p486, %s25, 1
          %s488 = smul.addr %s487, 10
          %s489 = smul.addr %s488, 8
          %s490 = scalar_lea.vmem %s3, %s489
        $region80: #{deformable_decoder_layer.1} parent=63 // pred_fallthru
          _
      $region64: #{deformable_decoder_layer.1} parent=5 // pred_fallthru
        _
      %p491 = scmp.le.s32.totalorder 1, %s25
      %p492 = scmp.lt.s32.totalorder %s25, 3
      %p493 = pnand %p491, %p492
      %p494 = pneg %p493
      // Predicated region
      $region81: #{deformable_decoder_layer.1} parent=5 // pred_check
        _
      $region82: #{deformable_decoder_layer.1} parent=5 // pred_check_branch
        %496 = sbr.rel (%p493) target = $region84
      $region83: #{deformable_decoder_layer.1} parent=5 // pred_region
        %s497 = ssub.s32 %s25, 1
        %p498 = scmp.lt.s32.totalorder %s30, 1
        %s499 = scalar_select %p498, %s30, 1
        %s500 = smul.addr %s499, 8
        %s501 = scalar_lea.vmem %s0, %s500
        %p502 = pneg %p51
        %p503 = pneg %p48
        %p504 = scmp.lt.s32.totalorder %s30, 1
        %s505 = scalar_select %p504, %s30, 1
        %s506 = smul.addr %s505, 8
        %s507 = scalar_lea.vmem %s1, %s506
        %p508 = pneg %p77
        %p509 = pneg %p74
        %p510 = scmp.lt.s32.totalorder %s30, 1
        %s511 = scalar_select %p510, %s30, 1
        %s512 = smul.addr %s511, 8
        %s513 = scalar_lea.vmem %s2, %s512
        %p514 = pneg %p103
        %p515 = pneg %p100
        %p516 = scmp.lt.s32.totalorder %s30, 1
        %s517 = scalar_select %p516, %s30, 1
        %s518 = smul.addr %s517, 10
        %s519 = smul.addr %s518, 8
        %s520 = scalar_lea.vmem %s3, %s519
        %p521 = pneg %p129
        %p522 = pneg %p126
        %p523 = pneg %p150
        %p524 = pneg %p147
        %p525 = pneg %p171
        %p526 = pneg %p168
        %p527 = pneg %p192
        %p528 = pneg %p189
        %p529 = pneg %p213
        %p530 = pneg %p210
        %p531 = pneg %p234
        %p532 = pneg %p231
        %p533 = pneg %p255
        %p534 = pneg %p252
        %p535 = pneg %p276
        %p536 = pneg %p273
        %p537 = pneg %p297
        %p538 = pneg %p294
        %p539 = pneg %p318
        %p540 = pneg %p315
        %p541 = pneg %p339
        %p542 = pneg %p336
        %p543 = pneg %p360
        %p544 = pneg %p357
        %p545 = pneg %p381
        %p546 = pneg %p378
        %p547 = pneg %p407
        %p548 = pneg %p404
        %s549 = sand.u32 %s394, 1
        %s550 = scalar_lea.sflag [#allocation3], %s549
        %s551 = sand.u32 %s394, 1
        %s552 = smul.addr %s551, 8
        %s553 = scalar_lea.vmem [#allocation2], %s552
        %p554 = scmp.lt.s32.totalorder %s30, 1
        %s555 = scalar_select %p554, %s30, 1
        %s556 = smul.addr %s555, 8
        %s557 = scalar_lea.vmem %s0, %s556
        %p558 = scmp.lt.s32.totalorder %s30, 1
        %s559 = scalar_select %p558, %s30, 1
        %s560 = smul.addr %s559, 8
        %s561 = scalar_lea.vmem %s1, %s560
        %p562 = scmp.lt.s32.totalorder %s30, 1
        %s563 = scalar_select %p562, %s30, 1
        %s564 = smul.addr %s563, 8
        %s565 = scalar_lea.vmem %s2, %s564
        %p566 = scmp.lt.s32.totalorder %s30, 1
        %s567 = scalar_select %p566, %s30, 1
        %s568 = smul.addr %s567, 10
        %s569 = smul.addr %s568, 8
        %s570 = scalar_lea.vmem %s3, %s569
        %v572 = vld [vmem:[%s557] sm:$0xff]
        %v573 = vld [vmem:[%s561] sm:$0xff]
        %v574 = vld [vmem:[%s15] sm:$0xff]
        %v575 = vld [vmem:[%s15 + $0x8] sm:$0x3]
        %v576 = vadd.f32 %v572, %v573
        %v577 = vpack.c.bf16 %v572, %v576
        %v578 = vld [vmem:[%s4] sm:$0xf]
        %v579 = vld [vmem:[%s4 + $0x4] sm:$0xf]
        %v580 = vld [vmem:[%s4 + $0x8] sm:$0xf]
        %v581 = vld [vmem:[%s4 + $0xc] sm:$0xf]
        %v582 = vld [vmem:[%s5] sm:$0x1]
        %v584 = vperm.slane %v582, 0
        %v590 = vunpack.c.l.b16 %v578
        %v591 = vunpack.c.l.b16 %v579
        %v592 = vunpack.c.l.b16 %v580
        %v593 = vunpack.c.l.b16 %v581
        %v594 = vpack.c.b16 %v591, %v590
        %v595 = vpack.c.b16 %v593, %v592
        %vm598 = vcmask 261120
        %v600 = vsel %vm598, %v577, 0
        %602 = vmatpush.bf16.msra.mxu0 0
        %603 = vmatpush.bf16.msra.mxu0 0
        %604 = vmatpush.bf16.msra.mxu0 0
        %605 = vmatpush.bf16.msra.mxu0 0
        %606 = vmatpush.bf16.msra.mxu0 0
        %607 = vmatpush.bf16.msra.mxu0 0
        %608 = vmatpush.bf16.msra.mxu0 %v595
        %609 = vmatpush.bf16.msra.mxu0 %v594
        %610 = vmatmul.bf16.gmra.mxu0 %v600
        %v611 = vpop.f32.mrf.mxu0
        %v612 = vadd.f32 %v584, %v611
        %v613 = vpop.f32.mrf.mxu0
        %v614 = vadd.f32 %v584, %v613
        %615 = vdwg.mxu0
        %v616 = vmul.f32 %v612, 0.35355338
        %v617 = vpack.c.bf16 %v616, %v616
        %v618 = vpack.c.bf16 %v612, %v612
        %v619 = vpack.c.bf16 %v614, %v614
        %621 = vrot.lane.b32.xlu0 %v618, 96
        %v622 = vpop.permute.xlu0 %621
        %vm623 = vcmask 64512
        %v625 = vsel %vm623, %v617, 0
        %v628 = vsel %vm623, %v622, 0
        %630 = vmatpush.bf16.xpose.msra.mxu0 0
        %631 = vmatpush.bf16.xpose.msra.mxu0 0
        %632 = vmatpush.bf16.xpose.msra.mxu0 0
        %633 = vmatpush.bf16.xpose.msra.mxu0 0
        %634 = vmatpush.bf16.xpose.msra.mxu0 0
        %635 = vmatpush.bf16.xpose.msra.mxu0 0
        %636 = vmatpush.bf16.xpose.msra.mxu0 0
        %637 = vmatpush.bf16.xpose.msra.mxu0 %v628
        %638 = vmatmul.bf16.gmra.mxu0 %v625
        %v639 = vpop.f32.mrf.mxu0
        %v640 = vadd.f32 0.0, %v639
        %v641 = vpop.f32.mrf.mxu0
        %642 = vdwg.mxu0
        %v643 = vsel %vm623, %v640, -inf
        %644 = vmax.xlane.f32.xlu0 %v643
        %v645 = vpop.xlane.xlu0 %644
        %v646 = vsub.f32 %v640, %v645
        %v647 = vmul.f32 %v646, 1.442695
        %v648 = vpow.pop %v647
        %v649 = vsel %vm623, %v648, 0.0
        %650 = vadd.xlane.f32.xlu0 %v649
        %v651 = vpop.xlane.xlu0 %650
        %v652 = vrcp.pop %v651
        %v653 = vmul.f32 %v648, %v652
        %v654 = vpack.c.bf16 %v653, %v653
        %656 = vrot.lane.b32.xlu0 %v619, 64
        %v657 = vpop.permute.xlu0 %656
        %v659 = vsel %vm623, %v654, 0
        %vm661 = vcmask 1043456
        %v663 = vsel %vm661, %v657, 0
        %665 = vmatpush.bf16.msra.mxu0 0
        %666 = vmatpush.bf16.msra.mxu0 0
        %667 = vmatpush.bf16.msra.mxu0 0
        %668 = vmatpush.bf16.msra.mxu0 0
        %669 = vmatpush.bf16.msra.mxu0 0
        %670 = vmatpush.bf16.msra.mxu0 0
        %671 = vmatpush.bf16.msra.mxu0 0
        %672 = vmatpush.bf16.msra.mxu0 %v663
        %673 = vmatmul.bf16.gmra.mxu0 %v659
        %v674 = vpop.f32.mrf.mxu0
        %v675 = vadd.f32 0.0, %v674
        %v676 = vpop.f32.mrf.mxu0
        %677 = vdwg.mxu0
        %679 = vrot.lane.b32.xlu0 %v617, 120
        %v680 = vpop.permute.xlu0 %679
        %681 = vrot.lane.b32.xlu0 %v618, 88
        %v682 = vpop.permute.xlu0 %681
        %v684 = vsel %vm623, %v680, 0
        %v687 = vsel %vm623, %v682, 0
        %689 = vmatpush.bf16.xpose.msra.mxu0 0
        %690 = vmatpush.bf16.xpose.msra.mxu0 0
        %691 = vmatpush.bf16.xpose.msra.mxu0 0
        %692 = vmatpush.bf16.xpose.msra.mxu0 0
        %693 = vmatpush.bf16.xpose.msra.mxu0 0
        %694 = vmatpush.bf16.xpose.msra.mxu0 0
        %695 = vmatpush.bf16.xpose.msra.mxu0 0
        %696 = vmatpush.bf16.xpose.msra.mxu0 %v687
        %697 = vmatmul.bf16.gmra.mxu0 %v684
        %v698 = vpop.f32.mrf.mxu0
        %v699 = vadd.f32 0.0, %v698
        %v700 = vpop.f32.mrf.mxu0
        %701 = vdwg.mxu0
        %v702 = vsel %vm623, %v699, -inf
        %703 = vmax.xlane.f32.xlu0 %v702
        %v704 = vpop.xlane.xlu0 %703
        %v705 = vsub.f32 %v699, %v704
        %v706 = vmul.f32 %v705, 1.442695
        %v707 = vpow.pop %v706
        %v708 = vsel %vm623, %v707, 0.0
        %709 = vadd.xlane.f32.xlu0 %v708
        %v710 = vpop.xlane.xlu0 %709
        %v711 = vrcp.pop %v710
        %v712 = vmul.f32 %v707, %v711
        %v713 = vpack.c.bf16 %v712, %v712
        %714 = vrot.lane.b32.xlu0 %v619, 56
        %v715 = vpop.permute.xlu0 %714
        %v717 = vsel %vm623, %v713, 0
        %v720 = vsel %vm661, %v715, 0
        %722 = vmatpush.bf16.msra.mxu0 0
        %723 = vmatpush.bf16.msra.mxu0 0
        %724 = vmatpush.bf16.msra.mxu0 0
        %725 = vmatpush.bf16.msra.mxu0 0
        %726 = vmatpush.bf16.msra.mxu0 0
        %727 = vmatpush.bf16.msra.mxu0 0
        %728 = vmatpush.bf16.msra.mxu0 0
        %729 = vmatpush.bf16.msra.mxu0 %v720
        %730 = vmatmul.bf16.gmra.mxu0 %v717
        %v731 = vpop.f32.mrf.mxu0
        %v732 = vadd.f32 0.0, %v731
        %v733 = vpop.f32.mrf.mxu0
        %734 = vdwg.mxu0
        %735 = vrot.lane.b32.xlu0 %v617, 112
        %v736 = vpop.permute.xlu0 %735
        %737 = vrot.lane.b32.xlu0 %v618, 80
        %v738 = vpop.permute.xlu0 %737
        %v740 = vsel %vm623, %v736, 0
        %v743 = vsel %vm623, %v738, 0
        %745 = vmatpush.bf16.xpose.msra.mxu0 0
        %746 = vmatpush.bf16.xpose.msra.mxu0 0
        %747 = vmatpush.bf16.xpose.msra.mxu0 0
        %748 = vmatpush.bf16.xpose.msra.mxu0 0
        %749 = vmatpush.bf16.xpose.msra.mxu0 0
        %750 = vmatpush.bf16.xpose.msra.mxu0 0
        %751 = vmatpush.bf16.xpose.msra.mxu0 0
        %752 = vmatpush.bf16.xpose.msra.mxu0 %v743
        %753 = vmatmul.bf16.gmra.mxu0 %v740
        %v754 = vpop.f32.mrf.mxu0
        %v755 = vadd.f32 0.0, %v754
        %v756 = vpop.f32.mrf.mxu0
        %757 = vdwg.mxu0
        %v758 = vsel %vm623, %v755, -inf
        %759 = vmax.xlane.f32.xlu0 %v758
        %v760 = vpop.xlane.xlu0 %759
        %v761 = vsub.f32 %v755, %v760
        %v762 = vmul.f32 %v761, 1.442695
        %v763 = vpow.pop %v762
        %v764 = vsel %vm623, %v763, 0.0
        %765 = vadd.xlane.f32.xlu0 %v764
        %v766 = vpop.xlane.xlu0 %765
        %v767 = vrcp.pop %v766
        %v768 = vmul.f32 %v763, %v767
        %v769 = vpack.c.bf16 %v768, %v768
        %770 = vrot.lane.b32.xlu0 %v619, 48
        %v771 = vpop.permute.xlu0 %770
        %v773 = vsel %vm623, %v769, 0
        %v776 = vsel %vm661, %v771, 0
        %778 = vmatpush.bf16.msra.mxu0 0
        %779 = vmatpush.bf16.msra.mxu0 0
        %780 = vmatpush.bf16.msra.mxu0 0
        %781 = vmatpush.bf16.msra.mxu0 0
        %782 = vmatpush.bf16.msra.mxu0 0
        %783 = vmatpush.bf16.msra.mxu0 0
        %784 = vmatpush.bf16.msra.mxu0 0
        %785 = vmatpush.bf16.msra.mxu0 %v776
        %786 = vmatmul.bf16.gmra.mxu0 %v773
        %v787 = vpop.f32.mrf.mxu0
        %v788 = vadd.f32 0.0, %v787
        %v789 = vpop.f32.mrf.mxu0
        %790 = vdwg.mxu0
        %791 = vrot.lane.b32.xlu0 %v617, 104
        %v792 = vpop.permute.xlu0 %791
        %793 = vrot.lane.b32.xlu0 %v618, 72
        %v794 = vpop.permute.xlu0 %793
        %v796 = vsel %vm623, %v792, 0
        %v799 = vsel %vm623, %v794, 0
        %801 = vmatpush.bf16.xpose.msra.mxu0 0
        %802 = vmatpush.bf16.xpose.msra.mxu0 0
        %803 = vmatpush.bf16.xpose.msra.mxu0 0
        %804 = vmatpush.bf16.xpose.msra.mxu0 0
        %805 = vmatpush.bf16.xpose.msra.mxu0 0
        %806 = vmatpush.bf16.xpose.msra.mxu0 0
        %807 = vmatpush.bf16.xpose.msra.mxu0 0
        %808 = vmatpush.bf16.xpose.msra.mxu0 %v799
        %809 = vmatmul.bf16.gmra.mxu0 %v796
        %v810 = vpop.f32.mrf.mxu0
        %v811 = vadd.f32 0.0, %v810
        %v812 = vpop.f32.mrf.mxu0
        %813 = vdwg.mxu0
        %v814 = vsel %vm623, %v811, -inf
        %815 = vmax.xlane.f32.xlu0 %v814
        %v816 = vpop.xlane.xlu0 %815
        %v817 = vsub.f32 %v811, %v816
        %v818 = vmul.f32 %v817, 1.442695
        %v819 = vpow.pop %v818
        %v820 = vsel %vm623, %v819, 0.0
        %821 = vadd.xlane.f32.xlu0 %v820
        %v822 = vpop.xlane.xlu0 %821
        %v823 = vrcp.pop %v822
        %v824 = vmul.f32 %v819, %v823
        %v825 = vpack.c.bf16 %v824, %v824
        %826 = vrot.lane.b32.xlu0 %v619, 40
        %v827 = vpop.permute.xlu0 %826
        %v829 = vsel %vm623, %v825, 0
        %v832 = vsel %vm661, %v827, 0
        %834 = vmatpush.bf16.msra.mxu0 0
        %835 = vmatpush.bf16.msra.mxu0 0
        %836 = vmatpush.bf16.msra.mxu0 0
        %837 = vmatpush.bf16.msra.mxu0 0
        %838 = vmatpush.bf16.msra.mxu0 0
        %839 = vmatpush.bf16.msra.mxu0 0
        %840 = vmatpush.bf16.msra.mxu0 0
        %841 = vmatpush.bf16.msra.mxu0 %v832
        %842 = vmatmul.bf16.gmra.mxu0 %v829
        %v843 = vpop.f32.mrf.mxu0
        %v844 = vadd.f32 0.0, %v843
        %v845 = vpop.f32.mrf.mxu0
        %846 = vdwg.mxu0
        %848 = vrot.lane.b32.xlu0 %v732, 8
        %v849 = vpop.permute.xlu0 %848
        %852 = vrot.lane.b32.xlu0 %v788, 16
        %v853 = vpop.permute.xlu0 %852
        %856 = vrot.lane.b32.xlu0 %v844, 24
        %v857 = vpop.permute.xlu0 %856
        %v859 = vsel %vm623, %v675, %v849
        %vm860 = vcmask 130048
        %v861 = vsel %vm860, %v859, %v853
        %vm862 = vcmask 195584
        %v863 = vsel %vm862, %v861, %v857
        %v864 = vpack.c.bf16 %v863, %v863
        %v865 = vld [vmem:[%s6] sm:$0xf]
        %v866 = vld [vmem:[%s6 + $0x4] sm:$0xf]
        %v867 = vld [vmem:[%s6 + $0x8] sm:$0xf]
        %v868 = vld [vmem:[%s6 + $0xc] sm:$0xf]
        %v869 = vperm.slane %v574, 0
        %v874 = vunpack.c.l.b16 %v865
        %v875 = vunpack.c.l.b16 %v866
        %v876 = vunpack.c.l.b16 %v867
        %v877 = vunpack.c.l.b16 %v868
        %v878 = vpack.c.b16 %v875, %v874
        %v879 = vpack.c.b16 %v877, %v876
        %v883 = vsel %vm598, %v864, 0
        %885 = vmatpush.bf16.msra.mxu0 0
        %886 = vmatpush.bf16.msra.mxu0 0
        %887 = vmatpush.bf16.msra.mxu0 0
        %888 = vmatpush.bf16.msra.mxu0 0
        %889 = vmatpush.bf16.msra.mxu0 0
        %890 = vmatpush.bf16.msra.mxu0 0
        %891 = vmatpush.bf16.msra.mxu0 %v879
        %892 = vmatpush.bf16.msra.mxu0 %v878
        %893 = vmatmul.bf16.gmra.mxu0 %v883
        %v894 = vpop.f32.mrf.mxu0
        %v895 = vadd.f32 %v869, %v894
        %v896 = vpop.f32.mrf.mxu0
        %897 = vdwg.mxu0
        %v898 = vadd.f32 %v572, %v895
        %v899 = vsel %vm598, %v898, 0.0
        %900 = vadd.xlane.f32.xlu0 %v899
        %v901 = vpop.xlane.xlu0 %900
        %v902 = vrcp.pop 32.0
        %v903 = vmul.f32 32.0, %v902
        %v904 = vsub.f32 1.0, %v903
        %v905 = vmul.f32 %v902, %v904
        %v906 = vadd.f32 %v902, %v905
        %vm907 = vweird.f32 %v902
        %v908 = vsel %vm907, %v902, %v906
        %v909 = vmul.f32 %v901, %v908
        %v910 = vsub.f32 %v898, %v909
        %v911 = vmul.f32 %v910, %v910
        %v912 = vsel %vm598, %v911, 0.0
        %913 = vadd.xlane.f32.xlu0 %v912
        %v914 = vpop.xlane.xlu0 %913
        %v915 = vmul.f32 %v914, %v908
        %v916 = vadd.f32 %v915, 1e-05
        %v917 = vrsqrt.pop %v916
        %v918 = vmul.f32 %v917, %v916
        %v919 = vmul.f32 %v918, %v917
        %v920 = vmul.f32 0.5, %v919
        %v921 = vsub.f32 1.5, %v920
        %v922 = vmul.f32 %v917, %v921
        %vm923 = vweird.f32 %v916
        %vm924 = vweird.f32 %v917
        %vm925 = vmor %vm923, %vm924
        %v926 = vsel %vm925, %v917, %v922
        %v927 = vmul.f32 %v910, %v926
        %v928 = vperm.slane %v574, 1
        %v929 = vmul.f32 %v927, %v928
        %v930 = vperm.slane %v574, 2
        %v931 = vadd.f32 %v929, %v930
        %v932 = vadd.f32 %v931, %v573
        %v933 = vld [vmem:[%s570] sm:$0xff]
        %v934 = vld [vmem:[%s570 + $0x8] sm:$0xff]
        %v935 = vld [vmem:[%s570 + $0x10] sm:$0xff]
        %v936 = vld [vmem:[%s570 + $0x18] sm:$0xff]
        %v937 = vld [vmem:[%s570 + $0x20] sm:$0xff]
        %v938 = vld [vmem:[%s570 + $0x28] sm:$0xff]
        %v939 = vld [vmem:[%s570 + $0x30] sm:$0xff]
        %v940 = vld [vmem:[%s570 + $0x38] sm:$0xff]
        %v941 = vld [vmem:[%s570 + $0x40] sm:$0xff]
        %v942 = vld [vmem:[%s570 + $0x48] sm:$0xff]
        %v943 = vpack.c.bf16 %v934, %v933
        %v944 = vpack.c.bf16 %v936, %v935
        %v945 = vpack.c.bf16 %v938, %v937
        %v946 = vpack.c.bf16 %v940, %v939
        %v947 = vpack.c.bf16 %v942, %v941
        %v948 = vld [vmem:[%s7] sm:$0xf]
        %v949 = vld [vmem:[%s7 + $0x4] sm:$0xf]
        %v950 = vld [vmem:[%s7 + $0x8] sm:$0xf]
        %v951 = vld [vmem:[%s7 + $0xc] sm:$0xf]
        %v952 = vperm.slane %v574, 3
        %v957 = vunpack.c.l.b16 %v948
        %v958 = vunpack.c.l.b16 %v949
        %v959 = vunpack.c.l.b16 %v950
        %v960 = vunpack.c.l.b16 %v951
        %v961 = vpack.c.b16 %v958, %v957
        %v962 = vpack.c.b16 %v960, %v959
        %v966 = vsel %vm598, %v943, 0
        %v969 = vsel %vm598, %v944, 0
        %v972 = vsel %vm598, %v945, 0
        %v975 = vsel %vm598, %v946, 0
        %v978 = vsel %vm598, %v947, 0
        %980 = vmatpush.bf16.msra.mxu0 0
        %981 = vmatpush.bf16.msra.mxu0 0
        %982 = vmatpush.bf16.msra.mxu0 0
        %983 = vmatpush.bf16.msra.mxu0 0
        %984 = vmatpush.bf16.msra.mxu0 0
        %985 = vmatpush.bf16.msra.mxu0 0
        %986 = vmatpush.bf16.msra.mxu0 %v962
        %987 = vmatpush.bf16.msra.mxu0 %v961
        %988 = vmatmul.bf16.gmra.mxu0 %v966
        %v989 = vpop.f32.mrf.mxu0
        %v990 = vadd.f32 %v952, %v989
        %v991 = vpop.f32.mrf.mxu0
        %v992 = vadd.f32 %v952, %v991
        %993 = vmatmul.bf16.gmra.mxu0 %v969
        %v994 = vpop.f32.mrf.mxu0
        %v995 = vadd.f32 %v952, %v994
        %v996 = vpop.f32.mrf.mxu0
        %v997 = vadd.f32 %v952, %v996
        %998 = vmatmul.bf16.gmra.mxu0 %v972
        %v999 = vpop.f32.mrf.mxu0
        %v1000 = vadd.f32 %v952, %v999
        %v1001 = vpop.f32.mrf.mxu0
        %v1002 = vadd.f32 %v952, %v1001
        %1003 = vmatmul.bf16.gmra.mxu0 %v975
        %v1004 = vpop.f32.mrf.mxu0
        %v1005 = vadd.f32 %v952, %v1004
        %v1006 = vpop.f32.mrf.mxu0
        %v1007 = vadd.f32 %v952, %v1006
        %1008 = vmatmul.bf16.gmra.mxu0 %v978
        %v1009 = vpop.f32.mrf.mxu0
        %v1010 = vadd.f32 %v952, %v1009
        %v1011 = vpop.f32.mrf.mxu0
        %v1012 = vadd.f32 %v952, %v1011
        %1013 = vdwg.mxu0
        %v1014 = vpack.c.bf16 %v990, %v990
        %v1015 = vpack.c.bf16 %v992, %v992
        %v1016 = vpack.c.bf16 %v995, %v995
        %v1017 = vpack.c.bf16 %v997, %v997
        %v1018 = vpack.c.bf16 %v1000, %v1000
        %v1019 = vpack.c.bf16 %v1002, %v1002
        %v1020 = vpack.c.bf16 %v1005, %v1005
        %v1021 = vpack.c.bf16 %v1007, %v1007
        %v1022 = vpack.c.bf16 %v1010, %v1010
        %v1023 = vpack.c.bf16 %v1012, %v1012
        %v1024 = vpack.c.bf16 %v932, %v932
        %v1025 = vld [vmem:[%s8] sm:$0xf]
        %v1026 = vld [vmem:[%s8 + $0x4] sm:$0xf]
        %v1027 = vld [vmem:[%s8 + $0x8] sm:$0xf]
        %v1028 = vld [vmem:[%s8 + $0xc] sm:$0xf]
        %v1029 = vld [vmem:[%s9] sm:$0x1]
        %v1031 = vperm.slane %v1029, 0
        %v1037 = vunpack.c.l.b16 %v1025
        %v1038 = vunpack.c.l.b16 %v1026
        %v1039 = vunpack.c.l.b16 %v1027
        %v1040 = vunpack.c.l.b16 %v1028
        %v1041 = vpack.c.b16 %v1038, %v1037
        %v1042 = vpack.c.b16 %v1040, %v1039
        %v1046 = vsel %vm598, %v1024, 0
        %1048 = vmatpush.bf16.msra.mxu0 0
        %1049 = vmatpush.bf16.msra.mxu0 0
        %1050 = vmatpush.bf16.msra.mxu0 0
        %1051 = vmatpush.bf16.msra.mxu0 0
        %1052 = vmatpush.bf16.msra.mxu0 0
        %1053 = vmatpush.bf16.msra.mxu0 0
        %1054 = vmatpush.bf16.msra.mxu0 %v1042
        %1055 = vmatpush.bf16.msra.mxu0 %v1041
        %1056 = vmatmul.bf16.gmra.mxu0 %v1046
        %v1057 = vpop.f32.mrf.mxu0
        %v1058 = vadd.f32 %v1031, %v1057
        %v1059 = vpop.f32.mrf.mxu0
        %1060 = vdwg.mxu0
        %v1061 = vld [vmem:[%s565] sm:$0xff]
        %v1062 = vld [vmem:[%s14] sm:$0x7]
        %v1063 = vperm.slane %v1062, 0
        %v1064 = vmul.f32 %v1061, %v1063
        %v1065 = vadd.f32 %v1064, %v1058
        %v1066 = vsub.f32 %v1065, 0.5
        %v1067 = vperm.slane %v1062, 1
        %1069 = vrot.lane.b32.xlu0 %v1067, 16
        %v1070 = vpop.permute.xlu0 %1069
        %v1072 = vmul.f32 %v1061, %v1070
        %v1073 = vadd.f32 %v1072, %v1058
        %v1074 = vsub.f32 %v1073, 0.5
        %v1075 = vfloor.f32 %v1066
        %v1076 = vfloor.f32 %v1074
        %v1077 = vsub.f32 %v1066, %v1075
        %v1078 = vsub.f32 %v1074, %v1076
        %v1079 = vadd.f32 %v1075, 0.0
        %v1080 = vadd.f32 %v1076, 0.0
        %v1081 = vsub.f32 1.0, %v1077
        %v1082 = vsub.f32 1.0, %v1078
        %vm1083 = vcmp.ge.f32.partialorder %v1079, 0.0
        %v1084 = vsub.f32 %v1062, 1.0
        %v1085 = vperm.slane %v1084, 0
        %vm1086 = vcmp.le.f32.partialorder %v1079, %v1085
        %vm1087 = vmand %vm1083, %vm1086
        %vm1088 = vcmp.ge.f32.partialorder %v1080, 0.0
        %v1089 = vsel %vm1088, 1, 0
        %1090 = vrot.lane.b32.xlu0 %v1089, 112
        %v1091 = vpop.permute.xlu0 %1090
        %vm1092 = vcmp.ne.s32.totalorder %v1091, 0
        %vm1093 = vmand %vm1087, %vm1092
        %v1094 = vperm.slane %v1084, 1
        %1096 = vrot.lane.b32.xlu0 %v1094, 16
        %v1097 = vpop.permute.xlu0 %1096
        %vm1099 = vcmp.le.f32.partialorder %v1080, %v1097
        %v1100 = vsel %vm1099, 1, 0
        %1101 = vrot.lane.b32.xlu0 %v1100, 112
        %v1102 = vpop.permute.xlu0 %1101
        %vm1103 = vcmp.ne.s32.totalorder %v1102, 0
        %vm1104 = vmand %vm1093, %vm1103
        %1106 = vrot.lane.b32.xlu0 %v1082, 112
        %v1107 = vpop.permute.xlu0 %1106
        %v1109 = vmul.f32 %v1081, %v1107
        %v1110 = vsel %vm1104, %v1109, 0.0
        %1112 = vrot.lane.b32.xlu0 %v1063, 16
        %v1113 = vpop.permute.xlu0 %1112
        %v1115 = vmul.f32 %v1080, %v1113
        %v1116 = vperm.slane %v1062, 2
        %1118 = vrot.lane.b32.xlu0 %v1115, 112
        %v1119 = vpop.permute.xlu0 %1118
        %v1121 = vadd.f32 %v1116, %v1119
        %v1122 = vadd.f32 %v1121, %v1079
        %v1123 = vmax.f32 %v1122, 0.0
        %v1124 = vmin.f32 %v1123, 79.0
        %v1125 = vcvt.f32.s32.to.zero.pseudo %v1124
        %v1126 = vadd.f32 %v1075, 1.0
        %vm1127 = vcmp.ge.f32.partialorder %v1126, 0.0
        %vm1128 = vcmp.le.f32.partialorder %v1126, %v1085
        %vm1129 = vmand %vm1127, %vm1128
        %vm1130 = vmand %vm1129, %vm1092
        %vm1131 = vmand %vm1130, %vm1103
        %v1132 = vmul.f32 %v1077, %v1107
        %v1133 = vsel %vm1131, %v1132, 0.0
        %v1134 = vadd.f32 %v1121, %v1126
        %v1135 = vmax.f32 %v1134, 0.0
        %v1136 = vmin.f32 %v1135, 79.0
        %v1137 = vcvt.f32.s32.to.zero.pseudo %v1136
        %v1138 = vadd.f32 %v1076, 1.0
        %vm1139 = vcmp.ge.f32.partialorder %v1138, 0.0
        %v1140 = vsel %vm1139, 1, 0
        %1141 = vrot.lane.b32.xlu0 %v1140, 112
        %v1142 = vpop.permute.xlu0 %1141
        %vm1143 = vcmp.ne.s32.totalorder %v1142, 0
        %vm1144 = vmand %vm1087, %vm1143
        %vm1145 = vcmp.le.f32.partialorder %v1138, %v1097
        %v1146 = vsel %vm1145, 1, 0
        %1147 = vrot.lane.b32.xlu0 %v1146, 112
        %v1148 = vpop.permute.xlu0 %1147
        %vm1149 = vcmp.ne.s32.totalorder %v1148, 0
        %vm1150 = vmand %vm1144, %vm1149
        %1152 = vrot.lane.b32.xlu0 %v1078, 112
        %v1153 = vpop.permute.xlu0 %1152
        %v1155 = vmul.f32 %v1081, %v1153
        %v1156 = vsel %vm1150, %v1155, 0.0
        %v1157 = vmul.f32 %v1138, %v1113
        %1159 = vrot.lane.b32.xlu0 %v1157, 112
        %v1160 = vpop.permute.xlu0 %1159
        %v1162 = vadd.f32 %v1116, %v1160
        %v1163 = vadd.f32 %v1162, %v1079
        %v1164 = vmax.f32 %v1163, 0.0
        %v1165 = vmin.f32 %v1164, 79.0
        %v1166 = vcvt.f32.s32.to.zero.pseudo %v1165
        %vm1167 = vmand %vm1129, %vm1143
        %vm1168 = vmand %vm1167, %vm1149
        %v1169 = vmul.f32 %v1077, %v1153
        %v1170 = vsel %vm1168, %v1169, 0.0
        %v1171 = vadd.f32 %v1162, %v1126
        %v1172 = vmax.f32 %v1171, 0.0
        %v1173 = vmin.f32 %v1172, 79.0
        %v1174 = vcvt.f32.s32.to.zero.pseudo %v1173
        %v1175 = vlaneseq
        %v1176 = vand.u32 %v1175, 127
        %vm1177 = vcmask 294144
        %v1178 = vsel %vm1177, %v1058, -inf
        %1179 = vmax.xlane.f32.xlu0 %v1178
        %v1180 = vpop.xlane.xlu0 %1179
        %v1181 = vsub.f32 %v1058, %v1180
        %v1182 = vmul.f32 %v1181, 1.442695
        %v1183 = vpow.pop %v1182
        %1185 = vrot.lane.b32.xlu0 %v1183, 96
        %v1186 = vpop.permute.xlu0 %1185
        %vm1188 = vcmask 31744
        %v1189 = vsel %vm1188, %v1186, 0.0
        %1190 = vadd.xlane.f32.xlu0 %v1189
        %v1191 = vpop.xlane.xlu0 %1190
        %v1192 = vrcp.pop %v1191
        %v1193 = vmul.f32 %v1183, %v1192
        %1195 = vrot.lane.b32.xlu0 %v1110, 32
        %v1196 = vpop.permute.xlu0 %1195
        %v1198 = vmul.f32 %v1193, %v1196
        %1199 = vset.pattern.permute.xlu0 0
        %1200 = vperm.xlu0 %1199, %v1125
        %v1201 = vpop.permute.xlu0 %1200
        %vm1202 = vcmp.eq.s32.totalorder %v1176, %v1201
        %1204 = vset.pattern.permute.xlu0 32
        %1205 = vperm.xlu0 %1204, %v1198
        %v1206 = vpop.permute.xlu0 %1205
        %v1208 = vsel %vm1202, %v1206, 0.0
        %v1209 = vadd.f32 %v1208, 0.0
        %1210 = vset.pattern.permute.xlu0 1
        %1211 = vperm.xlu0 %1210, %v1125
        %v1212 = vpop.permute.xlu0 %1211
        %vm1213 = vcmp.eq.s32.totalorder %v1176, %v1212
        %1214 = vset.pattern.permute.xlu0 33
        %1215 = vperm.xlu0 %1214, %v1198
        %v1216 = vpop.permute.xlu0 %1215
        %v1218 = vsel %vm1213, %v1216, 0.0
        %v1219 = vadd.f32 %v1209, %v1218
        %1220 = vset.pattern.permute.xlu0 2
        %1221 = vperm.xlu0 %1220, %v1125
        %v1222 = vpop.permute.xlu0 %1221
        %vm1223 = vcmp.eq.s32.totalorder %v1176, %v1222
        %1224 = vset.pattern.permute.xlu0 34
        %1225 = vperm.xlu0 %1224, %v1198
        %v1226 = vpop.permute.xlu0 %1225
        %v1228 = vsel %vm1223, %v1226, 0.0
        %v1229 = vadd.f32 %v1219, %v1228
        %1230 = vset.pattern.permute.xlu0 3
        %1231 = vperm.xlu0 %1230, %v1125
        %v1232 = vpop.permute.xlu0 %1231
        %vm1233 = vcmp.eq.s32.totalorder %v1176, %v1232
        %1234 = vset.pattern.permute.xlu0 35
        %1235 = vperm.xlu0 %1234, %v1198
        %v1236 = vpop.permute.xlu0 %1235
        %v1238 = vsel %vm1233, %v1236, 0.0
        %v1239 = vadd.f32 %v1229, %v1238
        %1241 = vrot.lane.b32.xlu0 %v1133, 32
        %v1242 = vpop.permute.xlu0 %1241
        %v1244 = vmul.f32 %v1193, %v1242
        %1245 = vset.pattern.permute.xlu0 0
        %1246 = vperm.xlu0 %1245, %v1137
        %v1247 = vpop.permute.xlu0 %1246
        %vm1248 = vcmp.eq.s32.totalorder %v1176, %v1247
        %1250 = vset.pattern.permute.xlu0 32
        %1251 = vperm.xlu0 %1250, %v1244
        %v1252 = vpop.permute.xlu0 %1251
        %v1254 = vsel %vm1248, %v1252, 0.0
        %v1255 = vadd.f32 %v1239, %v1254
        %1256 = vset.pattern.permute.xlu0 1
        %1257 = vperm.xlu0 %1256, %v1137
        %v1258 = vpop.permute.xlu0 %1257
        %vm1259 = vcmp.eq.s32.totalorder %v1176, %v1258
        %1260 = vset.pattern.permute.xlu0 33
        %1261 = vperm.xlu0 %1260, %v1244
        %v1262 = vpop.permute.xlu0 %1261
        %v1264 = vsel %vm1259, %v1262, 0.0
        %v1265 = vadd.f32 %v1255, %v1264
        %1266 = vset.pattern.permute.xlu0 2
        %1267 = vperm.xlu0 %1266, %v1137
        %v1268 = vpop.permute.xlu0 %1267
        %vm1269 = vcmp.eq.s32.totalorder %v1176, %v1268
        %1270 = vset.pattern.permute.xlu0 34
        %1271 = vperm.xlu0 %1270, %v1244
        %v1272 = vpop.permute.xlu0 %1271
        %v1274 = vsel %vm1269, %v1272, 0.0
        %v1275 = vadd.f32 %v1265, %v1274
        %1276 = vset.pattern.permute.xlu0 3
        %1277 = vperm.xlu0 %1276, %v1137
        %v1278 = vpop.permute.xlu0 %1277
        %vm1279 = vcmp.eq.s32.totalorder %v1176, %v1278
        %1280 = vset.pattern.permute.xlu0 35
        %1281 = vperm.xlu0 %1280, %v1244
        %v1282 = vpop.permute.xlu0 %1281
        %v1284 = vsel %vm1279, %v1282, 0.0
        %v1285 = vadd.f32 %v1275, %v1284
        %1287 = vrot.lane.b32.xlu0 %v1156, 32
        %v1288 = vpop.permute.xlu0 %1287
        %v1290 = vmul.f32 %v1193, %v1288
        %1291 = vset.pattern.permute.xlu0 0
        %1292 = vperm.xlu0 %1291, %v1166
        %v1293 = vpop.permute.xlu0 %1292
        %vm1294 = vcmp.eq.s32.totalorder %v1176, %v1293
        %1296 = vset.pattern.permute.xlu0 32
        %1297 = vperm.xlu0 %1296, %v1290
        %v1298 = vpop.permute.xlu0 %1297
        %v1300 = vsel %vm1294, %v1298, 0.0
        %v1301 = vadd.f32 %v1285, %v1300
        %1302 = vset.pattern.permute.xlu0 1
        %1303 = vperm.xlu0 %1302, %v1166
        %v1304 = vpop.permute.xlu0 %1303
        %vm1305 = vcmp.eq.s32.totalorder %v1176, %v1304
        %1306 = vset.pattern.permute.xlu0 33
        %1307 = vperm.xlu0 %1306, %v1290
        %v1308 = vpop.permute.xlu0 %1307
        %v1310 = vsel %vm1305, %v1308, 0.0
        %v1311 = vadd.f32 %v1301, %v1310
        %1312 = vset.pattern.permute.xlu0 2
        %1313 = vperm.xlu0 %1312, %v1166
        %v1314 = vpop.permute.xlu0 %1313
        %vm1315 = vcmp.eq.s32.totalorder %v1176, %v1314
        %1316 = vset.pattern.permute.xlu0 34
        %1317 = vperm.xlu0 %1316, %v1290
        %v1318 = vpop.permute.xlu0 %1317
        %v1320 = vsel %vm1315, %v1318, 0.0
        %v1321 = vadd.f32 %v1311, %v1320
        %1322 = vset.pattern.permute.xlu0 3
        %1323 = vperm.xlu0 %1322, %v1166
        %v1324 = vpop.permute.xlu0 %1323
        %vm1325 = vcmp.eq.s32.totalorder %v1176, %v1324
        %1326 = vset.pattern.permute.xlu0 35
        %1327 = vperm.xlu0 %1326, %v1290
        %v1328 = vpop.permute.xlu0 %1327
        %v1330 = vsel %vm1325, %v1328, 0.0
        %v1331 = vadd.f32 %v1321, %v1330
        %1333 = vrot.lane.b32.xlu0 %v1170, 32
        %v1334 = vpop.permute.xlu0 %1333
        %v1336 = vmul.f32 %v1193, %v1334
        %1337 = vset.pattern.permute.xlu0 0
        %1338 = vperm.xlu0 %1337, %v1174
        %v1339 = vpop.permute.xlu0 %1338
        %vm1340 = vcmp.eq.s32.totalorder %v1176, %v1339
        %1342 = vset.pattern.permute.xlu0 32
        %1343 = vperm.xlu0 %1342, %v1336
        %v1344 = vpop.permute.xlu0 %1343
        %v1346 = vsel %vm1340, %v1344, 0.0
        %v1347 = vadd.f32 %v1331, %v1346
        %1348 = vset.pattern.permute.xlu0 1
        %1349 = vperm.xlu0 %1348, %v1174
        %v1350 = vpop.permute.xlu0 %1349
        %vm1351 = vcmp.eq.s32.totalorder %v1176, %v1350
        %1352 = vset.pattern.permute.xlu0 33
        %1353 = vperm.xlu0 %1352, %v1336
        %v1354 = vpop.permute.xlu0 %1353
        %v1356 = vsel %vm1351, %v1354, 0.0
        %v1357 = vadd.f32 %v1347, %v1356
        %1358 = vset.pattern.permute.xlu0 2
        %1359 = vperm.xlu0 %1358, %v1174
        %v1360 = vpop.permute.xlu0 %1359
        %vm1361 = vcmp.eq.s32.totalorder %v1176, %v1360
        %1362 = vset.pattern.permute.xlu0 34
        %1363 = vperm.xlu0 %1362, %v1336
        %v1364 = vpop.permute.xlu0 %1363
        %v1366 = vsel %vm1361, %v1364, 0.0
        %v1367 = vadd.f32 %v1357, %v1366
        %1368 = vset.pattern.permute.xlu0 3
        %1369 = vperm.xlu0 %1368, %v1174
        %v1370 = vpop.permute.xlu0 %1369
        %vm1371 = vcmp.eq.s32.totalorder %v1176, %v1370
        %1372 = vset.pattern.permute.xlu0 35
        %1373 = vperm.xlu0 %1372, %v1336
        %v1374 = vpop.permute.xlu0 %1373
        %v1376 = vsel %vm1371, %v1374, 0.0
        %v1377 = vadd.f32 %v1367, %v1376
        %v1378 = vpack.c.bf16 %v1377, %v1377
        %v1389 = vunpack.c.l.b16 %v1014
        %v1390 = vunpack.c.l.b16 %v1015
        %v1391 = vunpack.c.l.b16 %v1016
        %v1392 = vunpack.c.l.b16 %v1017
        %v1393 = vunpack.c.l.b16 %v1018
        %v1394 = vunpack.c.l.b16 %v1019
        %v1395 = vunpack.c.l.b16 %v1020
        %v1396 = vunpack.c.l.b16 %v1021
        %v1397 = vunpack.c.l.b16 %v1022
        %v1398 = vunpack.c.l.b16 %v1023
        %v1399 = vpack.c.b16 %v1390, %v1389
        %v1400 = vpack.c.b16 %v1392, %v1391
        %v1401 = vpack.c.b16 %v1394, %v1393
        %v1402 = vpack.c.b16 %v1396, %v1395
        %v1403 = vpack.c.b16 %v1398, %v1397
        %vm1409 = vcmask 654336
        %v1411 = vsel %vm1409, %v1378, 0
        %1413 = vmatpush.bf16.msra.mxu0 0
        %1414 = vmatpush.bf16.msra.mxu0 0
        %1415 = vmatpush.bf16.msra.mxu0 0
        %1416 = vmatpush.bf16.msra.mxu0 %v1403
        %1417 = vmatpush.bf16.msra.mxu0 %v1402
        %1418 = vmatpush.bf16.msra.mxu0 %v1401
        %1419 = vmatpush.bf16.msra.mxu0 %v1400
        %1420 = vmatpush.bf16.msra.mxu0 %v1399
        %1421 = vmatmul.bf16.gmra.mxu0 %v1411
        %v1422 = vpop.f32.mrf.mxu0
        %v1423 = vadd.f32 0.0, %v1422
        %v1424 = vpop.f32.mrf.mxu0
        %1425 = vdwg.mxu0
        %vm1426 = vcmask 326944
        %v1427 = vsel %vm1426, %v1058, -inf
        %1428 = vmax.xlane.f32.xlu0 %v1427
        %v1429 = vpop.xlane.xlu0 %1428
        %v1430 = vsub.f32 %v1058, %v1429
        %v1431 = vmul.f32 %v1430, 1.442695
        %v1432 = vpow.pop %v1431
        %1434 = vrot.lane.b32.xlu0 %v1432, 92
        %v1435 = vpop.permute.xlu0 %1434
        %v1437 = vsel %vm1188, %v1435, 0.0
        %1438 = vadd.xlane.f32.xlu0 %v1437
        %v1439 = vpop.xlane.xlu0 %1438
        %v1440 = vrcp.pop %v1439
        %v1441 = vmul.f32 %v1432, %v1440
        %v1442 = vmul.f32 %v1441, %v1196
        %1443 = vset.pattern.permute.xlu0 4
        %1444 = vperm.xlu0 %1443, %v1125
        %v1445 = vpop.permute.xlu0 %1444
        %vm1446 = vcmp.eq.s32.totalorder %v1176, %v1445
        %1448 = vset.pattern.permute.xlu0 36
        %1449 = vperm.xlu0 %1448, %v1442
        %v1450 = vpop.permute.xlu0 %1449
        %v1452 = vsel %vm1446, %v1450, 0.0
        %v1453 = vadd.f32 %v1452, 0.0
        %1454 = vset.pattern.permute.xlu0 5
        %1455 = vperm.xlu0 %1454, %v1125
        %v1456 = vpop.permute.xlu0 %1455
        %vm1457 = vcmp.eq.s32.totalorder %v1176, %v1456
        %1458 = vset.pattern.permute.xlu0 37
        %1459 = vperm.xlu0 %1458, %v1442
        %v1460 = vpop.permute.xlu0 %1459
        %v1462 = vsel %vm1457, %v1460, 0.0
        %v1463 = vadd.f32 %v1453, %v1462
        %1464 = vset.pattern.permute.xlu0 6
        %1465 = vperm.xlu0 %1464, %v1125
        %v1466 = vpop.permute.xlu0 %1465
        %vm1467 = vcmp.eq.s32.totalorder %v1176, %v1466
        %1468 = vset.pattern.permute.xlu0 38
        %1469 = vperm.xlu0 %1468, %v1442
        %v1470 = vpop.permute.xlu0 %1469
        %v1472 = vsel %vm1467, %v1470, 0.0
        %v1473 = vadd.f32 %v1463, %v1472
        %1474 = vset.pattern.permute.xlu0 7
        %1475 = vperm.xlu0 %1474, %v1125
        %v1476 = vpop.permute.xlu0 %1475
        %vm1477 = vcmp.eq.s32.totalorder %v1176, %v1476
        %1478 = vset.pattern.permute.xlu0 39
        %1479 = vperm.xlu0 %1478, %v1442
        %v1480 = vpop.permute.xlu0 %1479
        %v1482 = vsel %vm1477, %v1480, 0.0
        %v1483 = vadd.f32 %v1473, %v1482
        %v1484 = vmul.f32 %v1441, %v1242
        %1485 = vset.pattern.permute.xlu0 4
        %1486 = vperm.xlu0 %1485, %v1137
        %v1487 = vpop.permute.xlu0 %1486
        %vm1488 = vcmp.eq.s32.totalorder %v1176, %v1487
        %1490 = vset.pattern.permute.xlu0 36
        %1491 = vperm.xlu0 %1490, %v1484
        %v1492 = vpop.permute.xlu0 %1491
        %v1494 = vsel %vm1488, %v1492, 0.0
        %v1495 = vadd.f32 %v1483, %v1494
        %1496 = vset.pattern.permute.xlu0 5
        %1497 = vperm.xlu0 %1496, %v1137
        %v1498 = vpop.permute.xlu0 %1497
        %vm1499 = vcmp.eq.s32.totalorder %v1176, %v1498
        %1500 = vset.pattern.permute.xlu0 37
        %1501 = vperm.xlu0 %1500, %v1484
        %v1502 = vpop.permute.xlu0 %1501
        %v1504 = vsel %vm1499, %v1502, 0.0
        %v1505 = vadd.f32 %v1495, %v1504
        %1506 = vset.pattern.permute.xlu0 6
        %1507 = vperm.xlu0 %1506, %v1137
        %v1508 = vpop.permute.xlu0 %1507
        %vm1509 = vcmp.eq.s32.totalorder %v1176, %v1508
        %1510 = vset.pattern.permute.xlu0 38
        %1511 = vperm.xlu0 %1510, %v1484
        %v1512 = vpop.permute.xlu0 %1511
        %v1514 = vsel %vm1509, %v1512, 0.0
        %v1515 = vadd.f32 %v1505, %v1514
        %1516 = vset.pattern.permute.xlu0 7
        %1517 = vperm.xlu0 %1516, %v1137
        %v1518 = vpop.permute.xlu0 %1517
        %vm1519 = vcmp.eq.s32.totalorder %v1176, %v1518
        %1520 = vset.pattern.permute.xlu0 39
        %1521 = vperm.xlu0 %1520, %v1484
        %v1522 = vpop.permute.xlu0 %1521
        %v1524 = vsel %vm1519, %v1522, 0.0
        %v1525 = vadd.f32 %v1515, %v1524
        %v1526 = vmul.f32 %v1441, %v1288
        %1527 = vset.pattern.permute.xlu0 4
        %1528 = vperm.xlu0 %1527, %v1166
        %v1529 = vpop.permute.xlu0 %1528
        %vm1530 = vcmp.eq.s32.totalorder %v1176, %v1529
        %1532 = vset.pattern.permute.xlu0 36
        %1533 = vperm.xlu0 %1532, %v1526
        %v1534 = vpop.permute.xlu0 %1533
        %v1536 = vsel %vm1530, %v1534, 0.0
        %v1537 = vadd.f32 %v1525, %v1536
        %1538 = vset.pattern.permute.xlu0 5
        %1539 = vperm.xlu0 %1538, %v1166
        %v1540 = vpop.permute.xlu0 %1539
        %vm1541 = vcmp.eq.s32.totalorder %v1176, %v1540
        %1542 = vset.pattern.permute.xlu0 37
        %1543 = vperm.xlu0 %1542, %v1526
        %v1544 = vpop.permute.xlu0 %1543
        %v1546 = vsel %vm1541, %v1544, 0.0
        %v1547 = vadd.f32 %v1537, %v1546
        %1548 = vset.pattern.permute.xlu0 6
        %1549 = vperm.xlu0 %1548, %v1166
        %v1550 = vpop.permute.xlu0 %1549
        %vm1551 = vcmp.eq.s32.totalorder %v1176, %v1550
        %1552 = vset.pattern.permute.xlu0 38
        %1553 = vperm.xlu0 %1552, %v1526
        %v1554 = vpop.permute.xlu0 %1553
        %v1556 = vsel %vm1551, %v1554, 0.0
        %v1557 = vadd.f32 %v1547, %v1556
        %1558 = vset.pattern.permute.xlu0 7
        %1559 = vperm.xlu0 %1558, %v1166
        %v1560 = vpop.permute.xlu0 %1559
        %vm1561 = vcmp.eq.s32.totalorder %v1176, %v1560
        %1562 = vset.pattern.permute.xlu0 39
        %1563 = vperm.xlu0 %1562, %v1526
        %v1564 = vpop.permute.xlu0 %1563
        %v1566 = vsel %vm1561, %v1564, 0.0
        %v1567 = vadd.f32 %v1557, %v1566
        %v1568 = vmul.f32 %v1441, %v1334
        %1569 = vset.pattern.permute.xlu0 4
        %1570 = vperm.xlu0 %1569, %v1174
        %v1571 = vpop.permute.xlu0 %1570
        %vm1572 = vcmp.eq.s32.totalorder %v1176, %v1571
        %1574 = vset.pattern.permute.xlu0 36
        %1575 = vperm.xlu0 %1574, %v1568
        %v1576 = vpop.permute.xlu0 %1575
        %v1578 = vsel %vm1572, %v1576, 0.0
        %v1579 = vadd.f32 %v1567, %v1578
        %1580 = vset.pattern.permute.xlu0 5
        %1581 = vperm.xlu0 %1580, %v1174
        %v1582 = vpop.permute.xlu0 %1581
        %vm1583 = vcmp.eq.s32.totalorder %v1176, %v1582
        %1584 = vset.pattern.permute.xlu0 37
        %1585 = vperm.xlu0 %1584, %v1568
        %v1586 = vpop.permute.xlu0 %1585
        %v1588 = vsel %vm1583, %v1586, 0.0
        %v1589 = vadd.f32 %v1579, %v1588
        %1590 = vset.pattern.permute.xlu0 6
        %1591 = vperm.xlu0 %1590, %v1174
        %v1592 = vpop.permute.xlu0 %1591
        %vm1593 = vcmp.eq.s32.totalorder %v1176, %v1592
        %1594 = vset.pattern.permute.xlu0 38
        %1595 = vperm.xlu0 %1594, %v1568
        %v1596 = vpop.permute.xlu0 %1595
        %v1598 = vsel %vm1593, %v1596, 0.0
        %v1599 = vadd.f32 %v1589, %v1598
        %1600 = vset.pattern.permute.xlu0 7
        %1601 = vperm.xlu0 %1600, %v1174
        %v1602 = vpop.permute.xlu0 %1601
        %vm1603 = vcmp.eq.s32.totalorder %v1176, %v1602
        %1604 = vset.pattern.permute.xlu0 39
        %1605 = vperm.xlu0 %1604, %v1568
        %v1606 = vpop.permute.xlu0 %1605
        %v1608 = vsel %vm1603, %v1606, 0.0
        %v1609 = vadd.f32 %v1599, %v1608
        %v1610 = vpack.c.bf16 %v1609, %v1609
        %1611 = vrot.lane.b32.xlu0 %v1399, 120
        %v1612 = vpop.permute.xlu0 %1611
        %1613 = vrot.lane.b32.xlu0 %v1400, 120
        %v1614 = vpop.permute.xlu0 %1613
        %1615 = vrot.lane.b32.xlu0 %v1401, 120
        %v1616 = vpop.permute.xlu0 %1615
        %1617 = vrot.lane.b32.xlu0 %v1402, 120
        %v1618 = vpop.permute.xlu0 %1617
        %1619 = vrot.lane.b32.xlu0 %v1403, 120
        %v1620 = vpop.permute.xlu0 %1619
        %v1627 = vsel %vm1409, %v1610, 0
        %1629 = vmatpush.bf16.msra.mxu0 0
        %1630 = vmatpush.bf16.msra.mxu0 0
        %1631 = vmatpush.bf16.msra.mxu0 0
        %1632 = vmatpush.bf16.msra.mxu0 %v1620
        %1633 = vmatpush.bf16.msra.mxu0 %v1618
        %1634 = vmatpush.bf16.msra.mxu0 %v1616
        %1635 = vmatpush.bf16.msra.mxu0 %v1614
        %1636 = vmatpush.bf16.msra.mxu0 %v1612
        %1637 = vmatmul.bf16.gmra.mxu0 %v1627
        %v1638 = vpop.f32.mrf.mxu0
        %v1639 = vadd.f32 0.0, %v1638
        %v1640 = vpop.f32.mrf.mxu0
        %1641 = vdwg.mxu0
        %vm1642 = vcmask 359744
        %v1643 = vsel %vm1642, %v1058, -inf
        %1644 = vmax.xlane.f32.xlu0 %v1643
        %v1645 = vpop.xlane.xlu0 %1644
        %v1646 = vsub.f32 %v1058, %v1645
        %v1647 = vmul.f32 %v1646, 1.442695
        %v1648 = vpow.pop %v1647
        %1650 = vrot.lane.b32.xlu0 %v1648, 88
        %v1651 = vpop.permute.xlu0 %1650
        %v1653 = vsel %vm1188, %v1651, 0.0
        %1654 = vadd.xlane.f32.xlu0 %v1653
        %v1655 = vpop.xlane.xlu0 %1654
        %v1656 = vrcp.pop %v1655
        %v1657 = vmul.f32 %v1648, %v1656
        %v1658 = vmul.f32 %v1657, %v1196
        %1659 = vset.pattern.permute.xlu0 8
        %1660 = vperm.xlu0 %1659, %v1125
        %v1661 = vpop.permute.xlu0 %1660
        %vm1662 = vcmp.eq.s32.totalorder %v1176, %v1661
        %1664 = vset.pattern.permute.xlu0 40
        %1665 = vperm.xlu0 %1664, %v1658
        %v1666 = vpop.permute.xlu0 %1665
        %v1668 = vsel %vm1662, %v1666, 0.0
        %v1669 = vadd.f32 %v1668, 0.0
        %1670 = vset.pattern.permute.xlu0 9
        %1671 = vperm.xlu0 %1670, %v1125
        %v1672 = vpop.permute.xlu0 %1671
        %vm1673 = vcmp.eq.s32.totalorder %v1176, %v1672
        %1674 = vset.pattern.permute.xlu0 41
        %1675 = vperm.xlu0 %1674, %v1658
        %v1676 = vpop.permute.xlu0 %1675
        %v1678 = vsel %vm1673, %v1676, 0.0
        %v1679 = vadd.f32 %v1669, %v1678
        %1680 = vset.pattern.permute.xlu0 10
        %1681 = vperm.xlu0 %1680, %v1125
        %v1682 = vpop.permute.xlu0 %1681
        %vm1683 = vcmp.eq.s32.totalorder %v1176, %v1682
        %1684 = vset.pattern.permute.xlu0 42
        %1685 = vperm.xlu0 %1684, %v1658
        %v1686 = vpop.permute.xlu0 %1685
        %v1688 = vsel %vm1683, %v1686, 0.0
        %v1689 = vadd.f32 %v1679, %v1688
        %1690 = vset.pattern.permute.xlu0 11
        %1691 = vperm.xlu0 %1690, %v1125
        %v1692 = vpop.permute.xlu0 %1691
        %vm1693 = vcmp.eq.s32.totalorder %v1176, %v1692
        %1694 = vset.pattern.permute.xlu0 43
        %1695 = vperm.xlu0 %1694, %v1658
        %v1696 = vpop.permute.xlu0 %1695
        %v1698 = vsel %vm1693, %v1696, 0.0
        %v1699 = vadd.f32 %v1689, %v1698
        %v1700 = vmul.f32 %v1657, %v1242
        %1701 = vset.pattern.permute.xlu0 8
        %1702 = vperm.xlu0 %1701, %v1137
        %v1703 = vpop.permute.xlu0 %1702
        %vm1704 = vcmp.eq.s32.totalorder %v1176, %v1703
        %1706 = vset.pattern.permute.xlu0 40
        %1707 = vperm.xlu0 %1706, %v1700
        %v1708 = vpop.permute.xlu0 %1707
        %v1710 = vsel %vm1704, %v1708, 0.0
        %v1711 = vadd.f32 %v1699, %v1710
        %1712 = vset.pattern.permute.xlu0 9
        %1713 = vperm.xlu0 %1712, %v1137
        %v1714 = vpop.permute.xlu0 %1713
        %vm1715 = vcmp.eq.s32.totalorder %v1176, %v1714
        %1716 = vset.pattern.permute.xlu0 41
        %1717 = vperm.xlu0 %1716, %v1700
        %v1718 = vpop.permute.xlu0 %1717
        %v1720 = vsel %vm1715, %v1718, 0.0
        %v1721 = vadd.f32 %v1711, %v1720
        %1722 = vset.pattern.permute.xlu0 10
        %1723 = vperm.xlu0 %1722, %v1137
        %v1724 = vpop.permute.xlu0 %1723
        %vm1725 = vcmp.eq.s32.totalorder %v1176, %v1724
        %1726 = vset.pattern.permute.xlu0 42
        %1727 = vperm.xlu0 %1726, %v1700
        %v1728 = vpop.permute.xlu0 %1727
        %v1730 = vsel %vm1725, %v1728, 0.0
        %v1731 = vadd.f32 %v1721, %v1730
        %1732 = vset.pattern.permute.xlu0 11
        %1733 = vperm.xlu0 %1732, %v1137
        %v1734 = vpop.permute.xlu0 %1733
        %vm1735 = vcmp.eq.s32.totalorder %v1176, %v1734
        %1736 = vset.pattern.permute.xlu0 43
        %1737 = vperm.xlu0 %1736, %v1700
        %v1738 = vpop.permute.xlu0 %1737
        %v1740 = vsel %vm1735, %v1738, 0.0
        %v1741 = vadd.f32 %v1731, %v1740
        %v1742 = vmul.f32 %v1657, %v1288
        %1743 = vset.pattern.permute.xlu0 8
        %1744 = vperm.xlu0 %1743, %v1166
        %v1745 = vpop.permute.xlu0 %1744
        %vm1746 = vcmp.eq.s32.totalorder %v1176, %v1745
        %1748 = vset.pattern.permute.xlu0 40
        %1749 = vperm.xlu0 %1748, %v1742
        %v1750 = vpop.permute.xlu0 %1749
        %v1752 = vsel %vm1746, %v1750, 0.0
        %v1753 = vadd.f32 %v1741, %v1752
        %1754 = vset.pattern.permute.xlu0 9
        %1755 = vperm.xlu0 %1754, %v1166
        %v1756 = vpop.permute.xlu0 %1755
        %vm1757 = vcmp.eq.s32.totalorder %v1176, %v1756
        %1758 = vset.pattern.permute.xlu0 41
        %1759 = vperm.xlu0 %1758, %v1742
        %v1760 = vpop.permute.xlu0 %1759
        %v1762 = vsel %vm1757, %v1760, 0.0
        %v1763 = vadd.f32 %v1753, %v1762
        %1764 = vset.pattern.permute.xlu0 10
        %1765 = vperm.xlu0 %1764, %v1166
        %v1766 = vpop.permute.xlu0 %1765
        %vm1767 = vcmp.eq.s32.totalorder %v1176, %v1766
        %1768 = vset.pattern.permute.xlu0 42
        %1769 = vperm.xlu0 %1768, %v1742
        %v1770 = vpop.permute.xlu0 %1769
        %v1772 = vsel %vm1767, %v1770, 0.0
        %v1773 = vadd.f32 %v1763, %v1772
        %1774 = vset.pattern.permute.xlu0 11
        %1775 = vperm.xlu0 %1774, %v1166
        %v1776 = vpop.permute.xlu0 %1775
        %vm1777 = vcmp.eq.s32.totalorder %v1176, %v1776
        %1778 = vset.pattern.permute.xlu0 43
        %1779 = vperm.xlu0 %1778, %v1742
        %v1780 = vpop.permute.xlu0 %1779
        %v1782 = vsel %vm1777, %v1780, 0.0
        %v1783 = vadd.f32 %v1773, %v1782
        %v1784 = vmul.f32 %v1657, %v1334
        %1785 = vset.pattern.permute.xlu0 8
        %1786 = vperm.xlu0 %1785, %v1174
        %v1787 = vpop.permute.xlu0 %1786
        %vm1788 = vcmp.eq.s32.totalorder %v1176, %v1787
        %1790 = vset.pattern.permute.xlu0 40
        %1791 = vperm.xlu0 %1790, %v1784
        %v1792 = vpop.permute.xlu0 %1791
        %v1794 = vsel %vm1788, %v1792, 0.0
        %v1795 = vadd.f32 %v1783, %v1794
        %1796 = vset.pattern.permute.xlu0 9
        %1797 = vperm.xlu0 %1796, %v1174
        %v1798 = vpop.permute.xlu0 %1797
        %vm1799 = vcmp.eq.s32.totalorder %v1176, %v1798
        %1800 = vset.pattern.permute.xlu0 41
        %1801 = vperm.xlu0 %1800, %v1784
        %v1802 = vpop.permute.xlu0 %1801
        %v1804 = vsel %vm1799, %v1802, 0.0
        %v1805 = vadd.f32 %v1795, %v1804
        %1806 = vset.pattern.permute.xlu0 10
        %1807 = vperm.xlu0 %1806, %v1174
        %v1808 = vpop.permute.xlu0 %1807
        %vm1809 = vcmp.eq.s32.totalorder %v1176, %v1808
        %1810 = vset.pattern.permute.xlu0 42
        %1811 = vperm.xlu0 %1810, %v1784
        %v1812 = vpop.permute.xlu0 %1811
        %v1814 = vsel %vm1809, %v1812, 0.0
        %v1815 = vadd.f32 %v1805, %v1814
        %1816 = vset.pattern.permute.xlu0 11
        %1817 = vperm.xlu0 %1816, %v1174
        %v1818 = vpop.permute.xlu0 %1817
        %vm1819 = vcmp.eq.s32.totalorder %v1176, %v1818
        %1820 = vset.pattern.permute.xlu0 43
        %1821 = vperm.xlu0 %1820, %v1784
        %v1822 = vpop.permute.xlu0 %1821
        %v1824 = vsel %vm1819, %v1822, 0.0
        %v1825 = vadd.f32 %v1815, %v1824
        %v1826 = vpack.c.bf16 %v1825, %v1825
        %1827 = vrot.lane.b32.xlu0 %v1399, 112
        %v1828 = vpop.permute.xlu0 %1827
        %1829 = vrot.lane.b32.xlu0 %v1400, 112
        %v1830 = vpop.permute.xlu0 %1829
        %1831 = vrot.lane.b32.xlu0 %v1401, 112
        %v1832 = vpop.permute.xlu0 %1831
        %1833 = vrot.lane.b32.xlu0 %v1402, 112
        %v1834 = vpop.permute.xlu0 %1833
        %1835 = vrot.lane.b32.xlu0 %v1403, 112
        %v1836 = vpop.permute.xlu0 %1835
        %v1843 = vsel %vm1409, %v1826, 0
        %1845 = vmatpush.bf16.msra.mxu0 0
        %1846 = vmatpush.bf16.msra.mxu0 0
        %1847 = vmatpush.bf16.msra.mxu0 0
        %1848 = vmatpush.bf16.msra.mxu0 %v1836
        %1849 = vmatpush.bf16.msra.mxu0 %v1834
        %1850 = vmatpush.bf16.msra.mxu0 %v1832
        %1851 = vmatpush.bf16.msra.mxu0 %v1830
        %1852 = vmatpush.bf16.msra.mxu0 %v1828
        %1853 = vmatmul.bf16.gmra.mxu0 %v1843
        %v1854 = vpop.f32.mrf.mxu0
        %v1855 = vadd.f32 0.0, %v1854
        %v1856 = vpop.f32.mrf.mxu0
        %1857 = vdwg.mxu0
        %vm1858 = vcmask 392544
        %v1859 = vsel %vm1858, %v1058, -inf
        %1860 = vmax.xlane.f32.xlu0 %v1859
        %v1861 = vpop.xlane.xlu0 %1860
        %v1862 = vsub.f32 %v1058, %v1861
        %v1863 = vmul.f32 %v1862, 1.442695
        %v1864 = vpow.pop %v1863
        %1866 = vrot.lane.b32.xlu0 %v1864, 84
        %v1867 = vpop.permute.xlu0 %1866
        %v1869 = vsel %vm1188, %v1867, 0.0
        %1870 = vadd.xlane.f32.xlu0 %v1869
        %v1871 = vpop.xlane.xlu0 %1870
        %v1872 = vrcp.pop %v1871
        %v1873 = vmul.f32 %v1864, %v1872
        %v1874 = vmul.f32 %v1873, %v1196
        %1875 = vset.pattern.permute.xlu0 12
        %1876 = vperm.xlu0 %1875, %v1125
        %v1877 = vpop.permute.xlu0 %1876
        %vm1878 = vcmp.eq.s32.totalorder %v1176, %v1877
        %1880 = vset.pattern.permute.xlu0 44
        %1881 = vperm.xlu0 %1880, %v1874
        %v1882 = vpop.permute.xlu0 %1881
        %v1884 = vsel %vm1878, %v1882, 0.0
        %v1885 = vadd.f32 %v1884, 0.0
        %1886 = vset.pattern.permute.xlu0 13
        %1887 = vperm.xlu0 %1886, %v1125
        %v1888 = vpop.permute.xlu0 %1887
        %vm1889 = vcmp.eq.s32.totalorder %v1176, %v1888
        %1890 = vset.pattern.permute.xlu0 45
        %1891 = vperm.xlu0 %1890, %v1874
        %v1892 = vpop.permute.xlu0 %1891
        %v1894 = vsel %vm1889, %v1892, 0.0
        %v1895 = vadd.f32 %v1885, %v1894
        %1896 = vset.pattern.permute.xlu0 14
        %1897 = vperm.xlu0 %1896, %v1125
        %v1898 = vpop.permute.xlu0 %1897
        %vm1899 = vcmp.eq.s32.totalorder %v1176, %v1898
        %1900 = vset.pattern.permute.xlu0 46
        %1901 = vperm.xlu0 %1900, %v1874
        %v1902 = vpop.permute.xlu0 %1901
        %v1904 = vsel %vm1899, %v1902, 0.0
        %v1905 = vadd.f32 %v1895, %v1904
        %1906 = vset.pattern.permute.xlu0 15
        %1907 = vperm.xlu0 %1906, %v1125
        %v1908 = vpop.permute.xlu0 %1907
        %vm1909 = vcmp.eq.s32.totalorder %v1176, %v1908
        %1910 = vset.pattern.permute.xlu0 47
        %1911 = vperm.xlu0 %1910, %v1874
        %v1912 = vpop.permute.xlu0 %1911
        %v1914 = vsel %vm1909, %v1912, 0.0
        %v1915 = vadd.f32 %v1905, %v1914
        %v1916 = vmul.f32 %v1873, %v1242
        %1917 = vset.pattern.permute.xlu0 12
        %1918 = vperm.xlu0 %1917, %v1137
        %v1919 = vpop.permute.xlu0 %1918
        %vm1920 = vcmp.eq.s32.totalorder %v1176, %v1919
        %1922 = vset.pattern.permute.xlu0 44
        %1923 = vperm.xlu0 %1922, %v1916
        %v1924 = vpop.permute.xlu0 %1923
        %v1926 = vsel %vm1920, %v1924, 0.0
        %v1927 = vadd.f32 %v1915, %v1926
        %1928 = vset.pattern.permute.xlu0 13
        %1929 = vperm.xlu0 %1928, %v1137
        %v1930 = vpop.permute.xlu0 %1929
        %vm1931 = vcmp.eq.s32.totalorder %v1176, %v1930
        %1932 = vset.pattern.permute.xlu0 45
        %1933 = vperm.xlu0 %1932, %v1916
        %v1934 = vpop.permute.xlu0 %1933
        %v1936 = vsel %vm1931, %v1934, 0.0
        %v1937 = vadd.f32 %v1927, %v1936
        %1938 = vset.pattern.permute.xlu0 14
        %1939 = vperm.xlu0 %1938, %v1137
        %v1940 = vpop.permute.xlu0 %1939
        %vm1941 = vcmp.eq.s32.totalorder %v1176, %v1940
        %1942 = vset.pattern.permute.xlu0 46
        %1943 = vperm.xlu0 %1942, %v1916
        %v1944 = vpop.permute.xlu0 %1943
        %v1946 = vsel %vm1941, %v1944, 0.0
        %v1947 = vadd.f32 %v1937, %v1946
        %1948 = vset.pattern.permute.xlu0 15
        %1949 = vperm.xlu0 %1948, %v1137
        %v1950 = vpop.permute.xlu0 %1949
        %vm1951 = vcmp.eq.s32.totalorder %v1176, %v1950
        %1952 = vset.pattern.permute.xlu0 47
        %1953 = vperm.xlu0 %1952, %v1916
        %v1954 = vpop.permute.xlu0 %1953
        %v1956 = vsel %vm1951, %v1954, 0.0
        %v1957 = vadd.f32 %v1947, %v1956
        %v1958 = vmul.f32 %v1873, %v1288
        %1959 = vset.pattern.permute.xlu0 12
        %1960 = vperm.xlu0 %1959, %v1166
        %v1961 = vpop.permute.xlu0 %1960
        %vm1962 = vcmp.eq.s32.totalorder %v1176, %v1961
        %1964 = vset.pattern.permute.xlu0 44
        %1965 = vperm.xlu0 %1964, %v1958
        %v1966 = vpop.permute.xlu0 %1965
        %v1968 = vsel %vm1962, %v1966, 0.0
        %v1969 = vadd.f32 %v1957, %v1968
        %1970 = vset.pattern.permute.xlu0 13
        %1971 = vperm.xlu0 %1970, %v1166
        %v1972 = vpop.permute.xlu0 %1971
        %vm1973 = vcmp.eq.s32.totalorder %v1176, %v1972
        %1974 = vset.pattern.permute.xlu0 45
        %1975 = vperm.xlu0 %1974, %v1958
        %v1976 = vpop.permute.xlu0 %1975
        %v1978 = vsel %vm1973, %v1976, 0.0
        %v1979 = vadd.f32 %v1969, %v1978
        %1980 = vset.pattern.permute.xlu0 14
        %1981 = vperm.xlu0 %1980, %v1166
        %v1982 = vpop.permute.xlu0 %1981
        %vm1983 = vcmp.eq.s32.totalorder %v1176, %v1982
        %1984 = vset.pattern.permute.xlu0 46
        %1985 = vperm.xlu0 %1984, %v1958
        %v1986 = vpop.permute.xlu0 %1985
        %v1988 = vsel %vm1983, %v1986, 0.0
        %v1989 = vadd.f32 %v1979, %v1988
        %1990 = vset.pattern.permute.xlu0 15
        %1991 = vperm.xlu0 %1990, %v1166
        %v1992 = vpop.permute.xlu0 %1991
        %vm1993 = vcmp.eq.s32.totalorder %v1176, %v1992
        %1994 = vset.pattern.permute.xlu0 47
        %1995 = vperm.xlu0 %1994, %v1958
        %v1996 = vpop.permute.xlu0 %1995
        %v1998 = vsel %vm1993, %v1996, 0.0
        %v1999 = vadd.f32 %v1989, %v1998
        %v2000 = vmul.f32 %v1873, %v1334
        %2001 = vset.pattern.permute.xlu0 12
        %2002 = vperm.xlu0 %2001, %v1174
        %v2003 = vpop.permute.xlu0 %2002
        %vm2004 = vcmp.eq.s32.totalorder %v1176, %v2003
        %2006 = vset.pattern.permute.xlu0 44
        %2007 = vperm.xlu0 %2006, %v2000
        %v2008 = vpop.permute.xlu0 %2007
        %v2010 = vsel %vm2004, %v2008, 0.0
        %v2011 = vadd.f32 %v1999, %v2010
        %2012 = vset.pattern.permute.xlu0 13
        %2013 = vperm.xlu0 %2012, %v1174
        %v2014 = vpop.permute.xlu0 %2013
        %vm2015 = vcmp.eq.s32.totalorder %v1176, %v2014
        %2016 = vset.pattern.permute.xlu0 45
        %2017 = vperm.xlu0 %2016, %v2000
        %v2018 = vpop.permute.xlu0 %2017
        %v2020 = vsel %vm2015, %v2018, 0.0
        %v2021 = vadd.f32 %v2011, %v2020
        %2022 = vset.pattern.permute.xlu0 14
        %2023 = vperm.xlu0 %2022, %v1174
        %v2024 = vpop.permute.xlu0 %2023
        %vm2025 = vcmp.eq.s32.totalorder %v1176, %v2024
        %2026 = vset.pattern.permute.xlu0 46
        %2027 = vperm.xlu0 %2026, %v2000
        %v2028 = vpop.permute.xlu0 %2027
        %v2030 = vsel %vm2025, %v2028, 0.0
        %v2031 = vadd.f32 %v2021, %v2030
        %2032 = vset.pattern.permute.xlu0 15
        %2033 = vperm.xlu0 %2032, %v1174
        %v2034 = vpop.permute.xlu0 %2033
        %vm2035 = vcmp.eq.s32.totalorder %v1176, %v2034
        %2036 = vset.pattern.permute.xlu0 47
        %2037 = vperm.xlu0 %2036, %v2000
        %v2038 = vpop.permute.xlu0 %2037
        %v2040 = vsel %vm2035, %v2038, 0.0
        %v2041 = vadd.f32 %v2031, %v2040
        %v2042 = vpack.c.bf16 %v2041, %v2041
        %2043 = vrot.lane.b32.xlu0 %v1399, 104
        %v2044 = vpop.permute.xlu0 %2043
        %2045 = vrot.lane.b32.xlu0 %v1400, 104
        %v2046 = vpop.permute.xlu0 %2045
        %2047 = vrot.lane.b32.xlu0 %v1401, 104
        %v2048 = vpop.permute.xlu0 %2047
        %2049 = vrot.lane.b32.xlu0 %v1402, 104
        %v2050 = vpop.permute.xlu0 %2049
        %2051 = vrot.lane.b32.xlu0 %v1403, 104
        %v2052 = vpop.permute.xlu0 %2051
        %v2059 = vsel %vm1409, %v2042, 0
        %2061 = vmatpush.bf16.msra.mxu0 0
        %2062 = vmatpush.bf16.msra.mxu0 0
        %2063 = vmatpush.bf16.msra.mxu0 0
        %2064 = vmatpush.bf16.msra.mxu0 %v2052
        %2065 = vmatpush.bf16.msra.mxu0 %v2050
        %2066 = vmatpush.bf16.msra.mxu0 %v2048
        %2067 = vmatpush.bf16.msra.mxu0 %v2046
        %2068 = vmatpush.bf16.msra.mxu0 %v2044
        %2069 = vmatmul.bf16.gmra.mxu0 %v2059
        %v2070 = vpop.f32.mrf.mxu0
        %v2071 = vadd.f32 0.0, %v2070
        %v2072 = vpop.f32.mrf.mxu0
        %2073 = vdwg.mxu0
        %2075 = vrot.lane.b32.xlu0 %v1639, 8
        %v2076 = vpop.permute.xlu0 %2075
        %2079 = vrot.lane.b32.xlu0 %v1855, 16
        %v2080 = vpop.permute.xlu0 %2079
        %2083 = vrot.lane.b32.xlu0 %v2071, 24
        %v2084 = vpop.permute.xlu0 %2083
        %v2086 = vsel %vm623, %v1423, %v2076
        %v2087 = vsel %vm860, %v2086, %v2080
        %v2088 = vsel %vm862, %v2087, %v2084
        %v2089 = vpack.c.bf16 %v2088, %v2088
        %v2090 = vld [vmem:[%s10] sm:$0xf]
        %v2091 = vld [vmem:[%s10 + $0x4] sm:$0xf]
        %v2092 = vld [vmem:[%s10 + $0x8] sm:$0xf]
        %v2093 = vld [vmem:[%s10 + $0xc] sm:$0xf]
        %v2094 = vperm.slane %v574, 4
        %v2099 = vunpack.c.l.b16 %v2090
        %v2100 = vunpack.c.l.b16 %v2091
        %v2101 = vunpack.c.l.b16 %v2092
        %v2102 = vunpack.c.l.b16 %v2093
        %v2103 = vpack.c.b16 %v2100, %v2099
        %v2104 = vpack.c.b16 %v2102, %v2101
        %v2108 = vsel %vm598, %v2089, 0
        %2110 = vmatpush.bf16.msra.mxu0 0
        %2111 = vmatpush.bf16.msra.mxu0 0
        %2112 = vmatpush.bf16.msra.mxu0 0
        %2113 = vmatpush.bf16.msra.mxu0 0
        %2114 = vmatpush.bf16.msra.mxu0 0
        %2115 = vmatpush.bf16.msra.mxu0 0
        %2116 = vmatpush.bf16.msra.mxu0 %v2104
        %2117 = vmatpush.bf16.msra.mxu0 %v2103
        %2118 = vmatmul.bf16.gmra.mxu0 %v2108
        %v2119 = vpop.f32.mrf.mxu0
        %v2120 = vadd.f32 %v2094, %v2119
        %v2121 = vpop.f32.mrf.mxu0
        %2122 = vdwg.mxu0
        %v2123 = vadd.f32 %v931, %v2120
        %v2124 = vsel %vm598, %v2123, 0.0
        %2125 = vadd.xlane.f32.xlu0 %v2124
        %v2126 = vpop.xlane.xlu0 %2125
        %v2127 = vmul.f32 %v2126, %v908
        %v2128 = vsub.f32 %v2123, %v2127
        %v2129 = vmul.f32 %v2128, %v2128
        %v2130 = vsel %vm598, %v2129, 0.0
        %2131 = vadd.xlane.f32.xlu0 %v2130
        %v2132 = vpop.xlane.xlu0 %2131
        %v2133 = vmul.f32 %v2132, %v908
        %v2134 = vadd.f32 %v2133, 1e-05
        %v2135 = vrsqrt.pop %v2134
        %v2136 = vmul.f32 %v2135, %v2134
        %v2137 = vmul.f32 %v2136, %v2135
        %v2138 = vmul.f32 0.5, %v2137
        %v2139 = vsub.f32 1.5, %v2138
        %v2140 = vmul.f32 %v2135, %v2139
        %vm2141 = vweird.f32 %v2134
        %vm2142 = vweird.f32 %v2135
        %vm2143 = vmor %vm2141, %vm2142
        %v2144 = vsel %vm2143, %v2135, %v2140
        %v2145 = vmul.f32 %v2128, %v2144
        %v2146 = vperm.slane %v574, 5
        %v2147 = vmul.f32 %v2145, %v2146
        %v2148 = vperm.slane %v574, 6
        %v2149 = vadd.f32 %v2147, %v2148
        %v2150 = vpack.c.bf16 %v2149, %v2149
        %v2151 = vld [vmem:[%s11] sm:$0xf]
        %v2152 = vld [vmem:[%s11 + $0x4] sm:$0xf]
        %v2153 = vld [vmem:[%s11 + $0x8] sm:$0xf]
        %v2154 = vld [vmem:[%s11 + $0xc] sm:$0xf]
        %v2155 = vld [vmem:[%s12] sm:$0x1]
        %v2157 = vperm.slane %v2155, 0
        %v2163 = vunpack.c.l.b16 %v2151
        %v2164 = vunpack.c.l.b16 %v2152
        %v2165 = vunpack.c.l.b16 %v2153
        %v2166 = vunpack.c.l.b16 %v2154
        %v2167 = vpack.c.b16 %v2164, %v2163
        %v2168 = vpack.c.b16 %v2166, %v2165
        %v2172 = vsel %vm598, %v2150, 0
        %2174 = vmatpush.bf16.msra.mxu0 0
        %2175 = vmatpush.bf16.msra.mxu0 0
        %2176 = vmatpush.bf16.msra.mxu0 0
        %2177 = vmatpush.bf16.msra.mxu0 0
        %2178 = vmatpush.bf16.msra.mxu0 0
        %2179 = vmatpush.bf16.msra.mxu0 0
        %2180 = vmatpush.bf16.msra.mxu0 %v2168
        %2181 = vmatpush.bf16.msra.mxu0 %v2167
        %2182 = vmatmul.bf16.gmra.mxu0 %v2172
        %v2183 = vpop.f32.mrf.mxu0
        %v2184 = vadd.f32 %v2157, %v2183
        %v2185 = vpop.f32.mrf.mxu0
        %2186 = vdwg.mxu0
        %v2187 = vmax.f32 %v2184, 0.0
        %v2188 = vpack.c.bf16 %v2187, %v2187
        %v2189 = vld [vmem:[%s13] sm:$0xf]
        %v2190 = vld [vmem:[%s13 + $0x4] sm:$0xf]
        %v2191 = vld [vmem:[%s13 + $0x8] sm:$0xf]
        %v2192 = vld [vmem:[%s13 + $0xc] sm:$0xf]
        %v2193 = vld [vmem:[%s13 + $0x10] sm:$0xf]
        %v2194 = vld [vmem:[%s13 + $0x14] sm:$0xf]
        %v2195 = vld [vmem:[%s13 + $0x18] sm:$0xf]
        %v2196 = vld [vmem:[%s13 + $0x1c] sm:$0xf]
        %v2197 = vperm.slane %v574, 7
        %v2206 = vunpack.c.l.b16 %v2189
        %v2207 = vunpack.c.l.b16 %v2190
        %v2208 = vunpack.c.l.b16 %v2191
        %v2209 = vunpack.c.l.b16 %v2192
        %v2210 = vunpack.c.l.b16 %v2193
        %v2211 = vunpack.c.l.b16 %v2194
        %v2212 = vunpack.c.l.b16 %v2195
        %v2213 = vunpack.c.l.b16 %v2196
        %v2214 = vpack.c.b16 %v2207, %v2206
        %v2215 = vpack.c.b16 %v2209, %v2208
        %v2216 = vpack.c.b16 %v2211, %v2210
        %v2217 = vpack.c.b16 %v2213, %v2212
        %vm2222 = vcmask 523264
        %v2224 = vsel %vm2222, %v2188, 0
        %2226 = vmatpush.bf16.msra.mxu0 0
        %2227 = vmatpush.bf16.msra.mxu0 0
        %2228 = vmatpush.bf16.msra.mxu0 0
        %2229 = vmatpush.bf16.msra.mxu0 0
        %2230 = vmatpush.bf16.msra.mxu0 %v2217
        %2231 = vmatpush.bf16.msra.mxu0 %v2216
        %2232 = vmatpush.bf16.msra.mxu0 %v2215
        %2233 = vmatpush.bf16.msra.mxu0 %v2214
        %2234 = vmatmul.bf16.gmra.mxu0 %v2224
        %v2235 = vpop.f32.mrf.mxu0
        %v2236 = vadd.f32 %v2197, %v2235
        %v2237 = vpop.f32.mrf.mxu0
        %2238 = vdwg.mxu0
        %v2239 = vadd.f32 %v2149, %v2236
        %v2240 = vsel %vm598, %v2239, 0.0
        %2241 = vadd.xlane.f32.xlu0 %v2240
        %v2242 = vpop.xlane.xlu0 %2241
        %v2243 = vmul.f32 %v2242, %v908
        %v2244 = vsub.f32 %v2239, %v2243
        %v2245 = vmul.f32 %v2244, %v2244
        %v2246 = vsel %vm598, %v2245, 0.0
        %2247 = vadd.xlane.f32.xlu0 %v2246
        %v2248 = vpop.xlane.xlu0 %2247
        %v2249 = vmul.f32 %v2248, %v908
        %v2250 = vadd.f32 %v2249, 1e-05
        %v2251 = vrsqrt.pop %v2250
        %v2252 = vmul.f32 %v2251, %v2250
        %v2253 = vmul.f32 %v2252, %v2251
        %v2254 = vmul.f32 0.5, %v2253
        %v2255 = vsub.f32 1.5, %v2254
        %v2256 = vmul.f32 %v2251, %v2255
        %vm2257 = vweird.f32 %v2250
        %vm2258 = vweird.f32 %v2251
        %vm2259 = vmor %vm2257, %vm2258
        %v2260 = vsel %vm2259, %v2251, %v2256
        %v2261 = vmul.f32 %v2244, %v2260
        %v2262 = vperm.slane %v575, 0
        %v2263 = vmul.f32 %v2261, %v2262
        %v2264 = vperm.slane %v575, 1
        %v2265 = vadd.f32 %v2263, %v2264
        %2266 = vst.msk [vmem:[%s553] sm:$0xff] %vm598, %v2265
        %s2267 = sand.u32 %s394, 1
        %s2268 = scalar_lea.sflag [#allocation3], %s2267
        %s2269 = sand.u32 %s394, 1
        %s2270 = smul.addr %s2269, 8
        %s2271 = scalar_lea.vmem [#allocation2], %s2270
        // Predicated region
        $region85: #{deformable_decoder_layer.1} parent=83 // pred_check
          %p2272 = pneg %p404
        $region86: #{deformable_decoder_layer.1} parent=83 // pred_check_branch
          %2274 = sbr.rel (%p2272) target = $region88
        $region87: #{deformable_decoder_layer.1} parent=83 // pred_region
          %2276 = vsyncadd %s2268, 0
          %s2277 = smul.addr %s30, 8
          %s2278 = scalar_lea.hbm %s16, %s2277
          %s2280 = sshll.u32 %s2271, 4
          %s2281 = int_to_ptr.vmem [resolvable:$true] %s2280
          %s2282 = sshll.u32 %s2278, 4
          %s2283 = int_to_ptr.hbm [resolvable:$true] %s2282
          %2285 = dma.vmem_to_hbm [thread:$0]  %s2281, 128, %s2283, %s2268
        $region88: #{deformable_decoder_layer.1} parent=83 // pred_fallthru
          _
      $region84: #{deformable_decoder_layer.1} parent=5 // pred_fallthru
        _
      %p2286 = scmp.le.s32.totalorder 2, %s25
      // Predicated region
      $region89: #{deformable_decoder_layer.1} parent=5 // pred_check
        %p2287 = pneg %p2286
      $region90: #{deformable_decoder_layer.1} parent=5 // pred_check_branch
        %2289 = sbr.rel (%p2287) target = $region92
      $region91: #{deformable_decoder_layer.1} parent=5 // pred_region
        %s2290 = ssub.s32 %s25, 2
        // Predicated region
        $region93: #{deformable_decoder_layer.1} parent=91 // pred_check
          %p2291 = pneg %p410
        $region94: #{deformable_decoder_layer.1} parent=91 // pred_check_branch
          %2293 = sbr.rel (%p2291) target = $region96
        $region95: #{deformable_decoder_layer.1} parent=91 // pred_region
          %s2294 = sand.u32 %s395, 1
          %s2295 = scalar_lea.sflag [#allocation3], %s2294
          %s2296 = sand.u32 %s395, 1
          %s2297 = smul.addr %s2296, 8
          %s2298 = scalar_lea.vmem [#allocation2], %s2297
          %2300 = dma.done %s2295, 128
        $region96: #{deformable_decoder_layer.1} parent=91 // pred_fallthru
          _
      $region92: #{deformable_decoder_layer.1} parent=5 // pred_fallthru
        _
    $region6: #{deformable_decoder_layer.1} parent=1 // loop_footer
      %s29 = sadd.s32 1, %s25
    $region7: #{deformable_decoder_layer.1} parent=1 // loop_footer_branch
      %24 = sbr.rel target = $region3
    $region8: #{deformable_decoder_layer.1} parent=1 // loop_exit
      _
    %2301 = vsyncpa [#allocation3], 1
    %s2302 = scalar_lea.sflag [#allocation3], 1
    %2303 = vsyncpa %s2302, 1

</llo_original>
